<compile_context>
chip_gen: v7x
topology: tpu7x:2x2x1
jax: 0.10.0
libtpu: 0.0.40
codegen_flags: <defaults>
</compile_context>

<pallas_src>
import functools

import jax
import jax.numpy as jnp
from jax import lax
from jax.experimental import pallas as pl
from jax.experimental.pallas import tpu as pltpu

# ---- small demo config (HGRN defaults scaled down) ----
B, T, D = 2, 16, 128          # batch, sequence, hidden_size
E = D                         # input_dim = hidden_size * expand_ratio (expand_ratio=1)
HIDDEN_RATIO = 4
I_SIZE = 256 * ((int(D * HIDDEN_RATIO * 2 / 3) + 255) // 256)   # fla rounding -> 512
EPS = 1e-6


def hgrn_asr_block_kernel(x_ref, w_an_ref, w_ifg_ref, w_gn_ref, wo_ref,
                          w_mn_ref, wgate_ref, wdown_ref, out_ref, *, seq_len):
    """One grid step == one row tile of (rows, D) tokens (batch folded into rows)."""
    x = x_ref[...]                                                  # (R, D) f32
    R = x.shape[0]

    def rms(v, w):
        return v * lax.rsqrt(jnp.mean(v * v, axis=-1, keepdims=True) + EPS) * w

    # ---- attn_norm (RMSNorm) ----
    xn = rms(x, w_an_ref[...])

    # ---- fused i/f/g projection: one (R,D)@(D,3E) bf16 matmul, f32 accumulate ----
    ifg = jnp.dot(xn.astype(jnp.bfloat16), w_ifg_ref[...],
                  preferred_element_type=jnp.float32)               # (R, 3E)
    i = ifg[:, :E]
    f = ifg[:, E:2 * E]
    g = ifg[:, 2 * E:]

    a = jax.nn.sigmoid(f)                      # forget multiplier (lower_bound == 0)
    b = i * jax.nn.sigmoid(i) * (1.0 - a)      # swiglu(i, 1 - sigmoid(f))

    # ---- HGRN linear recurrence: segmented Hillis-Steele scan over rows ----
    # monoid element t = (a_t, b_t) ~ h -> a_t*h + b_t ;
    # combine(left, right) = (a_R*a_L, a_R*b_L + b_R).
    # "Shift rows down by d" is an XLU sublane roll (exact, off the MXU path);
    # rows whose predecessor would cross a segment (batch) boundary or wrap are
    # masked out, so segments of length seq_len never mix.
    t_local = lax.broadcasted_iota(jnp.int32, (R, 1), 0) % seq_len  # local time index
    d = 1
    while d < seq_len:                         # log2(seq_len) passes, static unroll
        pa = pltpu.roll(a, shift=d, axis=0)    # row r <- row r-d (wrapped; masked)
        pb = pltpu.roll(b, shift=d, axis=0)
        valid = t_local >= d                   # predecessor lies in same segment
        b = jnp.where(valid, a * pb + b, b)
        a = jnp.where(valid, a * pa, a)
        d *= 2
    o = b                                      # (R, E) == h_t per token

    # ---- gated RMSNorm: rmsnorm(o)*weight * swish(g) ----
    on = rms(o, w_gn_ref[...]) * (g * jax.nn.sigmoid(g))
    attn_out = jnp.dot(on.astype(jnp.bfloat16), wo_ref[...],
                       preferred_element_type=jnp.float32)          # (R, D)

    # ---- residual add + mlp_norm (fuse_norm path) ----
    h1 = x + attn_out
    h1n = rms(h1, w_mn_ref[...])

    # ---- HGRNMLP (swiglu) ----
    gu = jnp.dot(h1n.astype(jnp.bfloat16), wgate_ref[...],
                 preferred_element_type=jnp.float32)                # (R, 2*I)
    gate = gu[:, :I_SIZE]
    u = gu[:, I_SIZE:]
    z = gate * jax.nn.sigmoid(gate) * u
    mlp_out = jnp.dot(z.astype(jnp.bfloat16), wdown_ref[...],
                      preferred_element_type=jnp.float32)           # (R, D)

    out_ref[...] = (h1 + mlp_out).astype(out_ref.dtype)


def hgrn_asr_block(x, params, *, row_tile=None):
    (w_an, w_ifg, w_gn, wo, w_mn, wgate, wdown) = params
    Bx, Tx, Dx = x.shape
    rows = Bx * Tx

    if row_tile is None:
        # Largest multiple of T that divides rows, capped near 256 rows (so the MXU
        # sees M>=256 at real sizes) while leaving >=2 grid steps when possible so
        # both v7x TensorCores get work (the grid axis is "parallel").
        cands = [m * Tx for m in range(rows // Tx, 0, -1) if rows % (m * Tx) == 0]
        row_tile = cands[0]
        for c in cands:
            if c <= max(256, Tx) and rows // c >= 2:
                row_tile = c
                break
    assert rows % row_tile == 0 and row_tile % Tx == 0 and row_tile % 8 == 0
    x2 = x.reshape(rows, Dx)

    kernel = functools.partial(hgrn_asr_block_kernel, seq_len=Tx)
    grid = (rows // row_tile,)
    row_spec = pl.BlockSpec((row_tile, Dx), lambda r: (r, 0))

    def call(single_buffer_weights):
        # Constant index map -> the weight block is identical at every grid step;
        # Buffered(1) drops the useless second pipeline buffer so production-size
        # weights fit VMEM (v7x: 64 MiB).
        wkw = {"pipeline_mode": pl.Buffered(1)} if single_buffer_weights else {}

        def const(shape):
            return pl.BlockSpec(shape, lambda r: (0, 0), **wkw)

        return pl.pallas_call(
            kernel,
            out_shape=jax.ShapeDtypeStruct((rows, Dx), x.dtype),
            grid=grid,
            in_specs=[
                row_spec,                        # x  (rows, D)
                const((1, Dx)),                  # attn_norm weight (f32)
                const((Dx, 3 * E)),              # fused [Wi|Wf|Wg] (bf16)
                const((1, E)),                   # g_norm weight (f32)
                const((E, Dx)),                  # Wo (bf16)
                const((1, Dx)),                  # mlp_norm weight (f32)
                const((Dx, 2 * I_SIZE)),         # W_gate (bf16)
                const((I_SIZE, Dx)),             # W_down (bf16)
            ],
            out_specs=row_spec,
            compiler_params=pltpu.CompilerParams(
                dimension_semantics=("parallel",),
                # re-derive per generation; leaves headroom under v7x's 64 MiB
                vmem_limit_bytes=48 * 1024 * 1024),
        )(x2, w_an, w_ifg, w_gn, wo, w_mn, wgate, wdown)

    try:
        out2 = call(True)
    except Exception:
        # TODO(synk): this jax version rejected pl.Buffered(1); fall back to the
        # default double-buffered weight pipeline (identical results, more VMEM).
        out2 = call(False)
    return out2.reshape(Bx, Tx, Dx)


def ref_block(x, params):
    """Pure-JAX reference of the same forward (mirrors the kernel's bf16 MXU inputs)."""
    (w_an, w_ifg, w_gn, wo, w_mn, wgate, wdown) = params
    bf = jnp.bfloat16
    rms = lambda v, w: v * lax.rsqrt(jnp.mean(v * v, -1, keepdims=True) + EPS) * w
    xn = rms(x, w_an)
    ifg = jnp.dot(xn.astype(bf), w_ifg, preferred_element_type=jnp.float32)
    i, f, g = ifg[..., :E], ifg[..., E:2 * E], ifg[..., 2 * E:]
    a = jax.nn.sigmoid(f)
    b = i * jax.nn.sigmoid(i) * (1.0 - a)

    def step(h, ab):
        aa, bb = ab
        h = aa * h + bb
        return h, h

    _, o = lax.scan(step, jnp.zeros((x.shape[0], E), jnp.float32),
                    (jnp.swapaxes(a, 0, 1), jnp.swapaxes(b, 0, 1)))
    o = jnp.swapaxes(o, 0, 1)
    on = rms(o, w_gn) * (g * jax.nn.sigmoid(g))
    h1 = x + jnp.dot(on.astype(bf), wo, preferred_element_type=jnp.float32)
    h1n = rms(h1, w_mn)
    gu = jnp.dot(h1n.astype(bf), wgate, preferred_element_type=jnp.float32)
    gate, u = gu[..., :I_SIZE], gu[..., I_SIZE:]
    z = gate * jax.nn.sigmoid(gate) * u
    return h1 + jnp.dot(z.astype(bf), wdown, preferred_element_type=jnp.float32)


if __name__ == "__main__":
    key = jax.random.PRNGKey(0)
    k = jax.random.split(key, 7)
    scale = 0.02
    wi = jax.random.normal(k[0], (D, E), jnp.float32) * scale
    wf = jax.random.normal(k[1], (D, E), jnp.float32) * scale
    wg = jax.random.normal(k[2], (D, E), jnp.float32) * scale
    params = (
        jnp.ones((1, D), jnp.float32),                                   # attn_norm w
        jnp.concatenate([wi, wf, wg], axis=1).astype(jnp.bfloat16),      # [Wi|Wf|Wg]
        jnp.ones((1, E), jnp.float32),                                   # g_norm w
        (jax.random.normal(k[3], (E, D), jnp.float32) * scale
         ).astype(jnp.bfloat16),                                         # Wo
        jnp.ones((1, D), jnp.float32),                                   # mlp_norm w
        (jax.random.normal(k[4], (D, 2 * I_SIZE), jnp.float32) * scale
         ).astype(jnp.bfloat16),                                         # W_gate
        (jax.random.normal(k[5], (I_SIZE, D), jnp.float32) * scale
         ).astype(jnp.bfloat16),                                         # W_down
    )
    x = jax.random.normal(k[6], (B, T, D), jnp.float32)

    out = jax.block_until_ready(hgrn_asr_block(x, params))
    ref = jax.block_until_ready(ref_block(x, params))
    assert out.shape == (B, T, D)
    assert jnp.allclose(out, ref, rtol=5e-3, atol=5e-3)
    print("KERNEL_OK")
</pallas_src>

<mosaic_0001>
module attributes {stable_mosaic.version = 11 : i64} {
  func.func @hgrn_asr_block_kernel(%arg0: i32, %arg1: memref<16x128xf32, #tpu.memory_space<vmem>>, %arg2: memref<1x128xf32, #tpu.memory_space<vmem>>, %arg3: memref<128x384xbf16, #tpu.memory_space<vmem>>, %arg4: memref<1x128xf32, #tpu.memory_space<vmem>>, %arg5: memref<128x128xbf16, #tpu.memory_space<vmem>>, %arg6: memref<1x128xf32, #tpu.memory_space<vmem>>, %arg7: memref<128x1024xbf16, #tpu.memory_space<vmem>>, %arg8: memref<512x128xbf16, #tpu.memory_space<vmem>>, %arg9: memref<16x128xf32, #tpu.memory_space<vmem>>) attributes {dimension_semantics = [#tpu.dimension_semantics<parallel>], iteration_bounds = array<i64: 2>, scalar_prefetch = 0 : i64, scratch_operands = 0 : i64, tpu.core_type = #tpu.core_type<tc>, window_params = [{transform_indices = @transform_0, window_bounds = array<i64: 16, 128>}, {pipeline_mode = #tpu.pipeline_mode<synchronous>, transform_indices = @transform_1, window_bounds = array<i64: 1, 128>}, {pipeline_mode = #tpu.pipeline_mode<synchronous>, transform_indices = @transform_2, window_bounds = array<i64: 128, 384>}, {pipeline_mode = #tpu.pipeline_mode<synchronous>, transform_indices = @transform_3, window_bounds = array<i64: 1, 128>}, {pipeline_mode = #tpu.pipeline_mode<synchronous>, transform_indices = @transform_4, window_bounds = array<i64: 128, 128>}, {pipeline_mode = #tpu.pipeline_mode<synchronous>, transform_indices = @transform_5, window_bounds = array<i64: 1, 128>}, {pipeline_mode = #tpu.pipeline_mode<synchronous>, transform_indices = @transform_6, window_bounds = array<i64: 128, 1024>}, {pipeline_mode = #tpu.pipeline_mode<synchronous>, transform_indices = @transform_7, window_bounds = array<i64: 512, 128>}, {transform_indices = @transform_8, window_bounds = array<i64: 16, 128>}]} {
    %c0 = arith.constant 0 : index
    %c0_0 = arith.constant 0 : index
    %0 = vector.load %arg1[%c0, %c0_0] : memref<16x128xf32, #tpu.memory_space<vmem>>, vector<16x128xf32>
    %c0_1 = arith.constant 0 : index
    %c0_2 = arith.constant 0 : index
    %1 = vector.load %arg2[%c0_1, %c0_2] : memref<1x128xf32, #tpu.memory_space<vmem>>, vector<1x128xf32>
    %2 = arith.mulf %0, %0 : vector<16x128xf32>
    %cst = arith.constant dense<0.000000e+00> : vector<16xf32>
    %3 = vector.multi_reduction <add>, %2, %cst [1] : vector<16x128xf32> to vector<16xf32>
    %4 = vector.shape_cast %3 : vector<16xf32> to vector<16x1xf32>
    %cst_3 = arith.constant 1.280000e+02 : f32
    %5 = vector.broadcast %cst_3 : f32 to vector<16x1xf32>
    %6 = arith.divf %4, %5 : vector<16x1xf32>
    %cst_4 = arith.constant 9.99999997E-7 : f32
    %7 = vector.broadcast %cst_4 : f32 to vector<16x1xf32>
    %8 = arith.addf %6, %7 : vector<16x1xf32>
    %9 = math.rsqrt %8 : vector<16x1xf32>
    %10 = vector.broadcast %9 : vector<16x1xf32> to vector<16x128xf32>
    %11 = arith.mulf %0, %10 : vector<16x128xf32>
    %12 = vector.broadcast %1 : vector<1x128xf32> to vector<16x128xf32>
    %13 = arith.mulf %11, %12 : vector<16x128xf32>
    %14 = arith.truncf %13 : vector<16x128xf32> to vector<16x128xbf16>
    %c0_5 = arith.constant 0 : index
    %c0_6 = arith.constant 0 : index
    %15 = vector.load %arg3[%c0_5, %c0_6] : memref<128x384xbf16, #tpu.memory_space<vmem>>, vector<128x384xbf16>
    %cst_7 = arith.constant dense<0.000000e+00> : vector<16x384xf32>
    %16 = tpu.matmul %14, %15, %cst_7 {dimension_numbers = #tpu.dot_dimension_numbers<[1], [0], [0], [1], [0, 0, 1, 1], [], []>} : vector<16x128xbf16>, vector<128x384xbf16>, vector<16x384xf32> -> vector<16x384xf32>
    %17 = vector.extract_strided_slice %16 {offsets = [0, 0], sizes = [16, 128], strides = [1, 1]} : vector<16x384xf32> to vector<16x128xf32>
    %18 = vector.extract_strided_slice %16 {offsets = [0, 128], sizes = [16, 128], strides = [1, 1]} : vector<16x384xf32> to vector<16x128xf32>
    %19 = vector.extract_strided_slice %16 {offsets = [0, 256], sizes = [16, 128], strides = [1, 1]} : vector<16x384xf32> to vector<16x128xf32>
    %20 = arith.negf %18 : vector<16x128xf32>
    %21 = math.exp %20 : vector<16x128xf32>
    %cst_8 = arith.constant 1.000000e+00 : f32
    %22 = vector.broadcast %cst_8 : f32 to vector<16x128xf32>
    %23 = arith.addf %22, %21 : vector<16x128xf32>
    %24 = arith.divf %22, %23 : vector<16x128xf32>
    %25 = arith.negf %17 : vector<16x128xf32>
    %26 = math.exp %25 : vector<16x128xf32>
    %cst_9 = arith.constant 1.000000e+00 : f32
    %27 = vector.broadcast %cst_9 : f32 to vector<16x128xf32>
    %28 = arith.addf %27, %26 : vector<16x128xf32>
    %29 = arith.divf %27, %28 : vector<16x128xf32>
    %30 = arith.mulf %17, %29 : vector<16x128xf32>
    %cst_10 = arith.constant 1.000000e+00 : f32
    %31 = vector.broadcast %cst_10 : f32 to vector<16x128xf32>
    %32 = arith.subf %31, %24 : vector<16x128xf32>
    %33 = arith.mulf %30, %32 : vector<16x128xf32>
    %34 = tpu.iota {dimensions = array<i32: 0>} : vector<16x1xi32>
    %c16_i32 = arith.constant 16 : i32
    %c0_i32 = arith.constant 0 : i32
    %35 = arith.cmpi eq, %c16_i32, %c0_i32 : i32
    %c1_i32 = arith.constant 1 : i32
    %36 = arith.select %35, %c1_i32, %c16_i32 : i32
    %37 = vector.broadcast %36 : i32 to vector<16x1xi32>
    %38 = arith.remsi %34, %37 : vector<16x1xi32>
    %c0_i32_11 = arith.constant 0 : i32
    %39 = vector.broadcast %c0_i32_11 : i32 to vector<16x1xi32>
    %40 = arith.cmpi ne, %38, %39 : vector<16x1xi32>
    %c0_i32_12 = arith.constant 0 : i32
    %41 = vector.broadcast %c0_i32_12 : i32 to vector<16x1xi32>
    %42 = arith.cmpi slt, %38, %41 : vector<16x1xi32>
    %c0_i32_13 = arith.constant 0 : i32
    %43 = arith.cmpi slt, %36, %c0_i32_13 : i32
    %44 = vector.broadcast %43 : i1 to vector<16x1xi1>
    %45 = vector.broadcast %44 : vector<16x1xi1> to vector<16x1xi1>
    %46 = arith.xori %42, %45 : vector<16x1xi1>
    %47 = arith.andi %46, %40 : vector<16x1xi1>
    %48 = vector.broadcast %36 : i32 to vector<16x1xi32>
    %49 = arith.addi %38, %48 : vector<16x1xi32>
    %50 = arith.select %47, %49, %38 : vector<16x1xi1>, vector<16x1xi32>
    %c1_i32_14 = arith.constant 1 : i32
    %51 = tpu.dynamic_rotate %24 by %c1_i32_14 dim 0 : vector<16x128xf32>, i32 -> vector<16x128xf32>
    %c1_i32_15 = arith.constant 1 : i32
    %52 = tpu.dynamic_rotate %33 by %c1_i32_15 dim 0 : vector<16x128xf32>, i32 -> vector<16x128xf32>
    %c1_i32_16 = arith.constant 1 : i32
    %53 = vector.broadcast %c1_i32_16 : i32 to vector<16x1xi32>
    %54 = arith.cmpi sge, %50, %53 : vector<16x1xi32>
    %55 = arith.mulf %24, %52 : vector<16x128xf32>
    %56 = arith.addf %55, %33 : vector<16x128xf32>
    %57 = vector.shape_cast %54 : vector<16x1xi1> to vector<16x1xi1>
    %58 = vector.broadcast %57 : vector<16x1xi1> to vector<16x128xi1>
    %59 = arith.select %58, %56, %33 : vector<16x128xi1>, vector<16x128xf32>
    %60 = arith.mulf %24, %51 : vector<16x128xf32>
    %61 = vector.shape_cast %54 : vector<16x1xi1> to vector<16x1xi1>
    %62 = vector.broadcast %61 : vector<16x1xi1> to vector<16x128xi1>
    %63 = arith.select %62, %60, %24 : vector<16x128xi1>, vector<16x128xf32>
    %c2_i32 = arith.constant 2 : i32
    %64 = tpu.dynamic_rotate %63 by %c2_i32 dim 0 : vector<16x128xf32>, i32 -> vector<16x128xf32>
    %c2_i32_17 = arith.constant 2 : i32
    %65 = tpu.dynamic_rotate %59 by %c2_i32_17 dim 0 : vector<16x128xf32>, i32 -> vector<16x128xf32>
    %c2_i32_18 = arith.constant 2 : i32
    %66 = vector.broadcast %c2_i32_18 : i32 to vector<16x1xi32>
    %67 = arith.cmpi sge, %50, %66 : vector<16x1xi32>
    %68 = arith.mulf %63, %65 : vector<16x128xf32>
    %69 = arith.addf %68, %59 : vector<16x128xf32>
    %70 = vector.shape_cast %67 : vector<16x1xi1> to vector<16x1xi1>
    %71 = vector.broadcast %70 : vector<16x1xi1> to vector<16x128xi1>
    %72 = arith.select %71, %69, %59 : vector<16x128xi1>, vector<16x128xf32>
    %73 = arith.mulf %63, %64 : vector<16x128xf32>
    %74 = vector.shape_cast %67 : vector<16x1xi1> to vector<16x1xi1>
    %75 = vector.broadcast %74 : vector<16x1xi1> to vector<16x128xi1>
    %76 = arith.select %75, %73, %63 : vector<16x128xi1>, vector<16x128xf32>
    %c4_i32 = arith.constant 4 : i32
    %77 = tpu.dynamic_rotate %76 by %c4_i32 dim 0 : vector<16x128xf32>, i32 -> vector<16x128xf32>
    %c4_i32_19 = arith.constant 4 : i32
    %78 = tpu.dynamic_rotate %72 by %c4_i32_19 dim 0 : vector<16x128xf32>, i32 -> vector<16x128xf32>
    %c4_i32_20 = arith.constant 4 : i32
    %79 = vector.broadcast %c4_i32_20 : i32 to vector<16x1xi32>
    %80 = arith.cmpi sge, %50, %79 : vector<16x1xi32>
    %81 = arith.mulf %76, %78 : vector<16x128xf32>
    %82 = arith.addf %81, %72 : vector<16x128xf32>
    %83 = vector.shape_cast %80 : vector<16x1xi1> to vector<16x1xi1>
    %84 = vector.broadcast %83 : vector<16x1xi1> to vector<16x128xi1>
    %85 = arith.select %84, %82, %72 : vector<16x128xi1>, vector<16x128xf32>
    %86 = arith.mulf %76, %77 : vector<16x128xf32>
    %87 = vector.shape_cast %80 : vector<16x1xi1> to vector<16x1xi1>
    %88 = vector.broadcast %87 : vector<16x1xi1> to vector<16x128xi1>
    %89 = arith.select %88, %86, %76 : vector<16x128xi1>, vector<16x128xf32>
    %c8_i32 = arith.constant 8 : i32
    %90 = tpu.dynamic_rotate %85 by %c8_i32 dim 0 : vector<16x128xf32>, i32 -> vector<16x128xf32>
    %c8_i32_21 = arith.constant 8 : i32
    %91 = vector.broadcast %c8_i32_21 : i32 to vector<16x1xi32>
    %92 = arith.cmpi sge, %50, %91 : vector<16x1xi32>
    %93 = arith.mulf %89, %90 : vector<16x128xf32>
    %94 = arith.addf %93, %85 : vector<16x128xf32>
    %95 = vector.shape_cast %92 : vector<16x1xi1> to vector<16x1xi1>
    %96 = vector.broadcast %95 : vector<16x1xi1> to vector<16x128xi1>
    %97 = arith.select %96, %94, %85 : vector<16x128xi1>, vector<16x128xf32>
    %c0_22 = arith.constant 0 : index
    %c0_23 = arith.constant 0 : index
    %98 = vector.load %arg4[%c0_22, %c0_23] : memref<1x128xf32, #tpu.memory_space<vmem>>, vector<1x128xf32>
    %99 = arith.mulf %97, %97 : vector<16x128xf32>
    %cst_24 = arith.constant dense<0.000000e+00> : vector<16xf32>
    %100 = vector.multi_reduction <add>, %99, %cst_24 [1] : vector<16x128xf32> to vector<16xf32>
    %101 = vector.shape_cast %100 : vector<16xf32> to vector<16x1xf32>
    %cst_25 = arith.constant 1.280000e+02 : f32
    %102 = vector.broadcast %cst_25 : f32 to vector<16x1xf32>
    %103 = arith.divf %101, %102 : vector<16x1xf32>
    %cst_26 = arith.constant 9.99999997E-7 : f32
    %104 = vector.broadcast %cst_26 : f32 to vector<16x1xf32>
    %105 = arith.addf %103, %104 : vector<16x1xf32>
    %106 = math.rsqrt %105 : vector<16x1xf32>
    %107 = vector.broadcast %106 : vector<16x1xf32> to vector<16x128xf32>
    %108 = arith.mulf %97, %107 : vector<16x128xf32>
    %109 = vector.broadcast %98 : vector<1x128xf32> to vector<16x128xf32>
    %110 = arith.mulf %108, %109 : vector<16x128xf32>
    %111 = arith.negf %19 : vector<16x128xf32>
    %112 = math.exp %111 : vector<16x128xf32>
    %cst_27 = arith.constant 1.000000e+00 : f32
    %113 = vector.broadcast %cst_27 : f32 to vector<16x128xf32>
    %114 = arith.addf %113, %112 : vector<16x128xf32>
    %115 = arith.divf %113, %114 : vector<16x128xf32>
    %116 = arith.mulf %19, %115 : vector<16x128xf32>
    %117 = arith.mulf %110, %116 : vector<16x128xf32>
    %118 = arith.truncf %117 : vector<16x128xf32> to vector<16x128xbf16>
    %c0_28 = arith.constant 0 : index
    %c0_29 = arith.constant 0 : index
    %119 = vector.load %arg5[%c0_28, %c0_29] : memref<128x128xbf16, #tpu.memory_space<vmem>>, vector<128x128xbf16>
    %cst_30 = arith.constant dense<0.000000e+00> : vector<16x128xf32>
    %120 = tpu.matmul %118, %119, %cst_30 {dimension_numbers = #tpu.dot_dimension_numbers<[1], [0], [0], [1], [0, 0, 1, 1], [], []>} : vector<16x128xbf16>, vector<128x128xbf16>, vector<16x128xf32> -> vector<16x128xf32>
    %121 = arith.addf %0, %120 : vector<16x128xf32>
    %c0_31 = arith.constant 0 : index
    %c0_32 = arith.constant 0 : index
    %122 = vector.load %arg6[%c0_31, %c0_32] : memref<1x128xf32, #tpu.memory_space<vmem>>, vector<1x128xf32>
    %123 = arith.mulf %121, %121 : vector<16x128xf32>
    %cst_33 = arith.constant dense<0.000000e+00> : vector<16xf32>
    %124 = vector.multi_reduction <add>, %123, %cst_33 [1] : vector<16x128xf32> to vector<16xf32>
    %125 = vector.shape_cast %124 : vector<16xf32> to vector<16x1xf32>
    %cst_34 = arith.constant 1.280000e+02 : f32
    %126 = vector.broadcast %cst_34 : f32 to vector<16x1xf32>
    %127 = arith.divf %125, %126 : vector<16x1xf32>
    %cst_35 = arith.constant 9.99999997E-7 : f32
    %128 = vector.broadcast %cst_35 : f32 to vector<16x1xf32>
    %129 = arith.addf %127, %128 : vector<16x1xf32>
    %130 = math.rsqrt %129 : vector<16x1xf32>
    %131 = vector.broadcast %130 : vector<16x1xf32> to vector<16x128xf32>
    %132 = arith.mulf %121, %131 : vector<16x128xf32>
    %133 = vector.broadcast %122 : vector<1x128xf32> to vector<16x128xf32>
    %134 = arith.mulf %132, %133 : vector<16x128xf32>
    %135 = arith.truncf %134 : vector<16x128xf32> to vector<16x128xbf16>
    %c0_36 = arith.constant 0 : index
    %c0_37 = arith.constant 0 : index
    %136 = vector.load %arg7[%c0_36, %c0_37] : memref<128x1024xbf16, #tpu.memory_space<vmem>>, vector<128x1024xbf16>
    %cst_38 = arith.constant dense<0.000000e+00> : vector<16x1024xf32>
    %137 = tpu.matmul %135, %136, %cst_38 {dimension_numbers = #tpu.dot_dimension_numbers<[1], [0], [0], [1], [0, 0, 1, 1], [], []>} : vector<16x128xbf16>, vector<128x1024xbf16>, vector<16x1024xf32> -> vector<16x1024xf32>
    %138 = vector.extract_strided_slice %137 {offsets = [0, 0], sizes = [16, 512], strides = [1, 1]} : vector<16x1024xf32> to vector<16x512xf32>
    %139 = vector.extract_strided_slice %137 {offsets = [0, 512], sizes = [16, 512], strides = [1, 1]} : vector<16x1024xf32> to vector<16x512xf32>
    %140 = arith.negf %138 : vector<16x512xf32>
    %141 = math.exp %140 : vector<16x512xf32>
    %cst_39 = arith.constant 1.000000e+00 : f32
    %142 = vector.broadcast %cst_39 : f32 to vector<16x512xf32>
    %143 = arith.addf %142, %141 : vector<16x512xf32>
    %144 = arith.divf %142, %143 : vector<16x512xf32>
    %145 = arith.mulf %138, %144 : vector<16x512xf32>
    %146 = arith.mulf %145, %139 : vector<16x512xf32>
    %147 = arith.truncf %146 : vector<16x512xf32> to vector<16x512xbf16>
    %c0_40 = arith.constant 0 : index
    %c0_41 = arith.constant 0 : index
    %148 = vector.load %arg8[%c0_40, %c0_41] : memref<512x128xbf16, #tpu.memory_space<vmem>>, vector<512x128xbf16>
    %cst_42 = arith.constant dense<0.000000e+00> : vector<16x128xf32>
    %149 = tpu.matmul %147, %148, %cst_42 {dimension_numbers = #tpu.dot_dimension_numbers<[1], [0], [0], [1], [0, 0, 1, 1], [], []>} : vector<16x512xbf16>, vector<512x128xbf16>, vector<16x128xf32> -> vector<16x128xf32>
    %150 = arith.addf %121, %149 : vector<16x128xf32>
    %c0_43 = arith.constant 0 : index
    %c0_44 = arith.constant 0 : index
    %151 = vector.load %arg9[%c0_43, %c0_44] : memref<16x128xf32, #tpu.memory_space<vmem>>, vector<16x128xf32>
    tpu.vector_store %arg9[%c0_43, %c0_44], %150 {strides = array<i32>} : memref<16x128xf32, #tpu.memory_space<vmem>>, vector<16x128xf32>,
    return
  }
  func.func @transform_0(%arg0: i32) -> (i32, i32) {
    %c0_i32 = arith.constant 0 : i32
    %c0_i32_0 = arith.constant 0 : i32
    return %arg0, %c0_i32 : i32, i32
  }
  func.func @transform_1(%arg0: i32) -> (i32, i32) {
    %c0_i32 = arith.constant 0 : i32
    %c0_i32_0 = arith.constant 0 : i32
    %c0_i32_1 = arith.constant 0 : i32
    return %c0_i32, %c0_i32_0 : i32, i32
  }
  func.func @transform_2(%arg0: i32) -> (i32, i32) {
    %c0_i32 = arith.constant 0 : i32
    %c0_i32_0 = arith.constant 0 : i32
    %c0_i32_1 = arith.constant 0 : i32
    return %c0_i32, %c0_i32_0 : i32, i32
  }
  func.func @transform_3(%arg0: i32) -> (i32, i32) {
    %c0_i32 = arith.constant 0 : i32
    %c0_i32_0 = arith.constant 0 : i32
    %c0_i32_1 = arith.constant 0 : i32
    return %c0_i32, %c0_i32_0 : i32, i32
  }
  func.func @transform_4(%arg0: i32) -> (i32, i32) {
    %c0_i32 = arith.constant 0 : i32
    %c0_i32_0 = arith.constant 0 : i32
    %c0_i32_1 = arith.constant 0 : i32
    return %c0_i32, %c0_i32_0 : i32, i32
  }
  func.func @transform_5(%arg0: i32) -> (i32, i32) {
    %c0_i32 = arith.constant 0 : i32
    %c0_i32_0 = arith.constant 0 : i32
    %c0_i32_1 = arith.constant 0 : i32
    return %c0_i32, %c0_i32_0 : i32, i32
  }
  func.func @transform_6(%arg0: i32) -> (i32, i32) {
    %c0_i32 = arith.constant 0 : i32
    %c0_i32_0 = arith.constant 0 : i32
    %c0_i32_1 = arith.constant 0 : i32
    return %c0_i32, %c0_i32_0 : i32, i32
  }
  func.func @transform_7(%arg0: i32) -> (i32, i32) {
    %c0_i32 = arith.constant 0 : i32
    %c0_i32_0 = arith.constant 0 : i32
    %c0_i32_1 = arith.constant 0 : i32
    return %c0_i32, %c0_i32_0 : i32, i32
  }
  func.func @transform_8(%arg0: i32) -> (i32, i32) {
    %c0_i32 = arith.constant 0 : i32
    %c0_i32_0 = arith.constant 0 : i32
    return %arg0, %c0_i32 : i32, i32
  }
}

module attributes {stable_mosaic.version = 11 : i64} {
  func.func @hgrn_asr_block_kernel(%arg0: i32, %arg1: memref<16x128xf32, #tpu.memory_space<vmem>>, %arg2: memref<1x128xf32, #tpu.memory_space<vmem>>, %arg3: memref<128x384xbf16, #tpu.memory_space<vmem>>, %arg4: memref<1x128xf32, #tpu.memory_space<vmem>>, %arg5: memref<128x128xbf16, #tpu.memory_space<vmem>>, %arg6: memref<1x128xf32, #tpu.memory_space<vmem>>, %arg7: memref<128x1024xbf16, #tpu.memory_space<vmem>>, %arg8: memref<512x128xbf16, #tpu.memory_space<vmem>>, %arg9: memref<16x128xf32, #tpu.memory_space<vmem>>) attributes {dimension_semantics = [#tpu.dimension_semantics<parallel>], iteration_bounds = array<i64: 2>, scalar_prefetch = 0 : i64, scratch_operands = 0 : i64, tpu.core_type = #tpu.core_type<tc>, window_params = [{transform_indices = @transform_0, window_bounds = array<i64: 16, 128>}, {pipeline_mode = #tpu.pipeline_mode<synchronous>, transform_indices = @transform_1, window_bounds = array<i64: 1, 128>}, {pipeline_mode = #tpu.pipeline_mode<synchronous>, transform_indices = @transform_2, window_bounds = array<i64: 128, 384>}, {pipeline_mode = #tpu.pipeline_mode<synchronous>, transform_indices = @transform_3, window_bounds = array<i64: 1, 128>}, {pipeline_mode = #tpu.pipeline_mode<synchronous>, transform_indices = @transform_4, window_bounds = array<i64: 128, 128>}, {pipeline_mode = #tpu.pipeline_mode<synchronous>, transform_indices = @transform_5, window_bounds = array<i64: 1, 128>}, {pipeline_mode = #tpu.pipeline_mode<synchronous>, transform_indices = @transform_6, window_bounds = array<i64: 128, 1024>}, {pipeline_mode = #tpu.pipeline_mode<synchronous>, transform_indices = @transform_7, window_bounds = array<i64: 512, 128>}, {transform_indices = @transform_8, window_bounds = array<i64: 16, 128>}]} {
    %c0 = arith.constant 0 : index
    %c0_0 = arith.constant 0 : index
    %0 = vector.load %arg1[%c0, %c0_0] : memref<16x128xf32, #tpu.memory_space<vmem>>, vector<16x128xf32>
    %c0_1 = arith.constant 0 : index
    %c0_2 = arith.constant 0 : index
    %1 = vector.load %arg2[%c0_1, %c0_2] : memref<1x128xf32, #tpu.memory_space<vmem>>, vector<1x128xf32>
    %2 = arith.mulf %0, %0 : vector<16x128xf32>
    %cst = arith.constant dense<0.000000e+00> : vector<16xf32>
    %3 = vector.multi_reduction <add>, %2, %cst [1] : vector<16x128xf32> to vector<16xf32>
    %4 = vector.shape_cast %3 : vector<16xf32> to vector<16x1xf32>
    %cst_3 = arith.constant 1.280000e+02 : f32
    %5 = vector.broadcast %cst_3 : f32 to vector<16x1xf32>
    %6 = arith.divf %4, %5 : vector<16x1xf32>
    %cst_4 = arith.constant 9.99999997E-7 : f32
    %7 = vector.broadcast %cst_4 : f32 to vector<16x1xf32>
    %8 = arith.addf %6, %7 : vector<16x1xf32>
    %9 = math.rsqrt %8 : vector<16x1xf32>
    %10 = vector.broadcast %9 : vector<16x1xf32> to vector<16x128xf32>
    %11 = arith.mulf %0, %10 : vector<16x128xf32>
    %12 = vector.broadcast %1 : vector<1x128xf32> to vector<16x128xf32>
    %13 = arith.mulf %11, %12 : vector<16x128xf32>
    %14 = arith.truncf %13 : vector<16x128xf32> to vector<16x128xbf16>
    %c0_5 = arith.constant 0 : index
    %c0_6 = arith.constant 0 : index
    %15 = vector.load %arg3[%c0_5, %c0_6] : memref<128x384xbf16, #tpu.memory_space<vmem>>, vector<128x384xbf16>
    %cst_7 = arith.constant dense<0.000000e+00> : vector<16x384xf32>
    %16 = tpu.matmul %14, %15, %cst_7 {dimension_numbers = #tpu.dot_dimension_numbers<[1], [0], [0], [1], [0, 0, 1, 1], [], []>} : vector<16x128xbf16>, vector<128x384xbf16>, vector<16x384xf32> -> vector<16x384xf32>
    %17 = vector.extract_strided_slice %16 {offsets = [0, 0], sizes = [16, 128], strides = [1, 1]} : vector<16x384xf32> to vector<16x128xf32>
    %18 = vector.extract_strided_slice %16 {offsets = [0, 128], sizes = [16, 128], strides = [1, 1]} : vector<16x384xf32> to vector<16x128xf32>
    %19 = vector.extract_strided_slice %16 {offsets = [0, 256], sizes = [16, 128], strides = [1, 1]} : vector<16x384xf32> to vector<16x128xf32>
    %20 = arith.negf %18 : vector<16x128xf32>
    %21 = math.exp %20 : vector<16x128xf32>
    %cst_8 = arith.constant 1.000000e+00 : f32
    %22 = vector.broadcast %cst_8 : f32 to vector<16x128xf32>
    %23 = arith.addf %22, %21 : vector<16x128xf32>
    %24 = arith.divf %22, %23 : vector<16x128xf32>
    %25 = arith.negf %17 : vector<16x128xf32>
    %26 = math.exp %25 : vector<16x128xf32>
    %cst_9 = arith.constant 1.000000e+00 : f32
    %27 = vector.broadcast %cst_9 : f32 to vector<16x128xf32>
    %28 = arith.addf %27, %26 : vector<16x128xf32>
    %29 = arith.divf %27, %28 : vector<16x128xf32>
    %30 = arith.mulf %17, %29 : vector<16x128xf32>
    %cst_10 = arith.constant 1.000000e+00 : f32
    %31 = vector.broadcast %cst_10 : f32 to vector<16x128xf32>
    %32 = arith.subf %31, %24 : vector<16x128xf32>
    %33 = arith.mulf %30, %32 : vector<16x128xf32>
    %34 = tpu.iota {dimensions = array<i32: 0>} : vector<16x1xi32>
    %c16_i32 = arith.constant 16 : i32
    %c0_i32 = arith.constant 0 : i32
    %35 = arith.cmpi eq, %c16_i32, %c0_i32 : i32
    %c1_i32 = arith.constant 1 : i32
    %36 = arith.select %35, %c1_i32, %c16_i32 : i32
    %37 = vector.broadcast %36 : i32 to vector<16x1xi32>
    %38 = arith.remsi %34, %37 : vector<16x1xi32>
    %c0_i32_11 = arith.constant 0 : i32
    %39 = vector.broadcast %c0_i32_11 : i32 to vector<16x1xi32>
    %40 = arith.cmpi ne, %38, %39 : vector<16x1xi32>
    %c0_i32_12 = arith.constant 0 : i32
    %41 = vector.broadcast %c0_i32_12 : i32 to vector<16x1xi32>
    %42 = arith.cmpi slt, %38, %41 : vector<16x1xi32>
    %c0_i32_13 = arith.constant 0 : i32
    %43 = arith.cmpi slt, %36, %c0_i32_13 : i32
    %44 = vector.broadcast %43 : i1 to vector<16x1xi1>
    %45 = vector.broadcast %44 : vector<16x1xi1> to vector<16x1xi1>
    %46 = arith.xori %42, %45 : vector<16x1xi1>
    %47 = arith.andi %46, %40 : vector<16x1xi1>
    %48 = vector.broadcast %36 : i32 to vector<16x1xi32>
    %49 = arith.addi %38, %48 : vector<16x1xi32>
    %50 = arith.select %47, %49, %38 : vector<16x1xi1>, vector<16x1xi32>
    %c1_i32_14 = arith.constant 1 : i32
    %51 = tpu.dynamic_rotate %24 by %c1_i32_14 dim 0 : vector<16x128xf32>, i32 -> vector<16x128xf32>
    %c1_i32_15 = arith.constant 1 : i32
    %52 = tpu.dynamic_rotate %33 by %c1_i32_15 dim 0 : vector<16x128xf32>, i32 -> vector<16x128xf32>
    %c1_i32_16 = arith.constant 1 : i32
    %53 = vector.broadcast %c1_i32_16 : i32 to vector<16x1xi32>
    %54 = arith.cmpi sge, %50, %53 : vector<16x1xi32>
    %55 = arith.mulf %24, %52 : vector<16x128xf32>
    %56 = arith.addf %55, %33 : vector<16x128xf32>
    %57 = vector.shape_cast %54 : vector<16x1xi1> to vector<16x1xi1>
    %58 = vector.broadcast %57 : vector<16x1xi1> to vector<16x128xi1>
    %59 = arith.select %58, %56, %33 : vector<16x128xi1>, vector<16x128xf32>
    %60 = arith.mulf %24, %51 : vector<16x128xf32>
    %61 = vector.shape_cast %54 : vector<16x1xi1> to vector<16x1xi1>
    %62 = vector.broadcast %61 : vector<16x1xi1> to vector<16x128xi1>
    %63 = arith.select %62, %60, %24 : vector<16x128xi1>, vector<16x128xf32>
    %c2_i32 = arith.constant 2 : i32
    %64 = tpu.dynamic_rotate %63 by %c2_i32 dim 0 : vector<16x128xf32>, i32 -> vector<16x128xf32>
    %c2_i32_17 = arith.constant 2 : i32
    %65 = tpu.dynamic_rotate %59 by %c2_i32_17 dim 0 : vector<16x128xf32>, i32 -> vector<16x128xf32>
    %c2_i32_18 = arith.constant 2 : i32
    %66 = vector.broadcast %c2_i32_18 : i32 to vector<16x1xi32>
    %67 = arith.cmpi sge, %50, %66 : vector<16x1xi32>
    %68 = arith.mulf %63, %65 : vector<16x128xf32>
    %69 = arith.addf %68, %59 : vector<16x128xf32>
    %70 = vector.shape_cast %67 : vector<16x1xi1> to vector<16x1xi1>
    %71 = vector.broadcast %70 : vector<16x1xi1> to vector<16x128xi1>
    %72 = arith.select %71, %69, %59 : vector<16x128xi1>, vector<16x128xf32>
    %73 = arith.mulf %63, %64 : vector<16x128xf32>
    %74 = vector.shape_cast %67 : vector<16x1xi1> to vector<16x1xi1>
    %75 = vector.broadcast %74 : vector<16x1xi1> to vector<16x128xi1>
    %76 = arith.select %75, %73, %63 : vector<16x128xi1>, vector<16x128xf32>
    %c4_i32 = arith.constant 4 : i32
    %77 = tpu.dynamic_rotate %76 by %c4_i32 dim 0 : vector<16x128xf32>, i32 -> vector<16x128xf32>
    %c4_i32_19 = arith.constant 4 : i32
    %78 = tpu.dynamic_rotate %72 by %c4_i32_19 dim 0 : vector<16x128xf32>, i32 -> vector<16x128xf32>
    %c4_i32_20 = arith.constant 4 : i32
    %79 = vector.broadcast %c4_i32_20 : i32 to vector<16x1xi32>
    %80 = arith.cmpi sge, %50, %79 : vector<16x1xi32>
    %81 = arith.mulf %76, %78 : vector<16x128xf32>
    %82 = arith.addf %81, %72 : vector<16x128xf32>
    %83 = vector.shape_cast %80 : vector<16x1xi1> to vector<16x1xi1>
    %84 = vector.broadcast %83 : vector<16x1xi1> to vector<16x128xi1>
    %85 = arith.select %84, %82, %72 : vector<16x128xi1>, vector<16x128xf32>
    %86 = arith.mulf %76, %77 : vector<16x128xf32>
    %87 = vector.shape_cast %80 : vector<16x1xi1> to vector<16x1xi1>
    %88 = vector.broadcast %87 : vector<16x1xi1> to vector<16x128xi1>
    %89 = arith.select %88, %86, %76 : vector<16x128xi1>, vector<16x128xf32>
    %c8_i32 = arith.constant 8 : i32
    %90 = tpu.dynamic_rotate %85 by %c8_i32 dim 0 : vector<16x128xf32>, i32 -> vector<16x128xf32>
    %c8_i32_21 = arith.constant 8 : i32
    %91 = vector.broadcast %c8_i32_21 : i32 to vector<16x1xi32>
    %92 = arith.cmpi sge, %50, %91 : vector<16x1xi32>
    %93 = arith.mulf %89, %90 : vector<16x128xf32>
    %94 = arith.addf %93, %85 : vector<16x128xf32>
    %95 = vector.shape_cast %92 : vector<16x1xi1> to vector<16x1xi1>
    %96 = vector.broadcast %95 : vector<16x1xi1> to vector<16x128xi1>
    %97 = arith.select %96, %94, %85 : vector<16x128xi1>, vector<16x128xf32>
    %c0_22 = arith.constant 0 : index
    %c0_23 = arith.constant 0 : index
    %98 = vector.load %arg4[%c0_22, %c0_23] : memref<1x128xf32, #tpu.memory_space<vmem>>, vector<1x128xf32>
    %99 = arith.mulf %97, %97 : vector<16x128xf32>
    %cst_24 = arith.constant dense<0.000000e+00> : vector<16xf32>
    %100 = vector.multi_reduction <add>, %99, %cst_24 [1] : vector<16x128xf32> to vector<16xf32>
    %101 = vector.shape_cast %100 : vector<16xf32> to vector<16x1xf32>
    %cst_25 = arith.constant 1.280000e+02 : f32
    %102 = vector.broadcast %cst_25 : f32 to vector<16x1xf32>
    %103 = arith.divf %101, %102 : vector<16x1xf32>
    %cst_26 = arith.constant 9.99999997E-7 : f32
    %104 = vector.broadcast %cst_26 : f32 to vector<16x1xf32>
    %105 = arith.addf %103, %104 : vector<16x1xf32>
    %106 = math.rsqrt %105 : vector<16x1xf32>
    %107 = vector.broadcast %106 : vector<16x1xf32> to vector<16x128xf32>
    %108 = arith.mulf %97, %107 : vector<16x128xf32>
    %109 = vector.broadcast %98 : vector<1x128xf32> to vector<16x128xf32>
    %110 = arith.mulf %108, %109 : vector<16x128xf32>
    %111 = arith.negf %19 : vector<16x128xf32>
    %112 = math.exp %111 : vector<16x128xf32>
    %cst_27 = arith.constant 1.000000e+00 : f32
    %113 = vector.broadcast %cst_27 : f32 to vector<16x128xf32>
    %114 = arith.addf %113, %112 : vector<16x128xf32>
    %115 = arith.divf %113, %114 : vector<16x128xf32>
    %116 = arith.mulf %19, %115 : vector<16x128xf32>
    %117 = arith.mulf %110, %116 : vector<16x128xf32>
    %118 = arith.truncf %117 : vector<16x128xf32> to vector<16x128xbf16>
    %c0_28 = arith.constant 0 : index
    %c0_29 = arith.constant 0 : index
    %119 = vector.load %arg5[%c0_28, %c0_29] : memref<128x128xbf16, #tpu.memory_space<vmem>>, vector<128x128xbf16>
    %cst_30 = arith.constant dense<0.000000e+00> : vector<16x128xf32>
    %120 = tpu.matmul %118, %119, %cst_30 {dimension_numbers = #tpu.dot_dimension_numbers<[1], [0], [0], [1], [0, 0, 1, 1], [], []>} : vector<16x128xbf16>, vector<128x128xbf16>, vector<16x128xf32> -> vector<16x128xf32>
    %121 = arith.addf %0, %120 : vector<16x128xf32>
    %c0_31 = arith.constant 0 : index
    %c0_32 = arith.constant 0 : index
    %122 = vector.load %arg6[%c0_31, %c0_32] : memref<1x128xf32, #tpu.memory_space<vmem>>, vector<1x128xf32>
    %123 = arith.mulf %121, %121 : vector<16x128xf32>
    %cst_33 = arith.constant dense<0.000000e+00> : vector<16xf32>
    %124 = vector.multi_reduction <add>, %123, %cst_33 [1] : vector<16x128xf32> to vector<16xf32>
    %125 = vector.shape_cast %124 : vector<16xf32> to vector<16x1xf32>
    %cst_34 = arith.constant 1.280000e+02 : f32
    %126 = vector.broadcast %cst_34 : f32 to vector<16x1xf32>
    %127 = arith.divf %125, %126 : vector<16x1xf32>
    %cst_35 = arith.constant 9.99999997E-7 : f32
    %128 = vector.broadcast %cst_35 : f32 to vector<16x1xf32>
    %129 = arith.addf %127, %128 : vector<16x1xf32>
    %130 = math.rsqrt %129 : vector<16x1xf32>
    %131 = vector.broadcast %130 : vector<16x1xf32> to vector<16x128xf32>
    %132 = arith.mulf %121, %131 : vector<16x128xf32>
    %133 = vector.broadcast %122 : vector<1x128xf32> to vector<16x128xf32>
    %134 = arith.mulf %132, %133 : vector<16x128xf32>
    %135 = arith.truncf %134 : vector<16x128xf32> to vector<16x128xbf16>
    %c0_36 = arith.constant 0 : index
    %c0_37 = arith.constant 0 : index
    %136 = vector.load %arg7[%c0_36, %c0_37] : memref<128x1024xbf16, #tpu.memory_space<vmem>>, vector<128x1024xbf16>
    %cst_38 = arith.constant dense<0.000000e+00> : vector<16x1024xf32>
    %137 = tpu.matmul %135, %136, %cst_38 {dimension_numbers = #tpu.dot_dimension_numbers<[1], [0], [0], [1], [0, 0, 1, 1], [], []>} : vector<16x128xbf16>, vector<128x1024xbf16>, vector<16x1024xf32> -> vector<16x1024xf32>
    %138 = vector.extract_strided_slice %137 {offsets = [0, 0], sizes = [16, 512], strides = [1, 1]} : vector<16x1024xf32> to vector<16x512xf32>
    %139 = vector.extract_strided_slice %137 {offsets = [0, 512], sizes = [16, 512], strides = [1, 1]} : vector<16x1024xf32> to vector<16x512xf32>
    %140 = arith.negf %138 : vector<16x512xf32>
    %141 = math.exp %140 : vector<16x512xf32>
    %cst_39 = arith.constant 1.000000e+00 : f32
    %142 = vector.broadcast %cst_39 : f32 to vector<16x512xf32>
    %143 = arith.addf %142, %141 : vector<16x512xf32>
    %144 = arith.divf %142, %143 : vector<16x512xf32>
    %145 = arith.mulf %138, %144 : vector<16x512xf32>
    %146 = arith.mulf %145, %139 : vector<16x512xf32>
    %147 = arith.truncf %146 : vector<16x512xf32> to vector<16x512xbf16>
    %c0_40 = arith.constant 0 : index
    %c0_41 = arith.constant 0 : index
    %148 = vector.load %arg8[%c0_40, %c0_41] : memref<512x128xbf16, #tpu.memory_space<vmem>>, vector<512x128xbf16>
    %cst_42 = arith.constant dense<0.000000e+00> : vector<16x128xf32>
    %149 = tpu.matmul %147, %148, %cst_42 {dimension_numbers = #tpu.dot_dimension_numbers<[1], [0], [0], [1], [0, 0, 1, 1], [], []>} : vector<16x512xbf16>, vector<512x128xbf16>, vector<16x128xf32> -> vector<16x128xf32>
    %150 = arith.addf %121, %149 : vector<16x128xf32>
    %c0_43 = arith.constant 0 : index
    %c0_44 = arith.constant 0 : index
    %151 = vector.load %arg9[%c0_43, %c0_44] : memref<16x128xf32, #tpu.memory_space<vmem>>, vector<16x128xf32>
    tpu.vector_store %arg9[%c0_43, %c0_44], %150 {strides = array<i32>} : memref<16x128xf32, #tpu.memory_space<vmem>>, vector<16x128xf32>,
    return
  }
  func.func @transform_0(%arg0: i32) -> (i32, i32) {
    %c0_i32 = arith.constant 0 : i32
    %c0_i32_0 = arith.constant 0 : i32
    return %arg0, %c0_i32 : i32, i32
  }
  func.func @transform_1(%arg0: i32) -> (i32, i32) {
    %c0_i32 = arith.constant 0 : i32
    %c0_i32_0 = arith.constant 0 : i32
    %c0_i32_1 = arith.constant 0 : i32
    return %c0_i32, %c0_i32_0 : i32, i32
  }
  func.func @transform_2(%arg0: i32) -> (i32, i32) {
    %c0_i32 = arith.constant 0 : i32
    %c0_i32_0 = arith.constant 0 : i32
    %c0_i32_1 = arith.constant 0 : i32
    return %c0_i32, %c0_i32_0 : i32, i32
  }
  func.func @transform_3(%arg0: i32) -> (i32, i32) {
    %c0_i32 = arith.constant 0 : i32
    %c0_i32_0 = arith.constant 0 : i32
    %c0_i32_1 = arith.constant 0 : i32
    return %c0_i32, %c0_i32_0 : i32, i32
  }
  func.func @transform_4(%arg0: i32) -> (i32, i32) {
    %c0_i32 = arith.constant 0 : i32
    %c0_i32_0 = arith.constant 0 : i32
    %c0_i32_1 = arith.constant 0 : i32
    return %c0_i32, %c0_i32_0 : i32, i32
  }
  func.func @transform_5(%arg0: i32) -> (i32, i32) {
    %c0_i32 = arith.constant 0 : i32
    %c0_i32_0 = arith.constant 0 : i32
    %c0_i32_1 = arith.constant 0 : i32
    return %c0_i32, %c0_i32_0 : i32, i32
  }
  func.func @transform_6(%arg0: i32) -> (i32, i32) {
    %c0_i32 = arith.constant 0 : i32
    %c0_i32_0 = arith.constant 0 : i32
    %c0_i32_1 = arith.constant 0 : i32
    return %c0_i32, %c0_i32_0 : i32, i32
  }
  func.func @transform_7(%arg0: i32) -> (i32, i32) {
    %c0_i32 = arith.constant 0 : i32
    %c0_i32_0 = arith.constant 0 : i32
    %c0_i32_1 = arith.constant 0 : i32
    return %c0_i32, %c0_i32_0 : i32, i32
  }
  func.func @transform_8(%arg0: i32) -> (i32, i32) {
    %c0_i32 = arith.constant 0 : i32
    %c0_i32_0 = arith.constant 0 : i32
    return %arg0, %c0_i32 : i32, i32
  }
}

</mosaic_0001>

<llo_original>
// kernel: tpu_custom_call.1
$region0: #{tpu_custom_call.1}
  #allocation0 [shape = 'u32[]', space=smem, size = 0x4, offset = 0x4, fixed_abs, tag = 'smem constant byte address 0x4 - core index']
  #allocation1 [shape = 'u32[144,128]{1,0:T(1,128)}', space=vmem, size = 0x12000, scoped, tag = 'internal scratch']
  %s0 = inlined_call_operand.hbm [shape: f32[32,128], index: 0, kind: input, shape index: {}]
  %s1 = inlined_call_operand.vmem [shape: f32[1,128], index: 1, kind: input, shape index: {}]
  %s2 = inlined_call_operand.hbm [shape: bf16[128,384], index: 2, kind: input, shape index: {}]
  %s3 = inlined_call_operand.vmem [shape: f32[1,128], index: 3, kind: input, shape index: {}]
  %s4 = inlined_call_operand.hbm [shape: bf16[128,128], index: 4, kind: input, shape index: {}]
  %s5 = inlined_call_operand.vmem [shape: f32[1,128], index: 5, kind: input, shape index: {}]
  %s6 = inlined_call_operand.hbm [shape: bf16[128,1024], index: 6, kind: input, shape index: {}]
  %s7 = inlined_call_operand.hbm [shape: bf16[512,128], index: 7, kind: input, shape index: {}]
  %s8 = inlined_call_operand.hbm [shape: f32[32,128], index: 8, kind: output, shape index: {}]
  %s9 = sld [smem:[#allocation0]]
  $region85: #{tpu_custom_call.1} parent=0
    _
  %s11 = ssub.s32 1, %s9
  %s12 = scalar_select 0, %s11, %s9
  $region1: #{tpu_custom_call.1} parent=0
    #allocation2 [shape = 'u8[16384]{0}', space=vmem, size = 0x4000, scoped, tag = 'input window, operand 0']
    #allocation3 [shape = 's32[2]{0}', space=sflag, size = 0x8, scoped, tag = 'scoped memory for tpu_custom_call.1']
    #allocation4 [shape = 's32[2]{0}', space=sflag, size = 0x8, scoped, tag = 'scoped memory for tpu_custom_call.1']
    #allocation5 [shape = 'u8[98304]{0}', space=vmem, size = 0x18000, scoped, tag = 'input window, operand 2, single buffered']
    #allocation6 [shape = 's32[1]{0}', space=sflag, size = 0x4, scoped, tag = 'scoped memory for tpu_custom_call.1']
    #allocation7 [shape = 'u8[32768]{0}', space=vmem, size = 0x8000, scoped, tag = 'input window, operand 4, single buffered']
    #allocation8 [shape = 'u8[262144]{0}', space=vmem, size = 0x40000, scoped, tag = 'input window, operand 6, single buffered']
    #allocation9 [shape = 's32[1]{0}', space=sflag, size = 0x4, scoped, tag = 'scoped memory for tpu_custom_call.1']
    #allocation10 [shape = 'u8[131072]{0}', space=vmem, size = 0x20000, scoped, tag = 'input window, operand 7, single buffered']
    #allocation11 [shape = 'u8[16384]{0}', space=vmem, size = 0x4000, scoped, tag = 'output window, operand 0']
    %13 = vsyncpa [#allocation3], 0
    %s14 = scalar_lea.sflag [#allocation3], 1
    %15 = vsyncpa %s14, 0
    %16 = vsyncpa [#allocation6], 0
    %17 = vsyncpa [#allocation9], 0
    %18 = vsyncpa [#allocation4], 0
    %s19 = scalar_lea.sflag [#allocation4], 1
    %20 = vsyncpa %s19, 0
    loop: start=0, step=1, limit=4
    $region2: #{tpu_custom_call.1} parent=1 // loop_pre_header
      _
    $region3: #{tpu_custom_call.1} parent=1 // loop_header
      %s22 = sphi 0, %s26
      %p23 = scmp.ge.s32.totalorder %s22, 4
      %s32 = sphi 0, %s34
      %s35 = sphi 0, %s32
      %s36 = sphi 0, %s35
      %s52 = sphi 0, %s36
      %s56 = sphi 0, %s56
      %s58 = sphi 0, %s56
      %s59 = sphi 0, %s58
      %s73 = sphi 0, %s59
      %s77 = sphi 0, %s77
      %s79 = sphi 0, %s77
      %s80 = sphi 0, %s79
      %s94 = sphi 0, %s80
      %s98 = sphi 0, %s98
      %s100 = sphi 0, %s98
      %s101 = sphi 0, %s100
      %s115 = sphi 0, %s101
      %s119 = sphi 0, %s119
      %s121 = sphi 0, %s119
      %s122 = sphi 0, %s121
      %s136 = sphi 0, %s122
      %s140 = sphi 0, %s140
      %s142 = sphi 0, %s140
      %s143 = sphi 0, %s142
      %s157 = sphi 0, %s143
      %s161 = sphi 0, %s161
      %s163 = sphi 0, %s161
      %s164 = sphi 0, %s163
      %s178 = sphi 0, %s164
      %s182 = sphi 0, %s182
      %s184 = sphi 0, %s182
      %s185 = sphi 0, %s184
      %s199 = sphi 0, %s185
      %s205 = sphi 0, %s207
      %s208 = sphi 0, %s205
      %s209 = sphi 0, %s208
      %s225 = sphi 0, %s209
    $region4: #{tpu_custom_call.1} parent=1 // loop_header_branch
      %25 = sbr.rel (%p23) target = $region8
    $region5: #{tpu_custom_call.1} parent=1 // loop_body
      %s27 = ssub.s32 %s22, 1
      %s28 = ssub.s32 %s22, 2
      %s29 = sadd.s32 %s22, 1
      %s30 = ssub.s32 %s22, %s29
      %p31 = scmp.eq.s32.totalorder %s30, 0
      %s33 = sadd.s32 %s32, 1
      %s34 = scalar_select %p31, %s32, %s33
      %p37 = pneg %p31
      %p38 = scmp.eq.s32.totalorder %s22, 1
      %p39 = por %p37, %p38
      %p40 = scmp.ne.s32.totalorder %s32, %s35
      %p41 = scmp.eq.s32.totalorder %s22, 0
      %p42 = por %p40, %p41
      %p43 = scmp.ne.s32.totalorder %s32, %s35
      %p44 = scmp.eq.s32.totalorder %s27, 1
      %p45 = por %p43, %p44
      %p46 = scmp.ne.s32.totalorder %s35, %s36
      %p47 = scmp.eq.s32.totalorder %s27, 0
      %p48 = por %p46, %p47
      %p49 = scmp.ne.s32.totalorder %s35, %s36
      %p50 = scmp.eq.s32.totalorder %s28, 1
      %p51 = por %p49, %p50
      %p53 = scmp.ne.s32.totalorder %s36, %s52
      %p54 = scmp.eq.s32.totalorder %s28, 0
      %p55 = por %p53, %p54
      %s57 = sadd.s32 %s56, 1
      %p60 = scmp.eq.s32.totalorder %s22, 1
      %p61 = scmp.ne.s32.totalorder %s56, %s58
      %p62 = scmp.eq.s32.totalorder %s22, 0
      %p63 = por %p61, %p62
      %p64 = scmp.ne.s32.totalorder %s56, %s58
      %p65 = scmp.eq.s32.totalorder %s27, 1
      %p66 = por %p64, %p65
      %p67 = scmp.ne.s32.totalorder %s58, %s59
      %p68 = scmp.eq.s32.totalorder %s27, 0
      %p69 = por %p67, %p68
      %p70 = scmp.ne.s32.totalorder %s58, %s59
      %p71 = scmp.eq.s32.totalorder %s28, 1
      %p72 = por %p70, %p71
      %p74 = scmp.ne.s32.totalorder %s59, %s73
      %p75 = scmp.eq.s32.totalorder %s28, 0
      %p76 = por %p74, %p75
      %s78 = sadd.s32 %s77, 1
      %p81 = scmp.eq.s32.totalorder %s22, 1
      %p82 = scmp.ne.s32.totalorder %s77, %s79
      %p83 = scmp.eq.s32.totalorder %s22, 0
      %p84 = por %p82, %p83
      %p85 = scmp.ne.s32.totalorder %s77, %s79
      %p86 = scmp.eq.s32.totalorder %s27, 1
      %p87 = por %p85, %p86
      %p88 = scmp.ne.s32.totalorder %s79, %s80
      %p89 = scmp.eq.s32.totalorder %s27, 0
      %p90 = por %p88, %p89
      %p91 = scmp.ne.s32.totalorder %s79, %s80
      %p92 = scmp.eq.s32.totalorder %s28, 1
      %p93 = por %p91, %p92
      %p95 = scmp.ne.s32.totalorder %s80, %s94
      %p96 = scmp.eq.s32.totalorder %s28, 0
      %p97 = por %p95, %p96
      %s99 = sadd.s32 %s98, 1
      %p102 = scmp.eq.s32.totalorder %s22, 1
      %p103 = scmp.ne.s32.totalorder %s98, %s100
      %p104 = scmp.eq.s32.totalorder %s22, 0
      %p105 = por %p103, %p104
      %p106 = scmp.ne.s32.totalorder %s98, %s100
      %p107 = scmp.eq.s32.totalorder %s27, 1
      %p108 = por %p106, %p107
      %p109 = scmp.ne.s32.totalorder %s100, %s101
      %p110 = scmp.eq.s32.totalorder %s27, 0
      %p111 = por %p109, %p110
      %p112 = scmp.ne.s32.totalorder %s100, %s101
      %p113 = scmp.eq.s32.totalorder %s28, 1
      %p114 = por %p112, %p113
      %p116 = scmp.ne.s32.totalorder %s101, %s115
      %p117 = scmp.eq.s32.totalorder %s28, 0
      %p118 = por %p116, %p117
      %s120 = sadd.s32 %s119, 1
      %p123 = scmp.eq.s32.totalorder %s22, 1
      %p124 = scmp.ne.s32.totalorder %s119, %s121
      %p125 = scmp.eq.s32.totalorder %s22, 0
      %p126 = por %p124, %p125
      %p127 = scmp.ne.s32.totalorder %s119, %s121
      %p128 = scmp.eq.s32.totalorder %s27, 1
      %p129 = por %p127, %p128
      %p130 = scmp.ne.s32.totalorder %s121, %s122
      %p131 = scmp.eq.s32.totalorder %s27, 0
      %p132 = por %p130, %p131
      %p133 = scmp.ne.s32.totalorder %s121, %s122
      %p134 = scmp.eq.s32.totalorder %s28, 1
      %p135 = por %p133, %p134
      %p137 = scmp.ne.s32.totalorder %s122, %s136
      %p138 = scmp.eq.s32.totalorder %s28, 0
      %p139 = por %p137, %p138
      %s141 = sadd.s32 %s140, 1
      %p144 = scmp.eq.s32.totalorder %s22, 1
      %p145 = scmp.ne.s32.totalorder %s140, %s142
      %p146 = scmp.eq.s32.totalorder %s22, 0
      %p147 = por %p145, %p146
      %p148 = scmp.ne.s32.totalorder %s140, %s142
      %p149 = scmp.eq.s32.totalorder %s27, 1
      %p150 = por %p148, %p149
      %p151 = scmp.ne.s32.totalorder %s142, %s143
      %p152 = scmp.eq.s32.totalorder %s27, 0
      %p153 = por %p151, %p152
      %p154 = scmp.ne.s32.totalorder %s142, %s143
      %p155 = scmp.eq.s32.totalorder %s28, 1
      %p156 = por %p154, %p155
      %p158 = scmp.ne.s32.totalorder %s143, %s157
      %p159 = scmp.eq.s32.totalorder %s28, 0
      %p160 = por %p158, %p159
      %s162 = sadd.s32 %s161, 1
      %p165 = scmp.eq.s32.totalorder %s22, 1
      %p166 = scmp.ne.s32.totalorder %s161, %s163
      %p167 = scmp.eq.s32.totalorder %s22, 0
      %p168 = por %p166, %p167
      %p169 = scmp.ne.s32.totalorder %s161, %s163
      %p170 = scmp.eq.s32.totalorder %s27, 1
      %p171 = por %p169, %p170
      %p172 = scmp.ne.s32.totalorder %s163, %s164
      %p173 = scmp.eq.s32.totalorder %s27, 0
      %p174 = por %p172, %p173
      %p175 = scmp.ne.s32.totalorder %s163, %s164
      %p176 = scmp.eq.s32.totalorder %s28, 1
      %p177 = por %p175, %p176
      %p179 = scmp.ne.s32.totalorder %s164, %s178
      %p180 = scmp.eq.s32.totalorder %s28, 0
      %p181 = por %p179, %p180
      %s183 = sadd.s32 %s182, 1
      %p186 = scmp.eq.s32.totalorder %s22, 1
      %p187 = scmp.ne.s32.totalorder %s182, %s184
      %p188 = scmp.eq.s32.totalorder %s22, 0
      %p189 = por %p187, %p188
      %p190 = scmp.ne.s32.totalorder %s182, %s184
      %p191 = scmp.eq.s32.totalorder %s27, 1
      %p192 = por %p190, %p191
      %p193 = scmp.ne.s32.totalorder %s184, %s185
      %p194 = scmp.eq.s32.totalorder %s27, 0
      %p195 = por %p193, %p194
      %p196 = scmp.ne.s32.totalorder %s184, %s185
      %p197 = scmp.eq.s32.totalorder %s28, 1
      %p198 = por %p196, %p197
      %p200 = scmp.ne.s32.totalorder %s185, %s199
      %p201 = scmp.eq.s32.totalorder %s28, 0
      %p202 = por %p200, %p201
      %s203 = ssub.s32 %s22, %s29
      %p204 = scmp.eq.s32.totalorder %s203, 0
      %s206 = sadd.s32 %s205, 1
      %s207 = scalar_select %p204, %s205, %s206
      %p210 = pneg %p204
      %p211 = scmp.eq.s32.totalorder %s22, 1
      %p212 = por %p210, %p211
      %p213 = scmp.ne.s32.totalorder %s205, %s208
      %p214 = scmp.eq.s32.totalorder %s22, 0
      %p215 = por %p213, %p214
      %p216 = scmp.ne.s32.totalorder %s205, %s208
      %p217 = scmp.eq.s32.totalorder %s27, 1
      %p218 = por %p216, %p217
      %p219 = scmp.ne.s32.totalorder %s208, %s209
      %p220 = scmp.eq.s32.totalorder %s27, 0
      %p221 = por %p219, %p220
      %p222 = scmp.ne.s32.totalorder %s208, %s209
      %p223 = scmp.eq.s32.totalorder %s28, 1
      %p224 = por %p222, %p223
      %p226 = scmp.ne.s32.totalorder %s209, %s225
      %p227 = scmp.eq.s32.totalorder %s28, 0
      %p228 = por %p226, %p227
      %p229 = scmp.le.s32.totalorder 1, %s22
      %p230 = scmp.lt.s32.totalorder %s22, 3
      %p231 = pnand %p229, %p230
      %p232 = pneg %p231
      // Predicated region
      $region9: #{tpu_custom_call.1} parent=5 // pred_check
        _
      $region10: #{tpu_custom_call.1} parent=5 // pred_check_branch
        %234 = sbr.rel (%p231) target = $region12
      $region11: #{tpu_custom_call.1} parent=5 // pred_region
        %s235 = ssub.s32 %s22, 1
        // Predicated region
        $region13: #{tpu_custom_call.1} parent=11 // pred_check
          %p236 = pneg %p69
        $region14: #{tpu_custom_call.1} parent=11 // pred_check_branch
          %238 = sbr.rel (%p236) target = $region16
        $region15: #{tpu_custom_call.1} parent=11 // pred_region
          _
        $region16: #{tpu_custom_call.1} parent=11 // pred_fallthru
          _
        // Predicated region
        $region17: #{tpu_custom_call.1} parent=11 // pred_check
          %p239 = pneg %p90
        $region18: #{tpu_custom_call.1} parent=11 // pred_check_branch
          %241 = sbr.rel (%p239) target = $region20
        $region19: #{tpu_custom_call.1} parent=11 // pred_region
          %s243 = ssub.s32 3072, 3072
          %244 = vsyncadd [#allocation6], %s243
          %s245 = sshll.u32 [#allocation5], 4
          %s246 = int_to_ptr.vmem [resolvable:$true] %s245
          %251 = dma.hbm_to_vmem [thread:$0]  %s2, 3072, %s246, [#allocation6], 192, 192, 12
        $region20: #{tpu_custom_call.1} parent=11 // pred_fallthru
          _
        // Predicated region
        $region21: #{tpu_custom_call.1} parent=11 // pred_check
          %p252 = pneg %p111
        $region22: #{tpu_custom_call.1} parent=11 // pred_check_branch
          %254 = sbr.rel (%p252) target = $region24
        $region23: #{tpu_custom_call.1} parent=11 // pred_region
          _
        $region24: #{tpu_custom_call.1} parent=11 // pred_fallthru
          _
        // Predicated region
        $region25: #{tpu_custom_call.1} parent=11 // pred_check
          %p255 = pneg %p132
        $region26: #{tpu_custom_call.1} parent=11 // pred_check_branch
          %257 = sbr.rel (%p255) target = $region28
        $region27: #{tpu_custom_call.1} parent=11 // pred_region
          %s259 = ssub.s32 1024, 1024
          %260 = vsyncadd [#allocation6], %s259
          %s261 = sshll.u32 [#allocation7], 4
          %s262 = int_to_ptr.vmem [resolvable:$true] %s261
          %267 = dma.hbm_to_vmem [thread:$0]  %s4, 1024, %s262, [#allocation6], 64, 64, 4
        $region28: #{tpu_custom_call.1} parent=11 // pred_fallthru
          _
        // Predicated region
        $region29: #{tpu_custom_call.1} parent=11 // pred_check
          %p268 = pneg %p153
        $region30: #{tpu_custom_call.1} parent=11 // pred_check_branch
          %270 = sbr.rel (%p268) target = $region32
        $region31: #{tpu_custom_call.1} parent=11 // pred_region
          _
        $region32: #{tpu_custom_call.1} parent=11 // pred_fallthru
          _
        // Predicated region
        $region33: #{tpu_custom_call.1} parent=11 // pred_check
          %p271 = pneg %p174
        $region34: #{tpu_custom_call.1} parent=11 // pred_check_branch
          %273 = sbr.rel (%p271) target = $region36
        $region35: #{tpu_custom_call.1} parent=11 // pred_region
          %s275 = ssub.s32 8192, 8192
          %276 = vsyncadd [#allocation9], %s275
          %s277 = sshll.u32 [#allocation8], 4
          %s278 = int_to_ptr.vmem [resolvable:$true] %s277
          %283 = dma.hbm_to_vmem [thread:$0]  %s6, 8192, %s278, [#allocation9], 512, 512, 32
        $region36: #{tpu_custom_call.1} parent=11 // pred_fallthru
          _
        // Predicated region
        $region37: #{tpu_custom_call.1} parent=11 // pred_check
          %p284 = pneg %p195
        $region38: #{tpu_custom_call.1} parent=11 // pred_check_branch
          %286 = sbr.rel (%p284) target = $region40
        $region39: #{tpu_custom_call.1} parent=11 // pred_region
          %s288 = ssub.s32 4096, 4096
          %289 = vsyncadd [#allocation9], %s288
          %s290 = sshll.u32 [#allocation10], 4
          %s291 = int_to_ptr.vmem [resolvable:$true] %s290
          %296 = dma.hbm_to_vmem [thread:$0]  %s7, 4096, %s291, [#allocation9], 64, 64, 4
        $region40: #{tpu_custom_call.1} parent=11 // pred_fallthru
          _
      $region12: #{tpu_custom_call.1} parent=5 // pred_fallthru
        _
      %p297 = scmp.lt.s32.totalorder %s22, 2
      // Predicated region
      $region41: #{tpu_custom_call.1} parent=5 // pred_check
        %p298 = pneg %p297
      $region42: #{tpu_custom_call.1} parent=5 // pred_check_branch
        %300 = sbr.rel (%p298) target = $region44
      $region43: #{tpu_custom_call.1} parent=5 // pred_region
        // Predicated region
        $region45: #{tpu_custom_call.1} parent=43 // pred_check
          %p301 = pneg %p42
        $region46: #{tpu_custom_call.1} parent=43 // pred_check_branch
          %303 = sbr.rel (%p301) target = $region48
        $region47: #{tpu_custom_call.1} parent=43 // pred_region
          %s304 = sand.u32 %s32, 1
          %s305 = scalar_lea.sflag [#allocation3], %s304
          %s306 = sand.u32 %s32, 1
          %s307 = smul.addr %s306, 16
          %s308 = scalar_lea.vmem [#allocation2], %s307
          %s309 = smul.u32 2, %s22
          %s311 = ssub.s32 256, 256
          %312 = vsyncadd %s305, %s311
          %s313 = smul.addr %s309, 128
          %s314 = scalar_lea.hbm %s0, %s313
          %s315 = sshll.u32 %s308, 4
          %s316 = int_to_ptr.vmem [resolvable:$true] %s315
          %321 = dma.hbm_to_vmem [thread:$0]  %s314, 256, %s316, %s305, 128, 128, 8
        $region48: #{tpu_custom_call.1} parent=43 // pred_fallthru
          _
      $region44: #{tpu_custom_call.1} parent=5 // pred_fallthru
        _
      %p322 = scmp.le.s32.totalorder 1, %s22
      %p323 = scmp.lt.s32.totalorder %s22, 3
      %p324 = pnand %p322, %p323
      %p325 = pneg %p324
      // Predicated region
      $region49: #{tpu_custom_call.1} parent=5 // pred_check
        _
      $region50: #{tpu_custom_call.1} parent=5 // pred_check_branch
        %327 = sbr.rel (%p324) target = $region52
      $region51: #{tpu_custom_call.1} parent=5 // pred_region
        %s328 = ssub.s32 %s22, 1
        %s329 = sand.u32 %s35, 1
        %s330 = scalar_lea.sflag [#allocation3], %s329
        %s331 = sand.u32 %s35, 1
        %s332 = smul.addr %s331, 16
        %s333 = scalar_lea.vmem [#allocation2], %s332
        // Predicated region
        $region53: #{tpu_custom_call.1} parent=51 // pred_check
          %p334 = pneg %p48
        $region54: #{tpu_custom_call.1} parent=51 // pred_check_branch
          %336 = sbr.rel (%p334) target = $region56
        $region55: #{tpu_custom_call.1} parent=51 // pred_region
          %337 = dma.done %s330, 256
        $region56: #{tpu_custom_call.1} parent=51 // pred_fallthru
          _
        // Predicated region
        $region57: #{tpu_custom_call.1} parent=51 // pred_check
          %p338 = pneg %p90
        $region58: #{tpu_custom_call.1} parent=51 // pred_check_branch
          %340 = sbr.rel (%p338) target = $region60
        $region59: #{tpu_custom_call.1} parent=51 // pred_region
          %341 = dma.done [#allocation6], 3072
        $region60: #{tpu_custom_call.1} parent=51 // pred_fallthru
          _
        // Predicated region
        $region61: #{tpu_custom_call.1} parent=51 // pred_check
          %p342 = pneg %p132
        $region62: #{tpu_custom_call.1} parent=51 // pred_check_branch
          %344 = sbr.rel (%p342) target = $region64
        $region63: #{tpu_custom_call.1} parent=51 // pred_region
          %345 = dma.done [#allocation6], 1024
        $region64: #{tpu_custom_call.1} parent=51 // pred_fallthru
          _
        // Predicated region
        $region65: #{tpu_custom_call.1} parent=51 // pred_check
          %p346 = pneg %p174
        $region66: #{tpu_custom_call.1} parent=51 // pred_check_branch
          %348 = sbr.rel (%p346) target = $region68
        $region67: #{tpu_custom_call.1} parent=51 // pred_region
          %349 = dma.done [#allocation9], 8192
        $region68: #{tpu_custom_call.1} parent=51 // pred_fallthru
          _
        // Predicated region
        $region69: #{tpu_custom_call.1} parent=51 // pred_check
          %p350 = pneg %p195
        $region70: #{tpu_custom_call.1} parent=51 // pred_check_branch
          %352 = sbr.rel (%p350) target = $region72
        $region71: #{tpu_custom_call.1} parent=51 // pred_region
          %353 = dma.done [#allocation9], 4096
        $region72: #{tpu_custom_call.1} parent=51 // pred_fallthru
          _
        %s354 = sand.u32 %s35, 1
        %s355 = scalar_lea.sflag [#allocation3], %s354
        %s356 = sand.u32 %s35, 1
        %s357 = smul.addr %s356, 16
        %s358 = scalar_lea.vmem [#allocation2], %s357
        %p359 = pneg %p48
        %p360 = pneg %p45
        %p361 = pneg %p69
        %p362 = pneg %p66
        %p363 = pneg %p90
        %p364 = pneg %p87
        %p365 = pneg %p111
        %p366 = pneg %p108
        %p367 = pneg %p132
        %p368 = pneg %p129
        %p369 = pneg %p153
        %p370 = pneg %p150
        %p371 = pneg %p174
        %p372 = pneg %p171
        %p373 = pneg %p195
        %p374 = pneg %p192
        %p375 = pneg %p221
        %p376 = pneg %p218
        %s377 = sand.u32 %s208, 1
        %s378 = scalar_lea.sflag [#allocation4], %s377
        %s379 = sand.u32 %s208, 1
        %s380 = smul.addr %s379, 16
        %s381 = scalar_lea.vmem [#allocation11], %s380
        %s382 = smul.u32 2, %s27
        %s383 = smul.u32 2, %s27
        %v385 = vld [vmem:[%s333] sm:$0xff]
        %v386 = vld [vmem:[%s333 + $0x8] sm:$0xff]
        %v387 = vld [vmem:[%s1] sm:$0x1]
        %v388 = vmul.f32 %v385, %v385
        %v389 = vmul.f32 %v386, %v386
        %390 = vadd.xlane.f32.xlu0 %v388
        %v391 = vpop.xlane.xlu0 %390
        %392 = vadd.xlane.f32.xlu0 %v389
        %v393 = vpop.xlane.xlu0 %392
        %v394 = vrcp.pop 128.0
        %v395 = vmul.f32 %v391, %v394
        %v396 = vmul.f32 %v393, %v394
        %v397 = vadd.f32 %v395, 1e-06
        %v398 = vadd.f32 %v396, 1e-06
        %v399 = vrsqrt.pop %v397
        %v400 = vrsqrt.pop %v398
        %v401 = vmul.f32 %v385, %v399
        %v402 = vmul.f32 %v386, %v400
        %v404 = vlaneseq
        %v405 = vshrl.u32 %v404, 7
        %v406 = vsub.s32 0, %v405
        %v407 = vrot.slane %v387, %v406
        %v409 = vmul.f32 %v401, %v407
        %v410 = vmul.f32 %v402, %v407
        %v411 = vpack.c.bf16 %v410, %v409
        %v412 = vld [vmem:[#allocation5] sm:$0xff]
        %v413 = vld [vmem:[#allocation5 + $0x8] sm:$0xf]
        %v414 = vld [vmem:[#allocation5 + $0xc] sm:$0xff]
        %v415 = vld [vmem:[#allocation5 + $0x14] sm:$0xf]
        %v416 = vld [vmem:[#allocation5 + $0x18] sm:$0xff]
        %v417 = vld [vmem:[#allocation5 + $0x20] sm:$0xf]
        %v418 = vld [vmem:[#allocation5 + $0x24] sm:$0xff]
        %v419 = vld [vmem:[#allocation5 + $0x2c] sm:$0xf]
        %v420 = vld [vmem:[#allocation5 + $0x30] sm:$0xff]
        %v421 = vld [vmem:[#allocation5 + $0x38] sm:$0xf]
        %v422 = vld [vmem:[#allocation5 + $0x3c] sm:$0xff]
        %v423 = vld [vmem:[#allocation5 + $0x44] sm:$0xf]
        %v424 = vld [vmem:[#allocation5 + $0x48] sm:$0xff]
        %v425 = vld [vmem:[#allocation5 + $0x50] sm:$0xf]
        %v426 = vld [vmem:[#allocation5 + $0x54] sm:$0xff]
        %v427 = vld [vmem:[#allocation5 + $0x5c] sm:$0xf]
        %v428 = vld [vmem:[#allocation5 + $0x60] sm:$0xff]
        %v429 = vld [vmem:[#allocation5 + $0x68] sm:$0xf]
        %v430 = vld [vmem:[#allocation5 + $0x6c] sm:$0xff]
        %v431 = vld [vmem:[#allocation5 + $0x74] sm:$0xf]
        %v432 = vld [vmem:[#allocation5 + $0x78] sm:$0xff]
        %v433 = vld [vmem:[#allocation5 + $0x80] sm:$0xf]
        %v434 = vld [vmem:[#allocation5 + $0x84] sm:$0xff]
        %v435 = vld [vmem:[#allocation5 + $0x8c] sm:$0xf]
        %v436 = vld [vmem:[#allocation5 + $0x90] sm:$0xff]
        %v437 = vld [vmem:[#allocation5 + $0x98] sm:$0xf]
        %v438 = vld [vmem:[#allocation5 + $0x9c] sm:$0xff]
        %v439 = vld [vmem:[#allocation5 + $0xa4] sm:$0xf]
        %v440 = vld [vmem:[#allocation5 + $0xa8] sm:$0xff]
        %v441 = vld [vmem:[#allocation5 + $0xb0] sm:$0xf]
        %v442 = vld [vmem:[#allocation5 + $0xb4] sm:$0xff]
        %v443 = vld [vmem:[#allocation5 + $0xbc] sm:$0xf]
        %v476 = vunpack.c.l.b16 %v412
        %v477 = vunpack.c.h.b16 %v412
        %v478 = vunpack.c.l.b16 %v413
        %v479 = vunpack.c.l.b16 %v414
        %v480 = vunpack.c.h.b16 %v414
        %v481 = vunpack.c.l.b16 %v415
        %v482 = vunpack.c.l.b16 %v416
        %v483 = vunpack.c.h.b16 %v416
        %v484 = vunpack.c.l.b16 %v417
        %v485 = vunpack.c.l.b16 %v418
        %v486 = vunpack.c.h.b16 %v418
        %v487 = vunpack.c.l.b16 %v419
        %v488 = vunpack.c.l.b16 %v420
        %v489 = vunpack.c.h.b16 %v420
        %v490 = vunpack.c.l.b16 %v421
        %v491 = vunpack.c.l.b16 %v422
        %v492 = vunpack.c.h.b16 %v422
        %v493 = vunpack.c.l.b16 %v423
        %v494 = vunpack.c.l.b16 %v424
        %v495 = vunpack.c.h.b16 %v424
        %v496 = vunpack.c.l.b16 %v425
        %v497 = vunpack.c.l.b16 %v426
        %v498 = vunpack.c.h.b16 %v426
        %v499 = vunpack.c.l.b16 %v427
        %v500 = vunpack.c.l.b16 %v428
        %v501 = vunpack.c.h.b16 %v428
        %v502 = vunpack.c.l.b16 %v429
        %v503 = vunpack.c.l.b16 %v430
        %v504 = vunpack.c.h.b16 %v430
        %v505 = vunpack.c.l.b16 %v431
        %v506 = vunpack.c.l.b16 %v432
        %v507 = vunpack.c.h.b16 %v432
        %v508 = vunpack.c.l.b16 %v433
        %v509 = vunpack.c.l.b16 %v434
        %v510 = vunpack.c.h.b16 %v434
        %v511 = vunpack.c.l.b16 %v435
        %v512 = vunpack.c.l.b16 %v436
        %v513 = vunpack.c.h.b16 %v436
        %v514 = vunpack.c.l.b16 %v437
        %v515 = vunpack.c.l.b16 %v438
        %v516 = vunpack.c.h.b16 %v438
        %v517 = vunpack.c.l.b16 %v439
        %v518 = vunpack.c.l.b16 %v440
        %v519 = vunpack.c.h.b16 %v440
        %v520 = vunpack.c.l.b16 %v441
        %v521 = vunpack.c.l.b16 %v442
        %v522 = vunpack.c.h.b16 %v442
        %v523 = vunpack.c.l.b16 %v443
        %v524 = vpack.c.b16 %v479, %v476
        %v525 = vpack.c.b16 %v480, %v477
        %v526 = vpack.c.b16 %v481, %v478
        %v527 = vpack.c.b16 %v485, %v482
        %v528 = vpack.c.b16 %v486, %v483
        %v529 = vpack.c.b16 %v487, %v484
        %v530 = vpack.c.b16 %v491, %v488
        %v531 = vpack.c.b16 %v492, %v489
        %v532 = vpack.c.b16 %v493, %v490
        %v533 = vpack.c.b16 %v497, %v494
        %v534 = vpack.c.b16 %v498, %v495
        %v535 = vpack.c.b16 %v499, %v496
        %v536 = vpack.c.b16 %v503, %v500
        %v537 = vpack.c.b16 %v504, %v501
        %v538 = vpack.c.b16 %v505, %v502
        %v539 = vpack.c.b16 %v509, %v506
        %v540 = vpack.c.b16 %v510, %v507
        %v541 = vpack.c.b16 %v511, %v508
        %v542 = vpack.c.b16 %v515, %v512
        %v543 = vpack.c.b16 %v516, %v513
        %v544 = vpack.c.b16 %v517, %v514
        %v545 = vpack.c.b16 %v521, %v518
        %v546 = vpack.c.b16 %v522, %v519
        %v547 = vpack.c.b16 %v523, %v520
        %572 = vmatprep.subr.bf16.mxu0 %v525
        %573 = vmatpush1.bf16.msra.mxu0 %v524
        %574 = vmatprep.subr.bf16.mxu0 %v528
        %575 = vmatpush1.bf16.msra.mxu0 %v527
        %576 = vmatprep.subr.bf16.mxu0 %v531
        %577 = vmatpush1.bf16.msra.mxu0 %v530
        %578 = vmatprep.subr.bf16.mxu0 %v534
        %579 = vmatpush1.bf16.msra.mxu0 %v533
        %580 = vmatprep.subr.bf16.mxu0 %v537
        %581 = vmatpush1.bf16.msra.mxu0 %v536
        %582 = vmatprep.subr.bf16.mxu0 %v540
        %583 = vmatpush1.bf16.msra.mxu0 %v539
        %584 = vmatprep.subr.bf16.mxu0 %v543
        %585 = vmatpush1.bf16.msra.mxu0 %v542
        %586 = vmatprep.subr.bf16.mxu0 %v546
        %587 = vmatpush1.bf16.msra.mxu0 %v545
        %588 = vmatprep.subr.bf16.mxu0 0
        %589 = vmatpush1.bf16.msra.mxu0 0
        %590 = vmatprep.subr.bf16.mxu0 0
        %591 = vmatpush1.bf16.msra.mxu0 0
        %592 = vmatprep.subr.bf16.mxu0 0
        %593 = vmatpush1.bf16.msra.mxu0 0
        %594 = vmatprep.subr.bf16.mxu0 0
        %595 = vmatpush1.bf16.msra.mxu0 0
        %596 = vmatprep.subr.bf16.mxu0 0
        %597 = vmatpush1.bf16.msra.mxu0 0
        %598 = vmatprep.subr.bf16.mxu0 0
        %599 = vmatpush1.bf16.msra.mxu0 0
        %600 = vmatprep.subr.bf16.mxu0 0
        %601 = vmatpush1.bf16.msra.mxu0 0
        %602 = vmatprep.subr.bf16.mxu0 0
        %603 = vmatpush1.bf16.msra.mxu0 0
        %604 = vmatprep.mubr.bf16.mxu0 0
        %605 = vmatmul.mubr.bf16.gmra.mrb[0].mxu0 %v411
        %v606 = vpop.f32.mrb[0].mxu0
        %v607 = vadd.f32 0.0, %v606
        %v608 = vpop.f32.mrb[0].mxu0
        %v609 = vadd.f32 0.0, %v608
        %v610 = vpop.f32.mrb[0].mxu0
        %v611 = vadd.f32 0.0, %v610
        %v612 = vpop.f32.mrb[0].mxu0
        %v613 = vadd.f32 0.0, %v612
        %614 = vdwg.mxu0
        %615 = vmatprep.subr.bf16.mxu0 0
        %616 = vmatpush1.bf16.msra.mxu0 %v526
        %617 = vmatprep.subr.bf16.mxu0 0
        %618 = vmatpush1.bf16.msra.mxu0 %v529
        %619 = vmatprep.subr.bf16.mxu0 0
        %620 = vmatpush1.bf16.msra.mxu0 %v532
        %621 = vmatprep.subr.bf16.mxu0 0
        %622 = vmatpush1.bf16.msra.mxu0 %v535
        %623 = vmatprep.subr.bf16.mxu0 0
        %624 = vmatpush1.bf16.msra.mxu0 %v538
        %625 = vmatprep.subr.bf16.mxu0 0
        %626 = vmatpush1.bf16.msra.mxu0 %v541
        %627 = vmatprep.subr.bf16.mxu0 0
        %628 = vmatpush1.bf16.msra.mxu0 %v544
        %629 = vmatprep.subr.bf16.mxu0 0
        %630 = vmatpush1.bf16.msra.mxu0 %v547
        %631 = vmatprep.subr.bf16.mxu0 0
        %632 = vmatpush1.bf16.msra.mxu0 0
        %633 = vmatprep.subr.bf16.mxu0 0
        %634 = vmatpush1.bf16.msra.mxu0 0
        %635 = vmatprep.subr.bf16.mxu0 0
        %636 = vmatpush1.bf16.msra.mxu0 0
        %637 = vmatprep.subr.bf16.mxu0 0
        %638 = vmatpush1.bf16.msra.mxu0 0
        %639 = vmatprep.subr.bf16.mxu0 0
        %640 = vmatpush1.bf16.msra.mxu0 0
        %641 = vmatprep.subr.bf16.mxu0 0
        %642 = vmatpush1.bf16.msra.mxu0 0
        %643 = vmatprep.subr.bf16.mxu0 0
        %644 = vmatpush1.bf16.msra.mxu0 0
        %645 = vmatprep.subr.bf16.mxu0 0
        %646 = vmatpush1.bf16.msra.mxu0 0
        %647 = vmatprep.mubr.bf16.mxu0 0
        %648 = vmatmul.mubr.bf16.gmra.mrb[0].mxu0 %v411
        %v649 = vpop.f32.mrb[0].mxu0
        %v650 = vadd.f32 0.0, %v649
        %v651 = vpop.f32.mrb[0].mxu0
        %v652 = vpop.f32.mrb[0].mxu0
        %v653 = vadd.f32 0.0, %v652
        %v654 = vpop.f32.mrb[0].mxu0
        %655 = vdwg.mxu0
        %v656 = vxor.u32 %v609, 2147483648
        %v657 = vxor.u32 %v613, 2147483648
        %v658 = vmul.f32 %v656, 1.442695
        %v659 = vpow.pop %v658
        %v660 = vmul.f32 %v657, 1.442695
        %v661 = vpow.pop %v660
        %v662 = vadd.f32 %v659, 1.0
        %v663 = vadd.f32 %v661, 1.0
        %v664 = vrcp.pop %v662
        %v665 = vmul.f32 1.0, %v664
        %v666 = vrcp.pop %v663
        %v667 = vmul.f32 1.0, %v666
        %v668 = vxor.u32 %v607, 2147483648
        %v669 = vxor.u32 %v611, 2147483648
        %v670 = vmul.f32 %v668, 1.442695
        %v671 = vpow.pop %v670
        %v672 = vmul.f32 %v669, 1.442695
        %v673 = vpow.pop %v672
        %v674 = vadd.f32 %v671, 1.0
        %v675 = vadd.f32 %v673, 1.0
        %v676 = vrcp.pop %v674
        %v677 = vmul.f32 1.0, %v676
        %v678 = vrcp.pop %v675
        %v679 = vmul.f32 1.0, %v678
        %v680 = vmul.f32 %v607, %v677
        %v681 = vmul.f32 %v611, %v679
        %v682 = vsub.f32 1.0, %v665
        %v683 = vsub.f32 1.0, %v667
        %v684 = vmul.f32 %v680, %v682
        %v685 = vmul.f32 %v681, %v683
        %v686 = vlaneseq
        %v687 = vshrl.u32 %v686, 7
        %v688 = vadd.s32 %v687, 8
        %vm689 = vcmp.lt.s32.totalorder %v687, 0
        %v690 = vsub.s32 0, %v687
        %v691 = vsel %vm689, %v690, %v687
        %v692 = vshrl.u32 %v691, 4
        %v693 = vand.u32 %v691, 15
        %v694 = vsub.s32 0, %v693
        %v695 = vsel %vm689, %v694, %v693
        %vm696 = vcmp.lt.s32.totalorder %v688, 0
        %v697 = vsub.s32 0, %v688
        %v698 = vsel %vm696, %v697, %v688
        %v699 = vshrl.u32 %v698, 4
        %v700 = vand.u32 %v698, 15
        %v701 = vsub.s32 0, %v700
        %v702 = vsel %vm696, %v701, %v700
        %vm703 = vcmp.ne.s32.totalorder %v695, 0
        %vm704 = vcmp.ne.s32.totalorder %v702, 0
        %vm705 = vcmp.lt.s32.totalorder %v695, 0
        %vm706 = vcmp.lt.s32.totalorder %v702, 0
        %vm707 = vmand %vm705, %vm703
        %vm708 = vmand %vm706, %vm704
        %v709 = vadd.s32 %v695, 16
        %v710 = vadd.s32 %v702, 16
        %v711 = vsel %vm707, %v709, %v695
        %v712 = vsel %vm708, %v710, %v702
        %v713 = vrot.slane %v665, 7
        %v714 = vrot.slane %v667, 7
        %vm715 = vcmp.lt.s32.totalorder %v687, 1
        %v716 = vsel %vm715, %v713, %v714
        %v717 = vsel %vm715, %v714, %v713
        %v718 = vrot.slane %v684, 7
        %v719 = vrot.slane %v685, 7
        %v720 = vsel %vm715, %v718, %v719
        %v721 = vsel %vm715, %v719, %v718
        %vm722 = vcmp.ge.s32.totalorder %v711, 1
        %vm723 = vcmp.ge.s32.totalorder %v712, 1
        %v724 = vmul.f32 %v665, %v721
        %v725 = vmul.f32 %v667, %v720
        %v726 = vadd.f32 %v724, %v684
        %v727 = vadd.f32 %v725, %v685
        %v728 = vsel %vm722, 1, 0
        %v729 = vsel %vm723, 1, 0
        %vm730 = vcmp.eq.s32.totalorder %v728, 1
        %vm731 = vcmp.eq.s32.totalorder %v729, 1
        %v732 = vsel %vm730, %v726, %v684
        %v733 = vsel %vm731, %v727, %v685
        %v734 = vmul.f32 %v665, %v717
        %v735 = vmul.f32 %v667, %v716
        %v736 = vsel %vm730, %v734, %v665
        %v737 = vsel %vm731, %v735, %v667
        %v738 = vrot.slane %v736, 6
        %v739 = vrot.slane %v737, 6
        %vm740 = vcmp.lt.s32.totalorder %v687, 2
        %v741 = vsel %vm740, %v738, %v739
        %v742 = vsel %vm740, %v739, %v738
        %v743 = vrot.slane %v732, 6
        %v744 = vrot.slane %v733, 6
        %v745 = vsel %vm740, %v743, %v744
        %v746 = vsel %vm740, %v744, %v743
        %vm747 = vcmp.ge.s32.totalorder %v711, 2
        %vm748 = vcmp.ge.s32.totalorder %v712, 2
        %v749 = vmul.f32 %v736, %v746
        %v750 = vmul.f32 %v737, %v745
        %v751 = vadd.f32 %v749, %v732
        %v752 = vadd.f32 %v750, %v733
        %v753 = vsel %vm747, 1, 0
        %v754 = vsel %vm748, 1, 0
        %vm755 = vcmp.eq.s32.totalorder %v753, 1
        %vm756 = vcmp.eq.s32.totalorder %v754, 1
        %v757 = vsel %vm755, %v751, %v732
        %v758 = vsel %vm756, %v752, %v733
        %v759 = vmul.f32 %v736, %v742
        %v760 = vmul.f32 %v737, %v741
        %v761 = vsel %vm755, %v759, %v736
        %v762 = vsel %vm756, %v760, %v737
        %v763 = vrot.slane %v761, 4
        %v764 = vrot.slane %v762, 4
        %vm765 = vcmp.lt.s32.totalorder %v687, 4
        %v766 = vsel %vm765, %v763, %v764
        %v767 = vsel %vm765, %v764, %v763
        %v768 = vrot.slane %v757, 4
        %v769 = vrot.slane %v758, 4
        %v770 = vsel %vm765, %v768, %v769
        %v771 = vsel %vm765, %v769, %v768
        %vm772 = vcmp.ge.s32.totalorder %v711, 4
        %vm773 = vcmp.ge.s32.totalorder %v712, 4
        %v774 = vmul.f32 %v761, %v771
        %v775 = vmul.f32 %v762, %v770
        %v776 = vadd.f32 %v774, %v757
        %v777 = vadd.f32 %v775, %v758
        %v778 = vsel %vm772, 1, 0
        %v779 = vsel %vm773, 1, 0
        %vm780 = vcmp.eq.s32.totalorder %v778, 1
        %vm781 = vcmp.eq.s32.totalorder %v779, 1
        %v782 = vsel %vm780, %v776, %v757
        %v783 = vsel %vm781, %v777, %v758
        %v784 = vmul.f32 %v761, %v767
        %v785 = vmul.f32 %v762, %v766
        %v786 = vsel %vm780, %v784, %v761
        %v787 = vsel %vm781, %v785, %v762
        %vm788 = vcmp.ge.s32.totalorder %v711, 8
        %vm789 = vcmp.ge.s32.totalorder %v712, 8
        %v790 = vmul.f32 %v786, %v783
        %v791 = vmul.f32 %v787, %v782
        %v792 = vadd.f32 %v790, %v782
        %v793 = vadd.f32 %v791, %v783
        %v794 = vsel %vm788, 1, 0
        %v795 = vsel %vm789, 1, 0
        %vm796 = vcmp.eq.s32.totalorder %v794, 1
        %vm797 = vcmp.eq.s32.totalorder %v795, 1
        %v798 = vsel %vm796, %v792, %v782
        %v799 = vsel %vm797, %v793, %v783
        %v800 = vld [vmem:[%s3] sm:$0x1]
        %v801 = vmul.f32 %v798, %v798
        %v802 = vmul.f32 %v799, %v799
        %803 = vadd.xlane.f32.xlu0 %v801
        %v804 = vpop.xlane.xlu0 %803
        %805 = vadd.xlane.f32.xlu0 %v802
        %v806 = vpop.xlane.xlu0 %805
        %v807 = vmul.f32 %v804, %v394
        %v808 = vmul.f32 %v806, %v394
        %v809 = vadd.f32 %v807, 1e-06
        %v810 = vadd.f32 %v808, 1e-06
        %v811 = vrsqrt.pop %v809
        %v812 = vrsqrt.pop %v810
        %v813 = vmul.f32 %v798, %v811
        %v814 = vmul.f32 %v799, %v812
        %v816 = vlaneseq
        %v817 = vshrl.u32 %v816, 7
        %v818 = vsub.s32 0, %v817
        %v819 = vrot.slane %v800, %v818
        %v821 = vmul.f32 %v813, %v819
        %v822 = vmul.f32 %v814, %v819
        %v823 = vxor.u32 %v650, 2147483648
        %v824 = vxor.u32 %v653, 2147483648
        %v825 = vmul.f32 %v823, 1.442695
        %v826 = vpow.pop %v825
        %v827 = vmul.f32 %v824, 1.442695
        %v828 = vpow.pop %v827
        %v829 = vadd.f32 %v826, 1.0
        %v830 = vadd.f32 %v828, 1.0
        %v831 = vrcp.pop %v829
        %v832 = vmul.f32 1.0, %v831
        %v833 = vrcp.pop %v830
        %v834 = vmul.f32 1.0, %v833
        %v835 = vmul.f32 %v650, %v832
        %v836 = vmul.f32 %v653, %v834
        %v837 = vmul.f32 %v821, %v835
        %v838 = vmul.f32 %v822, %v836
        %v839 = vpack.c.bf16 %v838, %v837
        %v840 = vld [vmem:[#allocation7] sm:$0xf]
        %v841 = vld [vmem:[#allocation7 + $0x4] sm:$0xf]
        %v842 = vld [vmem:[#allocation7 + $0x8] sm:$0xf]
        %v843 = vld [vmem:[#allocation7 + $0xc] sm:$0xf]
        %v844 = vld [vmem:[#allocation7 + $0x10] sm:$0xf]
        %v845 = vld [vmem:[#allocation7 + $0x14] sm:$0xf]
        %v846 = vld [vmem:[#allocation7 + $0x18] sm:$0xf]
        %v847 = vld [vmem:[#allocation7 + $0x1c] sm:$0xf]
        %v848 = vld [vmem:[#allocation7 + $0x20] sm:$0xf]
        %v849 = vld [vmem:[#allocation7 + $0x24] sm:$0xf]
        %v850 = vld [vmem:[#allocation7 + $0x28] sm:$0xf]
        %v851 = vld [vmem:[#allocation7 + $0x2c] sm:$0xf]
        %v852 = vld [vmem:[#allocation7 + $0x30] sm:$0xf]
        %v853 = vld [vmem:[#allocation7 + $0x34] sm:$0xf]
        %v854 = vld [vmem:[#allocation7 + $0x38] sm:$0xf]
        %v855 = vld [vmem:[#allocation7 + $0x3c] sm:$0xf]
        %v872 = vunpack.c.l.b16 %v840
        %v873 = vunpack.c.l.b16 %v841
        %v874 = vunpack.c.l.b16 %v842
        %v875 = vunpack.c.l.b16 %v843
        %v876 = vunpack.c.l.b16 %v844
        %v877 = vunpack.c.l.b16 %v845
        %v878 = vunpack.c.l.b16 %v846
        %v879 = vunpack.c.l.b16 %v847
        %v880 = vunpack.c.l.b16 %v848
        %v881 = vunpack.c.l.b16 %v849
        %v882 = vunpack.c.l.b16 %v850
        %v883 = vunpack.c.l.b16 %v851
        %v884 = vunpack.c.l.b16 %v852
        %v885 = vunpack.c.l.b16 %v853
        %v886 = vunpack.c.l.b16 %v854
        %v887 = vunpack.c.l.b16 %v855
        %v888 = vpack.c.b16 %v873, %v872
        %v889 = vpack.c.b16 %v875, %v874
        %v890 = vpack.c.b16 %v877, %v876
        %v891 = vpack.c.b16 %v879, %v878
        %v892 = vpack.c.b16 %v881, %v880
        %v893 = vpack.c.b16 %v883, %v882
        %v894 = vpack.c.b16 %v885, %v884
        %v895 = vpack.c.b16 %v887, %v886
        %904 = vmatprep.subr.bf16.mxu0 0
        %905 = vmatpush1.bf16.msra.mxu0 %v888
        %906 = vmatprep.subr.bf16.mxu0 0
        %907 = vmatpush1.bf16.msra.mxu0 %v889
        %908 = vmatprep.subr.bf16.mxu0 0
        %909 = vmatpush1.bf16.msra.mxu0 %v890
        %910 = vmatprep.subr.bf16.mxu0 0
        %911 = vmatpush1.bf16.msra.mxu0 %v891
        %912 = vmatprep.subr.bf16.mxu0 0
        %913 = vmatpush1.bf16.msra.mxu0 %v892
        %914 = vmatprep.subr.bf16.mxu0 0
        %915 = vmatpush1.bf16.msra.mxu0 %v893
        %916 = vmatprep.subr.bf16.mxu0 0
        %917 = vmatpush1.bf16.msra.mxu0 %v894
        %918 = vmatprep.subr.bf16.mxu0 0
        %919 = vmatpush1.bf16.msra.mxu0 %v895
        %920 = vmatprep.subr.bf16.mxu0 0
        %921 = vmatpush1.bf16.msra.mxu0 0
        %922 = vmatprep.subr.bf16.mxu0 0
        %923 = vmatpush1.bf16.msra.mxu0 0
        %924 = vmatprep.subr.bf16.mxu0 0
        %925 = vmatpush1.bf16.msra.mxu0 0
        %926 = vmatprep.subr.bf16.mxu0 0
        %927 = vmatpush1.bf16.msra.mxu0 0
        %928 = vmatprep.subr.bf16.mxu0 0
        %929 = vmatpush1.bf16.msra.mxu0 0
        %930 = vmatprep.subr.bf16.mxu0 0
        %931 = vmatpush1.bf16.msra.mxu0 0
        %932 = vmatprep.subr.bf16.mxu0 0
        %933 = vmatpush1.bf16.msra.mxu0 0
        %934 = vmatprep.subr.bf16.mxu0 0
        %935 = vmatpush1.bf16.msra.mxu0 0
        %936 = vmatprep.mubr.bf16.mxu0 0
        %937 = vmatmul.mubr.bf16.gmra.mrb[0].mxu0 %v839
        %v938 = vpop.f32.mrb[0].mxu0
        %v939 = vadd.f32 0.0, %v938
        %v940 = vpop.f32.mrb[0].mxu0
        %v941 = vpop.f32.mrb[0].mxu0
        %v942 = vadd.f32 0.0, %v941
        %v943 = vpop.f32.mrb[0].mxu0
        %944 = vdwg.mxu0
        %v945 = vadd.f32 %v385, %v939
        %v946 = vadd.f32 %v386, %v942
        %v947 = vld [vmem:[%s5] sm:$0x1]
        %v948 = vmul.f32 %v945, %v945
        %v949 = vmul.f32 %v946, %v946
        %950 = vadd.xlane.f32.xlu0 %v948
        %v951 = vpop.xlane.xlu0 %950
        %952 = vadd.xlane.f32.xlu0 %v949
        %v953 = vpop.xlane.xlu0 %952
        %v954 = vmul.f32 %v951, %v394
        %v955 = vmul.f32 %v953, %v394
        %v956 = vadd.f32 %v954, 1e-06
        %v957 = vadd.f32 %v955, 1e-06
        %v958 = vrsqrt.pop %v956
        %v959 = vrsqrt.pop %v957
        %v960 = vmul.f32 %v945, %v958
        %v961 = vmul.f32 %v946, %v959
        %v963 = vlaneseq
        %v964 = vshrl.u32 %v963, 7
        %v965 = vsub.s32 0, %v964
        %v966 = vrot.slane %v947, %v965
        %v968 = vmul.f32 %v960, %v966
        %v969 = vmul.f32 %v961, %v966
        %v970 = vpack.c.bf16 %v969, %v968
        %v971 = vld [vmem:[#allocation8] sm:$0xff]
        %v972 = vld [vmem:[#allocation8 + $0x8] sm:$0xff]
        %v973 = vld [vmem:[#allocation8 + $0x10] sm:$0xff]
        %v974 = vld [vmem:[#allocation8 + $0x18] sm:$0xff]
        %v975 = vld [vmem:[#allocation8 + $0x20] sm:$0xff]
        %v976 = vld [vmem:[#allocation8 + $0x28] sm:$0xff]
        %v977 = vld [vmem:[#allocation8 + $0x30] sm:$0xff]
        %v978 = vld [vmem:[#allocation8 + $0x38] sm:$0xff]
        %v979 = vld [vmem:[#allocation8 + $0x40] sm:$0xff]
        %v980 = vld [vmem:[#allocation8 + $0x48] sm:$0xff]
        %v981 = vld [vmem:[#allocation8 + $0x50] sm:$0xff]
        %v982 = vld [vmem:[#allocation8 + $0x58] sm:$0xff]
        %v983 = vld [vmem:[#allocation8 + $0x60] sm:$0xff]
        %v984 = vld [vmem:[#allocation8 + $0x68] sm:$0xff]
        %v985 = vld [vmem:[#allocation8 + $0x70] sm:$0xff]
        %v986 = vld [vmem:[#allocation8 + $0x78] sm:$0xff]
        %v987 = vld [vmem:[#allocation8 + $0x80] sm:$0xff]
        %v988 = vld [vmem:[#allocation8 + $0x88] sm:$0xff]
        %v989 = vld [vmem:[#allocation8 + $0x90] sm:$0xff]
        %v990 = vld [vmem:[#allocation8 + $0x98] sm:$0xff]
        %v991 = vld [vmem:[#allocation8 + $0xa0] sm:$0xff]
        %v992 = vld [vmem:[#allocation8 + $0xa8] sm:$0xff]
        %v993 = vld [vmem:[#allocation8 + $0xb0] sm:$0xff]
        %v994 = vld [vmem:[#allocation8 + $0xb8] sm:$0xff]
        %v995 = vld [vmem:[#allocation8 + $0xc0] sm:$0xff]
        %v996 = vld [vmem:[#allocation8 + $0xc8] sm:$0xff]
        %v997 = vld [vmem:[#allocation8 + $0xd0] sm:$0xff]
        %v998 = vld [vmem:[#allocation8 + $0xd8] sm:$0xff]
        %v999 = vld [vmem:[#allocation8 + $0xe0] sm:$0xff]
        %v1000 = vld [vmem:[#allocation8 + $0xe8] sm:$0xff]
        %v1001 = vld [vmem:[#allocation8 + $0xf0] sm:$0xff]
        %v1002 = vld [vmem:[#allocation8 + $0xf8] sm:$0xff]
        %v1003 = vld [vmem:[#allocation8 + $0x100] sm:$0xff]
        %v1004 = vld [vmem:[#allocation8 + $0x108] sm:$0xff]
        %v1005 = vld [vmem:[#allocation8 + $0x110] sm:$0xff]
        %v1006 = vld [vmem:[#allocation8 + $0x118] sm:$0xff]
        %v1007 = vld [vmem:[#allocation8 + $0x120] sm:$0xff]
        %v1008 = vld [vmem:[#allocation8 + $0x128] sm:$0xff]
        %v1009 = vld [vmem:[#allocation8 + $0x130] sm:$0xff]
        %v1010 = vld [vmem:[#allocation8 + $0x138] sm:$0xff]
        %v1011 = vld [vmem:[#allocation8 + $0x140] sm:$0xff]
        %v1012 = vld [vmem:[#allocation8 + $0x148] sm:$0xff]
        %v1013 = vld [vmem:[#allocation8 + $0x150] sm:$0xff]
        %v1014 = vld [vmem:[#allocation8 + $0x158] sm:$0xff]
        %v1015 = vld [vmem:[#allocation8 + $0x160] sm:$0xff]
        %v1016 = vld [vmem:[#allocation8 + $0x168] sm:$0xff]
        %v1017 = vld [vmem:[#allocation8 + $0x170] sm:$0xff]
        %v1018 = vld [vmem:[#allocation8 + $0x178] sm:$0xff]
        %v1019 = vld [vmem:[#allocation8 + $0x180] sm:$0xff]
        %v1020 = vld [vmem:[#allocation8 + $0x188] sm:$0xff]
        %v1021 = vld [vmem:[#allocation8 + $0x190] sm:$0xff]
        %v1022 = vld [vmem:[#allocation8 + $0x198] sm:$0xff]
        %v1023 = vld [vmem:[#allocation8 + $0x1a0] sm:$0xff]
        %v1024 = vld [vmem:[#allocation8 + $0x1a8] sm:$0xff]
        %v1025 = vld [vmem:[#allocation8 + $0x1b0] sm:$0xff]
        %v1026 = vld [vmem:[#allocation8 + $0x1b8] sm:$0xff]
        %v1027 = vld [vmem:[#allocation8 + $0x1c0] sm:$0xff]
        %v1028 = vld [vmem:[#allocation8 + $0x1c8] sm:$0xff]
        %v1029 = vld [vmem:[#allocation8 + $0x1d0] sm:$0xff]
        %v1030 = vld [vmem:[#allocation8 + $0x1d8] sm:$0xff]
        %v1031 = vld [vmem:[#allocation8 + $0x1e0] sm:$0xff]
        %v1032 = vld [vmem:[#allocation8 + $0x1e8] sm:$0xff]
        %v1033 = vld [vmem:[#allocation8 + $0x1f0] sm:$0xff]
        %v1034 = vld [vmem:[#allocation8 + $0x1f8] sm:$0xff]
        %v1099 = vunpack.c.l.b16 %v971
        %v1100 = vunpack.c.h.b16 %v971
        %v1101 = vunpack.c.l.b16 %v972
        %v1102 = vunpack.c.h.b16 %v972
        %v1103 = vunpack.c.l.b16 %v973
        %v1104 = vunpack.c.h.b16 %v973
        %v1105 = vunpack.c.l.b16 %v974
        %v1106 = vunpack.c.h.b16 %v974
        %v1107 = vunpack.c.l.b16 %v975
        %v1108 = vunpack.c.h.b16 %v975
        %v1109 = vunpack.c.l.b16 %v976
        %v1110 = vunpack.c.h.b16 %v976
        %v1111 = vunpack.c.l.b16 %v977
        %v1112 = vunpack.c.h.b16 %v977
        %v1113 = vunpack.c.l.b16 %v978
        %v1114 = vunpack.c.h.b16 %v978
        %v1115 = vunpack.c.l.b16 %v979
        %v1116 = vunpack.c.h.b16 %v979
        %v1117 = vunpack.c.l.b16 %v980
        %v1118 = vunpack.c.h.b16 %v980
        %v1119 = vunpack.c.l.b16 %v981
        %v1120 = vunpack.c.h.b16 %v981
        %v1121 = vunpack.c.l.b16 %v982
        %v1122 = vunpack.c.h.b16 %v982
        %v1123 = vunpack.c.l.b16 %v983
        %v1124 = vunpack.c.h.b16 %v983
        %v1125 = vunpack.c.l.b16 %v984
        %v1126 = vunpack.c.h.b16 %v984
        %v1127 = vunpack.c.l.b16 %v985
        %v1128 = vunpack.c.h.b16 %v985
        %v1129 = vunpack.c.l.b16 %v986
        %v1130 = vunpack.c.h.b16 %v986
        %v1131 = vunpack.c.l.b16 %v987
        %v1132 = vunpack.c.h.b16 %v987
        %v1133 = vunpack.c.l.b16 %v988
        %v1134 = vunpack.c.h.b16 %v988
        %v1135 = vunpack.c.l.b16 %v989
        %v1136 = vunpack.c.h.b16 %v989
        %v1137 = vunpack.c.l.b16 %v990
        %v1138 = vunpack.c.h.b16 %v990
        %v1139 = vunpack.c.l.b16 %v991
        %v1140 = vunpack.c.h.b16 %v991
        %v1141 = vunpack.c.l.b16 %v992
        %v1142 = vunpack.c.h.b16 %v992
        %v1143 = vunpack.c.l.b16 %v993
        %v1144 = vunpack.c.h.b16 %v993
        %v1145 = vunpack.c.l.b16 %v994
        %v1146 = vunpack.c.h.b16 %v994
        %v1147 = vunpack.c.l.b16 %v995
        %v1148 = vunpack.c.h.b16 %v995
        %v1149 = vunpack.c.l.b16 %v996
        %v1150 = vunpack.c.h.b16 %v996
        %v1151 = vunpack.c.l.b16 %v997
        %v1152 = vunpack.c.h.b16 %v997
        %v1153 = vunpack.c.l.b16 %v998
        %v1154 = vunpack.c.h.b16 %v998
        %v1155 = vunpack.c.l.b16 %v999
        %v1156 = vunpack.c.h.b16 %v999
        %v1157 = vunpack.c.l.b16 %v1000
        %v1158 = vunpack.c.h.b16 %v1000
        %v1159 = vunpack.c.l.b16 %v1001
        %v1160 = vunpack.c.h.b16 %v1001
        %v1161 = vunpack.c.l.b16 %v1002
        %v1162 = vunpack.c.h.b16 %v1002
        %v1163 = vunpack.c.l.b16 %v1003
        %v1164 = vunpack.c.h.b16 %v1003
        %v1165 = vunpack.c.l.b16 %v1004
        %v1166 = vunpack.c.h.b16 %v1004
        %v1167 = vunpack.c.l.b16 %v1005
        %v1168 = vunpack.c.h.b16 %v1005
        %v1169 = vunpack.c.l.b16 %v1006
        %v1170 = vunpack.c.h.b16 %v1006
        %v1171 = vunpack.c.l.b16 %v1007
        %v1172 = vunpack.c.h.b16 %v1007
        %v1173 = vunpack.c.l.b16 %v1008
        %v1174 = vunpack.c.h.b16 %v1008
        %v1175 = vunpack.c.l.b16 %v1009
        %v1176 = vunpack.c.h.b16 %v1009
        %v1177 = vunpack.c.l.b16 %v1010
        %v1178 = vunpack.c.h.b16 %v1010
        %v1179 = vunpack.c.l.b16 %v1011
        %v1180 = vunpack.c.h.b16 %v1011
        %v1181 = vunpack.c.l.b16 %v1012
        %v1182 = vunpack.c.h.b16 %v1012
        %v1183 = vunpack.c.l.b16 %v1013
        %v1184 = vunpack.c.h.b16 %v1013
        %v1185 = vunpack.c.l.b16 %v1014
        %v1186 = vunpack.c.h.b16 %v1014
        %v1187 = vunpack.c.l.b16 %v1015
        %v1188 = vunpack.c.h.b16 %v1015
        %v1189 = vunpack.c.l.b16 %v1016
        %v1190 = vunpack.c.h.b16 %v1016
        %v1191 = vunpack.c.l.b16 %v1017
        %v1192 = vunpack.c.h.b16 %v1017
        %v1193 = vunpack.c.l.b16 %v1018
        %v1194 = vunpack.c.h.b16 %v1018
        %v1195 = vunpack.c.l.b16 %v1019
        %v1196 = vunpack.c.h.b16 %v1019
        %v1197 = vunpack.c.l.b16 %v1020
        %v1198 = vunpack.c.h.b16 %v1020
        %v1199 = vunpack.c.l.b16 %v1021
        %v1200 = vunpack.c.h.b16 %v1021
        %v1201 = vunpack.c.l.b16 %v1022
        %v1202 = vunpack.c.h.b16 %v1022
        %v1203 = vunpack.c.l.b16 %v1023
        %v1204 = vunpack.c.h.b16 %v1023
        %v1205 = vunpack.c.l.b16 %v1024
        %v1206 = vunpack.c.h.b16 %v1024
        %v1207 = vunpack.c.l.b16 %v1025
        %v1208 = vunpack.c.h.b16 %v1025
        %v1209 = vunpack.c.l.b16 %v1026
        %v1210 = vunpack.c.h.b16 %v1026
        %v1211 = vunpack.c.l.b16 %v1027
        %v1212 = vunpack.c.h.b16 %v1027
        %v1213 = vunpack.c.l.b16 %v1028
        %v1214 = vunpack.c.h.b16 %v1028
        %v1215 = vunpack.c.l.b16 %v1029
        %v1216 = vunpack.c.h.b16 %v1029
        %v1217 = vunpack.c.l.b16 %v1030
        %v1218 = vunpack.c.h.b16 %v1030
        %v1219 = vunpack.c.l.b16 %v1031
        %v1220 = vunpack.c.h.b16 %v1031
        %v1221 = vunpack.c.l.b16 %v1032
        %v1222 = vunpack.c.h.b16 %v1032
        %v1223 = vunpack.c.l.b16 %v1033
        %v1224 = vunpack.c.h.b16 %v1033
        %v1225 = vunpack.c.l.b16 %v1034
        %v1226 = vunpack.c.h.b16 %v1034
        %v1227 = vpack.c.b16 %v1107, %v1099
        %v1228 = vpack.c.b16 %v1108, %v1100
        %v1229 = vpack.c.b16 %v1109, %v1101
        %v1230 = vpack.c.b16 %v1110, %v1102
        %v1231 = vpack.c.b16 %v1111, %v1103
        %v1232 = vpack.c.b16 %v1112, %v1104
        %v1233 = vpack.c.b16 %v1113, %v1105
        %v1234 = vpack.c.b16 %v1114, %v1106
        %v1235 = vpack.c.b16 %v1123, %v1115
        %v1236 = vpack.c.b16 %v1124, %v1116
        %v1237 = vpack.c.b16 %v1125, %v1117
        %v1238 = vpack.c.b16 %v1126, %v1118
        %v1239 = vpack.c.b16 %v1127, %v1119
        %v1240 = vpack.c.b16 %v1128, %v1120
        %v1241 = vpack.c.b16 %v1129, %v1121
        %v1242 = vpack.c.b16 %v1130, %v1122
        %v1243 = vpack.c.b16 %v1139, %v1131
        %v1244 = vpack.c.b16 %v1140, %v1132
        %v1245 = vpack.c.b16 %v1141, %v1133
        %v1246 = vpack.c.b16 %v1142, %v1134
        %v1247 = vpack.c.b16 %v1143, %v1135
        %v1248 = vpack.c.b16 %v1144, %v1136
        %v1249 = vpack.c.b16 %v1145, %v1137
        %v1250 = vpack.c.b16 %v1146, %v1138
        %v1251 = vpack.c.b16 %v1155, %v1147
        %v1252 = vpack.c.b16 %v1156, %v1148
        %v1253 = vpack.c.b16 %v1157, %v1149
        %v1254 = vpack.c.b16 %v1158, %v1150
        %v1255 = vpack.c.b16 %v1159, %v1151
        %v1256 = vpack.c.b16 %v1160, %v1152
        %v1257 = vpack.c.b16 %v1161, %v1153
        %v1258 = vpack.c.b16 %v1162, %v1154
        %v1259 = vpack.c.b16 %v1171, %v1163
        %v1260 = vpack.c.b16 %v1172, %v1164
        %v1261 = vpack.c.b16 %v1173, %v1165
        %v1262 = vpack.c.b16 %v1174, %v1166
        %v1263 = vpack.c.b16 %v1175, %v1167
        %v1264 = vpack.c.b16 %v1176, %v1168
        %v1265 = vpack.c.b16 %v1177, %v1169
        %v1266 = vpack.c.b16 %v1178, %v1170
        %v1267 = vpack.c.b16 %v1187, %v1179
        %v1268 = vpack.c.b16 %v1188, %v1180
        %v1269 = vpack.c.b16 %v1189, %v1181
        %v1270 = vpack.c.b16 %v1190, %v1182
        %v1271 = vpack.c.b16 %v1191, %v1183
        %v1272 = vpack.c.b16 %v1192, %v1184
        %v1273 = vpack.c.b16 %v1193, %v1185
        %v1274 = vpack.c.b16 %v1194, %v1186
        %v1275 = vpack.c.b16 %v1203, %v1195
        %v1276 = vpack.c.b16 %v1204, %v1196
        %v1277 = vpack.c.b16 %v1205, %v1197
        %v1278 = vpack.c.b16 %v1206, %v1198
        %v1279 = vpack.c.b16 %v1207, %v1199
        %v1280 = vpack.c.b16 %v1208, %v1200
        %v1281 = vpack.c.b16 %v1209, %v1201
        %v1282 = vpack.c.b16 %v1210, %v1202
        %v1283 = vpack.c.b16 %v1219, %v1211
        %v1284 = vpack.c.b16 %v1220, %v1212
        %v1285 = vpack.c.b16 %v1221, %v1213
        %v1286 = vpack.c.b16 %v1222, %v1214
        %v1287 = vpack.c.b16 %v1223, %v1215
        %v1288 = vpack.c.b16 %v1224, %v1216
        %v1289 = vpack.c.b16 %v1225, %v1217
        %v1290 = vpack.c.b16 %v1226, %v1218
        %1355 = vmatprep.subr.bf16.mxu0 %v1228
        %1356 = vmatpush1.bf16.msra.mxu0 %v1227
        %1357 = vmatprep.subr.bf16.mxu0 %v1236
        %1358 = vmatpush1.bf16.msra.mxu0 %v1235
        %1359 = vmatprep.subr.bf16.mxu0 %v1244
        %1360 = vmatpush1.bf16.msra.mxu0 %v1243
        %1361 = vmatprep.subr.bf16.mxu0 %v1252
        %1362 = vmatpush1.bf16.msra.mxu0 %v1251
        %1363 = vmatprep.subr.bf16.mxu0 %v1260
        %1364 = vmatpush1.bf16.msra.mxu0 %v1259
        %1365 = vmatprep.subr.bf16.mxu0 %v1268
        %1366 = vmatpush1.bf16.msra.mxu0 %v1267
        %1367 = vmatprep.subr.bf16.mxu0 %v1276
        %1368 = vmatpush1.bf16.msra.mxu0 %v1275
        %1369 = vmatprep.subr.bf16.mxu0 %v1284
        %1370 = vmatpush1.bf16.msra.mxu0 %v1283
        %1371 = vmatprep.subr.bf16.mxu0 0
        %1372 = vmatpush1.bf16.msra.mxu0 0
        %1373 = vmatprep.subr.bf16.mxu0 0
        %1374 = vmatpush1.bf16.msra.mxu0 0
        %1375 = vmatprep.subr.bf16.mxu0 0
        %1376 = vmatpush1.bf16.msra.mxu0 0
        %1377 = vmatprep.subr.bf16.mxu0 0
        %1378 = vmatpush1.bf16.msra.mxu0 0
        %1379 = vmatprep.subr.bf16.mxu0 0
        %1380 = vmatpush1.bf16.msra.mxu0 0
        %1381 = vmatprep.subr.bf16.mxu0 0
        %1382 = vmatpush1.bf16.msra.mxu0 0
        %1383 = vmatprep.subr.bf16.mxu0 0
        %1384 = vmatpush1.bf16.msra.mxu0 0
        %1385 = vmatprep.subr.bf16.mxu0 0
        %1386 = vmatpush1.bf16.msra.mxu0 0
        %1387 = vmatprep.mubr.bf16.mxu0 0
        %1388 = vmatmul.mubr.bf16.gmra.mrb[0].mxu0 %v970
        %v1389 = vpop.f32.mrb[0].mxu0
        %v1390 = vadd.f32 0.0, %v1389
        %v1391 = vpop.f32.mrb[0].mxu0
        %v1392 = vadd.f32 0.0, %v1391
        %v1393 = vpop.f32.mrb[0].mxu0
        %v1394 = vadd.f32 0.0, %v1393
        %v1395 = vpop.f32.mrb[0].mxu0
        %v1396 = vadd.f32 0.0, %v1395
        %1397 = vdwg.mxu0
        %1398 = vmatprep.subr.bf16.mxu0 %v1230
        %1399 = vmatpush1.bf16.msra.mxu0 %v1229
        %1400 = vmatprep.subr.bf16.mxu0 %v1238
        %1401 = vmatpush1.bf16.msra.mxu0 %v1237
        %1402 = vmatprep.subr.bf16.mxu0 %v1246
        %1403 = vmatpush1.bf16.msra.mxu0 %v1245
        %1404 = vmatprep.subr.bf16.mxu0 %v1254
        %1405 = vmatpush1.bf16.msra.mxu0 %v1253
        %1406 = vmatprep.subr.bf16.mxu0 %v1262
        %1407 = vmatpush1.bf16.msra.mxu0 %v1261
        %1408 = vmatprep.subr.bf16.mxu0 %v1270
        %1409 = vmatpush1.bf16.msra.mxu0 %v1269
        %1410 = vmatprep.subr.bf16.mxu0 %v1278
        %1411 = vmatpush1.bf16.msra.mxu0 %v1277
        %1412 = vmatprep.subr.bf16.mxu0 %v1286
        %1413 = vmatpush1.bf16.msra.mxu0 %v1285
        %1414 = vmatprep.subr.bf16.mxu0 0
        %1415 = vmatpush1.bf16.msra.mxu0 0
        %1416 = vmatprep.subr.bf16.mxu0 0
        %1417 = vmatpush1.bf16.msra.mxu0 0
        %1418 = vmatprep.subr.bf16.mxu0 0
        %1419 = vmatpush1.bf16.msra.mxu0 0
        %1420 = vmatprep.subr.bf16.mxu0 0
        %1421 = vmatpush1.bf16.msra.mxu0 0
        %1422 = vmatprep.subr.bf16.mxu0 0
        %1423 = vmatpush1.bf16.msra.mxu0 0
        %1424 = vmatprep.subr.bf16.mxu0 0
        %1425 = vmatpush1.bf16.msra.mxu0 0
        %1426 = vmatprep.subr.bf16.mxu0 0
        %1427 = vmatpush1.bf16.msra.mxu0 0
        %1428 = vmatprep.subr.bf16.mxu0 0
        %1429 = vmatpush1.bf16.msra.mxu0 0
        %1430 = vmatprep.mubr.bf16.mxu0 0
        %1431 = vmatmul.mubr.bf16.gmra.mrb[0].mxu0 %v970
        %v1432 = vpop.f32.mrb[0].mxu0
        %v1433 = vadd.f32 0.0, %v1432
        %v1434 = vpop.f32.mrb[0].mxu0
        %v1435 = vadd.f32 0.0, %v1434
        %v1436 = vpop.f32.mrb[0].mxu0
        %v1437 = vadd.f32 0.0, %v1436
        %v1438 = vpop.f32.mrb[0].mxu0
        %v1439 = vadd.f32 0.0, %v1438
        %1440 = vdwg.mxu0
        %1441 = vmatprep.subr.bf16.mxu0 %v1232
        %1442 = vmatpush1.bf16.msra.mxu0 %v1231
        %1443 = vmatprep.subr.bf16.mxu0 %v1240
        %1444 = vmatpush1.bf16.msra.mxu0 %v1239
        %1445 = vmatprep.subr.bf16.mxu0 %v1248
        %1446 = vmatpush1.bf16.msra.mxu0 %v1247
        %1447 = vmatprep.subr.bf16.mxu0 %v1256
        %1448 = vmatpush1.bf16.msra.mxu0 %v1255
        %1449 = vmatprep.subr.bf16.mxu0 %v1264
        %1450 = vmatpush1.bf16.msra.mxu0 %v1263
        %1451 = vmatprep.subr.bf16.mxu0 %v1272
        %1452 = vmatpush1.bf16.msra.mxu0 %v1271
        %1453 = vmatprep.subr.bf16.mxu0 %v1280
        %1454 = vmatpush1.bf16.msra.mxu0 %v1279
        %1455 = vmatprep.subr.bf16.mxu0 %v1288
        %1456 = vmatpush1.bf16.msra.mxu0 %v1287
        %1457 = vmatprep.subr.bf16.mxu0 0
        %1458 = vmatpush1.bf16.msra.mxu0 0
        %1459 = vmatprep.subr.bf16.mxu0 0
        %1460 = vmatpush1.bf16.msra.mxu0 0
        %1461 = vmatprep.subr.bf16.mxu0 0
        %1462 = vmatpush1.bf16.msra.mxu0 0
        %1463 = vmatprep.subr.bf16.mxu0 0
        %1464 = vmatpush1.bf16.msra.mxu0 0
        %1465 = vmatprep.subr.bf16.mxu0 0
        %1466 = vmatpush1.bf16.msra.mxu0 0
        %1467 = vmatprep.subr.bf16.mxu0 0
        %1468 = vmatpush1.bf16.msra.mxu0 0
        %1469 = vmatprep.subr.bf16.mxu0 0
        %1470 = vmatpush1.bf16.msra.mxu0 0
        %1471 = vmatprep.subr.bf16.mxu0 0
        %1472 = vmatpush1.bf16.msra.mxu0 0
        %1473 = vmatprep.mubr.bf16.mxu0 0
        %1474 = vmatmul.mubr.bf16.gmra.mrb[0].mxu0 %v970
        %v1475 = vpop.f32.mrb[0].mxu0
        %v1476 = vadd.f32 0.0, %v1475
        %v1477 = vpop.f32.mrb[0].mxu0
        %v1478 = vadd.f32 0.0, %v1477
        %v1479 = vpop.f32.mrb[0].mxu0
        %v1480 = vadd.f32 0.0, %v1479
        %v1481 = vpop.f32.mrb[0].mxu0
        %v1482 = vadd.f32 0.0, %v1481
        %1483 = vdwg.mxu0
        %1484 = vmatprep.subr.bf16.mxu0 %v1234
        %1485 = vmatpush1.bf16.msra.mxu0 %v1233
        %1486 = vmatprep.subr.bf16.mxu0 %v1242
        %1487 = vmatpush1.bf16.msra.mxu0 %v1241
        %1488 = vmatprep.subr.bf16.mxu0 %v1250
        %1489 = vmatpush1.bf16.msra.mxu0 %v1249
        %1490 = vmatprep.subr.bf16.mxu0 %v1258
        %1491 = vmatpush1.bf16.msra.mxu0 %v1257
        %1492 = vmatprep.subr.bf16.mxu0 %v1266
        %1493 = vmatpush1.bf16.msra.mxu0 %v1265
        %1494 = vmatprep.subr.bf16.mxu0 %v1274
        %1495 = vmatpush1.bf16.msra.mxu0 %v1273
        %1496 = vmatprep.subr.bf16.mxu0 %v1282
        %1497 = vmatpush1.bf16.msra.mxu0 %v1281
        %1498 = vmatprep.subr.bf16.mxu0 %v1290
        %1499 = vmatpush1.bf16.msra.mxu0 %v1289
        %1500 = vmatprep.subr.bf16.mxu0 0
        %1501 = vmatpush1.bf16.msra.mxu0 0
        %1502 = vmatprep.subr.bf16.mxu0 0
        %1503 = vmatpush1.bf16.msra.mxu0 0
        %1504 = vmatprep.subr.bf16.mxu0 0
        %1505 = vmatpush1.bf16.msra.mxu0 0
        %1506 = vmatprep.subr.bf16.mxu0 0
        %1507 = vmatpush1.bf16.msra.mxu0 0
        %1508 = vmatprep.subr.bf16.mxu0 0
        %1509 = vmatpush1.bf16.msra.mxu0 0
        %1510 = vmatprep.subr.bf16.mxu0 0
        %1511 = vmatpush1.bf16.msra.mxu0 0
        %1512 = vmatprep.subr.bf16.mxu0 0
        %1513 = vmatpush1.bf16.msra.mxu0 0
        %1514 = vmatprep.subr.bf16.mxu0 0
        %1515 = vmatpush1.bf16.msra.mxu0 0
        %1516 = vmatprep.mubr.bf16.mxu0 0
        %1517 = vmatmul.mubr.bf16.gmra.mrb[0].mxu0 %v970
        %v1518 = vpop.f32.mrb[0].mxu0
        %v1519 = vadd.f32 0.0, %v1518
        %v1520 = vpop.f32.mrb[0].mxu0
        %v1521 = vadd.f32 0.0, %v1520
        %v1522 = vpop.f32.mrb[0].mxu0
        %v1523 = vadd.f32 0.0, %v1522
        %v1524 = vpop.f32.mrb[0].mxu0
        %v1525 = vadd.f32 0.0, %v1524
        %1526 = vdwg.mxu0
        %v1527 = vxor.u32 %v1390, 2147483648
        %v1528 = vxor.u32 %v1392, 2147483648
        %v1529 = vxor.u32 %v1433, 2147483648
        %v1530 = vxor.u32 %v1435, 2147483648
        %v1531 = vxor.u32 %v1394, 2147483648
        %v1532 = vxor.u32 %v1396, 2147483648
        %v1533 = vxor.u32 %v1437, 2147483648
        %v1534 = vxor.u32 %v1439, 2147483648
        %v1535 = vmul.f32 %v1527, 1.442695
        %v1536 = vpow.pop %v1535
        %v1537 = vmul.f32 %v1528, 1.442695
        %v1538 = vpow.pop %v1537
        %v1539 = vmul.f32 %v1529, 1.442695
        %v1540 = vpow.pop %v1539
        %v1541 = vmul.f32 %v1530, 1.442695
        %v1542 = vpow.pop %v1541
        %v1543 = vmul.f32 %v1531, 1.442695
        %v1544 = vpow.pop %v1543
        %v1545 = vmul.f32 %v1532, 1.442695
        %v1546 = vpow.pop %v1545
        %v1547 = vmul.f32 %v1533, 1.442695
        %v1548 = vpow.pop %v1547
        %v1549 = vmul.f32 %v1534, 1.442695
        %v1550 = vpow.pop %v1549
        %v1551 = vadd.f32 %v1536, 1.0
        %v1552 = vadd.f32 %v1538, 1.0
        %v1553 = vadd.f32 %v1540, 1.0
        %v1554 = vadd.f32 %v1542, 1.0
        %v1555 = vadd.f32 %v1544, 1.0
        %v1556 = vadd.f32 %v1546, 1.0
        %v1557 = vadd.f32 %v1548, 1.0
        %v1558 = vadd.f32 %v1550, 1.0
        %v1559 = vrcp.pop %v1551
        %v1560 = vmul.f32 1.0, %v1559
        %v1561 = vrcp.pop %v1552
        %v1562 = vmul.f32 1.0, %v1561
        %v1563 = vrcp.pop %v1553
        %v1564 = vmul.f32 1.0, %v1563
        %v1565 = vrcp.pop %v1554
        %v1566 = vmul.f32 1.0, %v1565
        %v1567 = vrcp.pop %v1555
        %v1568 = vmul.f32 1.0, %v1567
        %v1569 = vrcp.pop %v1556
        %v1570 = vmul.f32 1.0, %v1569
        %v1571 = vrcp.pop %v1557
        %v1572 = vmul.f32 1.0, %v1571
        %v1573 = vrcp.pop %v1558
        %v1574 = vmul.f32 1.0, %v1573
        %v1575 = vmul.f32 %v1390, %v1560
        %v1576 = vmul.f32 %v1392, %v1562
        %v1577 = vmul.f32 %v1433, %v1564
        %v1578 = vmul.f32 %v1435, %v1566
        %v1579 = vmul.f32 %v1394, %v1568
        %v1580 = vmul.f32 %v1396, %v1570
        %v1581 = vmul.f32 %v1437, %v1572
        %v1582 = vmul.f32 %v1439, %v1574
        %v1583 = vmul.f32 %v1575, %v1476
        %v1584 = vmul.f32 %v1576, %v1478
        %v1585 = vmul.f32 %v1577, %v1519
        %v1586 = vmul.f32 %v1578, %v1521
        %v1587 = vmul.f32 %v1579, %v1480
        %v1588 = vmul.f32 %v1580, %v1482
        %v1589 = vmul.f32 %v1581, %v1523
        %v1590 = vmul.f32 %v1582, %v1525
        %v1591 = vpack.c.bf16 %v1587, %v1583
        %v1592 = vpack.c.bf16 %v1588, %v1584
        %v1593 = vpack.c.bf16 %v1589, %v1585
        %v1594 = vpack.c.bf16 %v1590, %v1586
        %v1595 = vld [vmem:[#allocation10] sm:$0xf]
        %v1596 = vld [vmem:[#allocation10 + $0x4] sm:$0xf]
        %v1597 = vld [vmem:[#allocation10 + $0x8] sm:$0xf]
        %v1598 = vld [vmem:[#allocation10 + $0xc] sm:$0xf]
        %v1599 = vld [vmem:[#allocation10 + $0x10] sm:$0xf]
        %v1600 = vld [vmem:[#allocation10 + $0x14] sm:$0xf]
        %v1601 = vld [vmem:[#allocation10 + $0x18] sm:$0xf]
        %v1602 = vld [vmem:[#allocation10 + $0x1c] sm:$0xf]
        %v1603 = vld [vmem:[#allocation10 + $0x20] sm:$0xf]
        %v1604 = vld [vmem:[#allocation10 + $0x24] sm:$0xf]
        %v1605 = vld [vmem:[#allocation10 + $0x28] sm:$0xf]
        %v1606 = vld [vmem:[#allocation10 + $0x2c] sm:$0xf]
        %v1607 = vld [vmem:[#allocation10 + $0x30] sm:$0xf]
        %v1608 = vld [vmem:[#allocation10 + $0x34] sm:$0xf]
        %v1609 = vld [vmem:[#allocation10 + $0x38] sm:$0xf]
        %v1610 = vld [vmem:[#allocation10 + $0x3c] sm:$0xf]
        %v1611 = vld [vmem:[#allocation10 + $0x40] sm:$0xf]
        %v1612 = vld [vmem:[#allocation10 + $0x44] sm:$0xf]
        %v1613 = vld [vmem:[#allocation10 + $0x48] sm:$0xf]
        %v1614 = vld [vmem:[#allocation10 + $0x4c] sm:$0xf]
        %v1615 = vld [vmem:[#allocation10 + $0x50] sm:$0xf]
        %v1616 = vld [vmem:[#allocation10 + $0x54] sm:$0xf]
        %v1617 = vld [vmem:[#allocation10 + $0x58] sm:$0xf]
        %v1618 = vld [vmem:[#allocation10 + $0x5c] sm:$0xf]
        %v1619 = vld [vmem:[#allocation10 + $0x60] sm:$0xf]
        %v1620 = vld [vmem:[#allocation10 + $0x64] sm:$0xf]
        %v1621 = vld [vmem:[#allocation10 + $0x68] sm:$0xf]
        %v1622 = vld [vmem:[#allocation10 + $0x6c] sm:$0xf]
        %v1623 = vld [vmem:[#allocation10 + $0x70] sm:$0xf]
        %v1624 = vld [vmem:[#allocation10 + $0x74] sm:$0xf]
        %v1625 = vld [vmem:[#allocation10 + $0x78] sm:$0xf]
        %v1626 = vld [vmem:[#allocation10 + $0x7c] sm:$0xf]
        %v1627 = vld [vmem:[#allocation10 + $0x80] sm:$0xf]
        %v1628 = vld [vmem:[#allocation10 + $0x84] sm:$0xf]
        %v1629 = vld [vmem:[#allocation10 + $0x88] sm:$0xf]
        %v1630 = vld [vmem:[#allocation10 + $0x8c] sm:$0xf]
        %v1631 = vld [vmem:[#allocation10 + $0x90] sm:$0xf]
        %v1632 = vld [vmem:[#allocation10 + $0x94] sm:$0xf]
        %v1633 = vld [vmem:[#allocation10 + $0x98] sm:$0xf]
        %v1634 = vld [vmem:[#allocation10 + $0x9c] sm:$0xf]
        %v1635 = vld [vmem:[#allocation10 + $0xa0] sm:$0xf]
        %v1636 = vld [vmem:[#allocation10 + $0xa4] sm:$0xf]
        %v1637 = vld [vmem:[#allocation10 + $0xa8] sm:$0xf]
        %v1638 = vld [vmem:[#allocation10 + $0xac] sm:$0xf]
        %v1639 = vld [vmem:[#allocation10 + $0xb0] sm:$0xf]
        %v1640 = vld [vmem:[#allocation10 + $0xb4] sm:$0xf]
        %v1641 = vld [vmem:[#allocation10 + $0xb8] sm:$0xf]
        %v1642 = vld [vmem:[#allocation10 + $0xbc] sm:$0xf]
        %v1643 = vld [vmem:[#allocation10 + $0xc0] sm:$0xf]
        %v1644 = vld [vmem:[#allocation10 + $0xc4] sm:$0xf]
        %v1645 = vld [vmem:[#allocation10 + $0xc8] sm:$0xf]
        %v1646 = vld [vmem:[#allocation10 + $0xcc] sm:$0xf]
        %v1647 = vld [vmem:[#allocation10 + $0xd0] sm:$0xf]
        %v1648 = vld [vmem:[#allocation10 + $0xd4] sm:$0xf]
        %v1649 = vld [vmem:[#allocation10 + $0xd8] sm:$0xf]
        %v1650 = vld [vmem:[#allocation10 + $0xdc] sm:$0xf]
        %v1651 = vld [vmem:[#allocation10 + $0xe0] sm:$0xf]
        %v1652 = vld [vmem:[#allocation10 + $0xe4] sm:$0xf]
        %v1653 = vld [vmem:[#allocation10 + $0xe8] sm:$0xf]
        %v1654 = vld [vmem:[#allocation10 + $0xec] sm:$0xf]
        %v1655 = vld [vmem:[#allocation10 + $0xf0] sm:$0xf]
        %v1656 = vld [vmem:[#allocation10 + $0xf4] sm:$0xf]
        %v1657 = vld [vmem:[#allocation10 + $0xf8] sm:$0xf]
        %v1658 = vld [vmem:[#allocation10 + $0xfc] sm:$0xf]
        %v1723 = vunpack.c.l.b16 %v1595
        %v1724 = vunpack.c.l.b16 %v1596
        %v1725 = vunpack.c.l.b16 %v1597
        %v1726 = vunpack.c.l.b16 %v1598
        %v1727 = vunpack.c.l.b16 %v1599
        %v1728 = vunpack.c.l.b16 %v1600
        %v1729 = vunpack.c.l.b16 %v1601
        %v1730 = vunpack.c.l.b16 %v1602
        %v1731 = vunpack.c.l.b16 %v1603
        %v1732 = vunpack.c.l.b16 %v1604
        %v1733 = vunpack.c.l.b16 %v1605
        %v1734 = vunpack.c.l.b16 %v1606
        %v1735 = vunpack.c.l.b16 %v1607
        %v1736 = vunpack.c.l.b16 %v1608
        %v1737 = vunpack.c.l.b16 %v1609
        %v1738 = vunpack.c.l.b16 %v1610
        %v1739 = vunpack.c.l.b16 %v1611
        %v1740 = vunpack.c.l.b16 %v1612
        %v1741 = vunpack.c.l.b16 %v1613
        %v1742 = vunpack.c.l.b16 %v1614
        %v1743 = vunpack.c.l.b16 %v1615
        %v1744 = vunpack.c.l.b16 %v1616
        %v1745 = vunpack.c.l.b16 %v1617
        %v1746 = vunpack.c.l.b16 %v1618
        %v1747 = vunpack.c.l.b16 %v1619
        %v1748 = vunpack.c.l.b16 %v1620
        %v1749 = vunpack.c.l.b16 %v1621
        %v1750 = vunpack.c.l.b16 %v1622
        %v1751 = vunpack.c.l.b16 %v1623
        %v1752 = vunpack.c.l.b16 %v1624
        %v1753 = vunpack.c.l.b16 %v1625
        %v1754 = vunpack.c.l.b16 %v1626
        %v1755 = vunpack.c.l.b16 %v1627
        %v1756 = vunpack.c.l.b16 %v1628
        %v1757 = vunpack.c.l.b16 %v1629
        %v1758 = vunpack.c.l.b16 %v1630
        %v1759 = vunpack.c.l.b16 %v1631
        %v1760 = vunpack.c.l.b16 %v1632
        %v1761 = vunpack.c.l.b16 %v1633
        %v1762 = vunpack.c.l.b16 %v1634
        %v1763 = vunpack.c.l.b16 %v1635
        %v1764 = vunpack.c.l.b16 %v1636
        %v1765 = vunpack.c.l.b16 %v1637
        %v1766 = vunpack.c.l.b16 %v1638
        %v1767 = vunpack.c.l.b16 %v1639
        %v1768 = vunpack.c.l.b16 %v1640
        %v1769 = vunpack.c.l.b16 %v1641
        %v1770 = vunpack.c.l.b16 %v1642
        %v1771 = vunpack.c.l.b16 %v1643
        %v1772 = vunpack.c.l.b16 %v1644
        %v1773 = vunpack.c.l.b16 %v1645
        %v1774 = vunpack.c.l.b16 %v1646
        %v1775 = vunpack.c.l.b16 %v1647
        %v1776 = vunpack.c.l.b16 %v1648
        %v1777 = vunpack.c.l.b16 %v1649
        %v1778 = vunpack.c.l.b16 %v1650
        %v1779 = vunpack.c.l.b16 %v1651
        %v1780 = vunpack.c.l.b16 %v1652
        %v1781 = vunpack.c.l.b16 %v1653
        %v1782 = vunpack.c.l.b16 %v1654
        %v1783 = vunpack.c.l.b16 %v1655
        %v1784 = vunpack.c.l.b16 %v1656
        %v1785 = vunpack.c.l.b16 %v1657
        %v1786 = vunpack.c.l.b16 %v1658
        %v1787 = vpack.c.b16 %v1724, %v1723
        %v1788 = vpack.c.b16 %v1726, %v1725
        %v1789 = vpack.c.b16 %v1728, %v1727
        %v1790 = vpack.c.b16 %v1730, %v1729
        %v1791 = vpack.c.b16 %v1732, %v1731
        %v1792 = vpack.c.b16 %v1734, %v1733
        %v1793 = vpack.c.b16 %v1736, %v1735
        %v1794 = vpack.c.b16 %v1738, %v1737
        %v1795 = vpack.c.b16 %v1740, %v1739
        %v1796 = vpack.c.b16 %v1742, %v1741
        %v1797 = vpack.c.b16 %v1744, %v1743
        %v1798 = vpack.c.b16 %v1746, %v1745
        %v1799 = vpack.c.b16 %v1748, %v1747
        %v1800 = vpack.c.b16 %v1750, %v1749
        %v1801 = vpack.c.b16 %v1752, %v1751
        %v1802 = vpack.c.b16 %v1754, %v1753
        %v1803 = vpack.c.b16 %v1756, %v1755
        %v1804 = vpack.c.b16 %v1758, %v1757
        %v1805 = vpack.c.b16 %v1760, %v1759
        %v1806 = vpack.c.b16 %v1762, %v1761
        %v1807 = vpack.c.b16 %v1764, %v1763
        %v1808 = vpack.c.b16 %v1766, %v1765
        %v1809 = vpack.c.b16 %v1768, %v1767
        %v1810 = vpack.c.b16 %v1770, %v1769
        %v1811 = vpack.c.b16 %v1772, %v1771
        %v1812 = vpack.c.b16 %v1774, %v1773
        %v1813 = vpack.c.b16 %v1776, %v1775
        %v1814 = vpack.c.b16 %v1778, %v1777
        %v1815 = vpack.c.b16 %v1780, %v1779
        %v1816 = vpack.c.b16 %v1782, %v1781
        %v1817 = vpack.c.b16 %v1784, %v1783
        %v1818 = vpack.c.b16 %v1786, %v1785
        %1851 = vmatprep.subr.bf16.mxu0 0
        %1852 = vmatpush1.bf16.msra.mxu0 %v1787
        %1853 = vmatprep.subr.bf16.mxu0 0
        %1854 = vmatpush1.bf16.msra.mxu0 %v1788
        %1855 = vmatprep.subr.bf16.mxu0 0
        %1856 = vmatpush1.bf16.msra.mxu0 %v1789
        %1857 = vmatprep.subr.bf16.mxu0 0
        %1858 = vmatpush1.bf16.msra.mxu0 %v1790
        %1859 = vmatprep.subr.bf16.mxu0 0
        %1860 = vmatpush1.bf16.msra.mxu0 %v1791
        %1861 = vmatprep.subr.bf16.mxu0 0
        %1862 = vmatpush1.bf16.msra.mxu0 %v1792
        %1863 = vmatprep.subr.bf16.mxu0 0
        %1864 = vmatpush1.bf16.msra.mxu0 %v1793
        %1865 = vmatprep.subr.bf16.mxu0 0
        %1866 = vmatpush1.bf16.msra.mxu0 %v1794
        %1867 = vmatprep.subr.bf16.mxu0 0
        %1868 = vmatpush1.bf16.msra.mxu0 %v1795
        %1869 = vmatprep.subr.bf16.mxu0 0
        %1870 = vmatpush1.bf16.msra.mxu0 %v1796
        %1871 = vmatprep.subr.bf16.mxu0 0
        %1872 = vmatpush1.bf16.msra.mxu0 %v1797
        %1873 = vmatprep.subr.bf16.mxu0 0
        %1874 = vmatpush1.bf16.msra.mxu0 %v1798
        %1875 = vmatprep.subr.bf16.mxu0 0
        %1876 = vmatpush1.bf16.msra.mxu0 %v1799
        %1877 = vmatprep.subr.bf16.mxu0 0
        %1878 = vmatpush1.bf16.msra.mxu0 %v1800
        %1879 = vmatprep.subr.bf16.mxu0 0
        %1880 = vmatpush1.bf16.msra.mxu0 %v1801
        %1881 = vmatprep.subr.bf16.mxu0 0
        %1882 = vmatpush1.bf16.msra.mxu0 %v1802
        %1883 = vmatprep.mubr.bf16.mxu0 %v1592
        %1884 = vmatmul.mubr.bf16.gmra.mrb[0].mxu0 %v1591
        %v1885 = vpop.f32.mrb[0].mxu0
        %v1886 = vadd.f32 0.0, %v1885
        %v1887 = vpop.f32.mrb[0].mxu0
        %v1888 = vpop.f32.mrb[0].mxu0
        %v1889 = vadd.f32 0.0, %v1888
        %v1890 = vpop.f32.mrb[0].mxu0
        %1891 = vdwg.mxu0
        %1892 = vmatprep.subr.bf16.mxu0 0
        %1893 = vmatpush1.bf16.msra.mxu0 %v1803
        %1894 = vmatprep.subr.bf16.mxu0 0
        %1895 = vmatpush1.bf16.msra.mxu0 %v1804
        %1896 = vmatprep.subr.bf16.mxu0 0
        %1897 = vmatpush1.bf16.msra.mxu0 %v1805
        %1898 = vmatprep.subr.bf16.mxu0 0
        %1899 = vmatpush1.bf16.msra.mxu0 %v1806
        %1900 = vmatprep.subr.bf16.mxu0 0
        %1901 = vmatpush1.bf16.msra.mxu0 %v1807
        %1902 = vmatprep.subr.bf16.mxu0 0
        %1903 = vmatpush1.bf16.msra.mxu0 %v1808
        %1904 = vmatprep.subr.bf16.mxu0 0
        %1905 = vmatpush1.bf16.msra.mxu0 %v1809
        %1906 = vmatprep.subr.bf16.mxu0 0
        %1907 = vmatpush1.bf16.msra.mxu0 %v1810
        %1908 = vmatprep.subr.bf16.mxu0 0
        %1909 = vmatpush1.bf16.msra.mxu0 %v1811
        %1910 = vmatprep.subr.bf16.mxu0 0
        %1911 = vmatpush1.bf16.msra.mxu0 %v1812
        %1912 = vmatprep.subr.bf16.mxu0 0
        %1913 = vmatpush1.bf16.msra.mxu0 %v1813
        %1914 = vmatprep.subr.bf16.mxu0 0
        %1915 = vmatpush1.bf16.msra.mxu0 %v1814
        %1916 = vmatprep.subr.bf16.mxu0 0
        %1917 = vmatpush1.bf16.msra.mxu0 %v1815
        %1918 = vmatprep.subr.bf16.mxu0 0
        %1919 = vmatpush1.bf16.msra.mxu0 %v1816
        %1920 = vmatprep.subr.bf16.mxu0 0
        %1921 = vmatpush1.bf16.msra.mxu0 %v1817
        %1922 = vmatprep.subr.bf16.mxu0 0
        %1923 = vmatpush1.bf16.msra.mxu0 %v1818
        %1924 = vmatprep.mubr.bf16.mxu0 %v1594
        %1925 = vmatmul.mubr.bf16.gmra.mrb[0].mxu0 %v1593
        %v1926 = vpop.f32.mrb[0].mxu0
        %v1927 = vadd.f32 %v1886, %v1926
        %v1928 = vpop.f32.mrb[0].mxu0
        %v1929 = vpop.f32.mrb[0].mxu0
        %v1930 = vadd.f32 %v1889, %v1929
        %v1931 = vpop.f32.mrb[0].mxu0
        %1932 = vdwg.mxu0
        %v1933 = vadd.f32 %v945, %v1927
        %v1934 = vadd.f32 %v946, %v1930
        %1935 = vst [vmem:[%s381] sm:$0xff] %v1933
        %1936 = vst [vmem:[%s381 + $0x8] sm:$0xff] %v1934
        %s1937 = sand.u32 %s208, 1
        %s1938 = scalar_lea.sflag [#allocation4], %s1937
        %s1939 = sand.u32 %s208, 1
        %s1940 = smul.addr %s1939, 16
        %s1941 = scalar_lea.vmem [#allocation11], %s1940
        // Predicated region
        $region73: #{tpu_custom_call.1} parent=51 // pred_check
          %p1942 = pneg %p218
        $region74: #{tpu_custom_call.1} parent=51 // pred_check_branch
          %1944 = sbr.rel (%p1942) target = $region76
        $region75: #{tpu_custom_call.1} parent=51 // pred_region
          %s1945 = smul.u32 2, %s27
          %s1947 = ssub.s32 256, 256
          %1948 = vsyncadd %s1938, %s1947
          %s1949 = smul.addr %s1945, 128
          %s1950 = scalar_lea.hbm %s8, %s1949
          %s1951 = sshll.u32 %s1941, 4
          %s1952 = int_to_ptr.vmem [resolvable:$true] %s1951
          %1957 = dma.vmem_to_hbm [thread:$0]  %s1952, 256, %s1950, %s1938, 128, 128, 8
        $region76: #{tpu_custom_call.1} parent=51 // pred_fallthru
          _
      $region52: #{tpu_custom_call.1} parent=5 // pred_fallthru
        _
      %p1958 = scmp.le.s32.totalorder 2, %s22
      // Predicated region
      $region77: #{tpu_custom_call.1} parent=5 // pred_check
        %p1959 = pneg %p1958
      $region78: #{tpu_custom_call.1} parent=5 // pred_check_branch
        %1961 = sbr.rel (%p1959) target = $region80
      $region79: #{tpu_custom_call.1} parent=5 // pred_region
        %s1962 = ssub.s32 %s22, 2
        // Predicated region
        $region81: #{tpu_custom_call.1} parent=79 // pred_check
          %p1963 = pneg %p224
        $region82: #{tpu_custom_call.1} parent=79 // pred_check_branch
          %1965 = sbr.rel (%p1963) target = $region84
        $region83: #{tpu_custom_call.1} parent=79 // pred_region
          %s1966 = sand.u32 %s209, 1
          %s1967 = scalar_lea.sflag [#allocation4], %s1966
          %s1968 = sand.u32 %s209, 1
          %s1969 = smul.addr %s1968, 16
          %s1970 = scalar_lea.vmem [#allocation11], %s1969
          %1971 = dma.done %s1967, 256
        $region84: #{tpu_custom_call.1} parent=79 // pred_fallthru
          _
      $region80: #{tpu_custom_call.1} parent=5 // pred_fallthru
        _
    $region6: #{tpu_custom_call.1} parent=1 // loop_footer
      %s26 = sadd.s32 1, %s22
    $region7: #{tpu_custom_call.1} parent=1 // loop_footer_branch
      %21 = sbr.rel target = $region3
    $region8: #{tpu_custom_call.1} parent=1 // loop_exit
      _
    %1972 = vsyncpa [#allocation3], 1
    %s1973 = scalar_lea.sflag [#allocation3], 1
    %1974 = vsyncpa %s1973, 1
    %1975 = vsyncpa [#allocation6], 1
    %1976 = vsyncpa [#allocation9], 1
    %1977 = vsyncpa [#allocation4], 1
    %s1978 = scalar_lea.sflag [#allocation4], 1
    %1979 = vsyncpa %s1978, 1

// kernel: tpu_custom_call.1
$region0: #{tpu_custom_call.1}
  #allocation0 [shape = 'u32[]', space=smem, size = 0x4, offset = 0x4, fixed_abs, tag = 'smem constant byte address 0x4 - core index']
  #allocation1 [shape = 'u32[144,128]{1,0:T(1,128)}', space=vmem, size = 0x12000, scoped, tag = 'internal scratch']
  %s0 = inlined_call_operand.hbm [shape: f32[32,128], index: 0, kind: input, shape index: {}]
  %s1 = inlined_call_operand.vmem [shape: f32[1,128], index: 1, kind: input, shape index: {}]
  %s2 = inlined_call_operand.hbm [shape: bf16[128,384], index: 2, kind: input, shape index: {}]
  %s3 = inlined_call_operand.vmem [shape: f32[1,128], index: 3, kind: input, shape index: {}]
  %s4 = inlined_call_operand.hbm [shape: bf16[128,128], index: 4, kind: input, shape index: {}]
  %s5 = inlined_call_operand.vmem [shape: f32[1,128], index: 5, kind: input, shape index: {}]
  %s6 = inlined_call_operand.hbm [shape: bf16[128,1024], index: 6, kind: input, shape index: {}]
  %s7 = inlined_call_operand.hbm [shape: bf16[512,128], index: 7, kind: input, shape index: {}]
  %s8 = inlined_call_operand.hbm [shape: f32[32,128], index: 8, kind: output, shape index: {}]
  %s9 = sld [smem:[#allocation0]]
  $region85: #{tpu_custom_call.1} parent=0
    _
  %s11 = ssub.s32 1, %s9
  %s12 = scalar_select 0, %s11, %s9
  $region1: #{tpu_custom_call.1} parent=0
    #allocation2 [shape = 'u8[16384]{0}', space=vmem, size = 0x4000, scoped, tag = 'input window, operand 0']
    #allocation3 [shape = 's32[2]{0}', space=sflag, size = 0x8, scoped, tag = 'scoped memory for tpu_custom_call.1']
    #allocation4 [shape = 's32[2]{0}', space=sflag, size = 0x8, scoped, tag = 'scoped memory for tpu_custom_call.1']
    #allocation5 [shape = 'u8[98304]{0}', space=vmem, size = 0x18000, scoped, tag = 'input window, operand 2, single buffered']
    #allocation6 [shape = 's32[1]{0}', space=sflag, size = 0x4, scoped, tag = 'scoped memory for tpu_custom_call.1']
    #allocation7 [shape = 'u8[32768]{0}', space=vmem, size = 0x8000, scoped, tag = 'input window, operand 4, single buffered']
    #allocation8 [shape = 'u8[262144]{0}', space=vmem, size = 0x40000, scoped, tag = 'input window, operand 6, single buffered']
    #allocation9 [shape = 's32[1]{0}', space=sflag, size = 0x4, scoped, tag = 'scoped memory for tpu_custom_call.1']
    #allocation10 [shape = 'u8[131072]{0}', space=vmem, size = 0x20000, scoped, tag = 'input window, operand 7, single buffered']
    #allocation11 [shape = 'u8[16384]{0}', space=vmem, size = 0x4000, scoped, tag = 'output window, operand 0']
    %13 = vsyncpa [#allocation3], 0
    %s14 = scalar_lea.sflag [#allocation3], 1
    %15 = vsyncpa %s14, 0
    %16 = vsyncpa [#allocation6], 0
    %17 = vsyncpa [#allocation9], 0
    %18 = vsyncpa [#allocation4], 0
    %s19 = scalar_lea.sflag [#allocation4], 1
    %20 = vsyncpa %s19, 0
    loop: start=0, step=1, limit=4
    $region2: #{tpu_custom_call.1} parent=1 // loop_pre_header
      _
    $region3: #{tpu_custom_call.1} parent=1 // loop_header
      %s22 = sphi 0, %s26
      %p23 = scmp.ge.s32.totalorder %s22, 4
      %s32 = sphi 0, %s34
      %s35 = sphi 0, %s32
      %s36 = sphi 0, %s35
      %s52 = sphi 0, %s36
      %s56 = sphi 0, %s56
      %s58 = sphi 0, %s56
      %s59 = sphi 0, %s58
      %s73 = sphi 0, %s59
      %s77 = sphi 0, %s77
      %s79 = sphi 0, %s77
      %s80 = sphi 0, %s79
      %s94 = sphi 0, %s80
      %s98 = sphi 0, %s98
      %s100 = sphi 0, %s98
      %s101 = sphi 0, %s100
      %s115 = sphi 0, %s101
      %s119 = sphi 0, %s119
      %s121 = sphi 0, %s119
      %s122 = sphi 0, %s121
      %s136 = sphi 0, %s122
      %s140 = sphi 0, %s140
      %s142 = sphi 0, %s140
      %s143 = sphi 0, %s142
      %s157 = sphi 0, %s143
      %s161 = sphi 0, %s161
      %s163 = sphi 0, %s161
      %s164 = sphi 0, %s163
      %s178 = sphi 0, %s164
      %s182 = sphi 0, %s182
      %s184 = sphi 0, %s182
      %s185 = sphi 0, %s184
      %s199 = sphi 0, %s185
      %s205 = sphi 0, %s207
      %s208 = sphi 0, %s205
      %s209 = sphi 0, %s208
      %s225 = sphi 0, %s209
    $region4: #{tpu_custom_call.1} parent=1 // loop_header_branch
      %25 = sbr.rel (%p23) target = $region8
    $region5: #{tpu_custom_call.1} parent=1 // loop_body
      %s27 = ssub.s32 %s22, 1
      %s28 = ssub.s32 %s22, 2
      %s29 = sadd.s32 %s22, 1
      %s30 = ssub.s32 %s22, %s29
      %p31 = scmp.eq.s32.totalorder %s30, 0
      %s33 = sadd.s32 %s32, 1
      %s34 = scalar_select %p31, %s32, %s33
      %p37 = pneg %p31
      %p38 = scmp.eq.s32.totalorder %s22, 1
      %p39 = por %p37, %p38
      %p40 = scmp.ne.s32.totalorder %s32, %s35
      %p41 = scmp.eq.s32.totalorder %s22, 0
      %p42 = por %p40, %p41
      %p43 = scmp.ne.s32.totalorder %s32, %s35
      %p44 = scmp.eq.s32.totalorder %s27, 1
      %p45 = por %p43, %p44
      %p46 = scmp.ne.s32.totalorder %s35, %s36
      %p47 = scmp.eq.s32.totalorder %s27, 0
      %p48 = por %p46, %p47
      %p49 = scmp.ne.s32.totalorder %s35, %s36
      %p50 = scmp.eq.s32.totalorder %s28, 1
      %p51 = por %p49, %p50
      %p53 = scmp.ne.s32.totalorder %s36, %s52
      %p54 = scmp.eq.s32.totalorder %s28, 0
      %p55 = por %p53, %p54
      %s57 = sadd.s32 %s56, 1
      %p60 = scmp.eq.s32.totalorder %s22, 1
      %p61 = scmp.ne.s32.totalorder %s56, %s58
      %p62 = scmp.eq.s32.totalorder %s22, 0
      %p63 = por %p61, %p62
      %p64 = scmp.ne.s32.totalorder %s56, %s58
      %p65 = scmp.eq.s32.totalorder %s27, 1
      %p66 = por %p64, %p65
      %p67 = scmp.ne.s32.totalorder %s58, %s59
      %p68 = scmp.eq.s32.totalorder %s27, 0
      %p69 = por %p67, %p68
      %p70 = scmp.ne.s32.totalorder %s58, %s59
      %p71 = scmp.eq.s32.totalorder %s28, 1
      %p72 = por %p70, %p71
      %p74 = scmp.ne.s32.totalorder %s59, %s73
      %p75 = scmp.eq.s32.totalorder %s28, 0
      %p76 = por %p74, %p75
      %s78 = sadd.s32 %s77, 1
      %p81 = scmp.eq.s32.totalorder %s22, 1
      %p82 = scmp.ne.s32.totalorder %s77, %s79
      %p83 = scmp.eq.s32.totalorder %s22, 0
      %p84 = por %p82, %p83
      %p85 = scmp.ne.s32.totalorder %s77, %s79
      %p86 = scmp.eq.s32.totalorder %s27, 1
      %p87 = por %p85, %p86
      %p88 = scmp.ne.s32.totalorder %s79, %s80
      %p89 = scmp.eq.s32.totalorder %s27, 0
      %p90 = por %p88, %p89
      %p91 = scmp.ne.s32.totalorder %s79, %s80
      %p92 = scmp.eq.s32.totalorder %s28, 1
      %p93 = por %p91, %p92
      %p95 = scmp.ne.s32.totalorder %s80, %s94
      %p96 = scmp.eq.s32.totalorder %s28, 0
      %p97 = por %p95, %p96
      %s99 = sadd.s32 %s98, 1
      %p102 = scmp.eq.s32.totalorder %s22, 1
      %p103 = scmp.ne.s32.totalorder %s98, %s100
      %p104 = scmp.eq.s32.totalorder %s22, 0
      %p105 = por %p103, %p104
      %p106 = scmp.ne.s32.totalorder %s98, %s100
      %p107 = scmp.eq.s32.totalorder %s27, 1
      %p108 = por %p106, %p107
      %p109 = scmp.ne.s32.totalorder %s100, %s101
      %p110 = scmp.eq.s32.totalorder %s27, 0
      %p111 = por %p109, %p110
      %p112 = scmp.ne.s32.totalorder %s100, %s101
      %p113 = scmp.eq.s32.totalorder %s28, 1
      %p114 = por %p112, %p113
      %p116 = scmp.ne.s32.totalorder %s101, %s115
      %p117 = scmp.eq.s32.totalorder %s28, 0
      %p118 = por %p116, %p117
      %s120 = sadd.s32 %s119, 1
      %p123 = scmp.eq.s32.totalorder %s22, 1
      %p124 = scmp.ne.s32.totalorder %s119, %s121
      %p125 = scmp.eq.s32.totalorder %s22, 0
      %p126 = por %p124, %p125
      %p127 = scmp.ne.s32.totalorder %s119, %s121
      %p128 = scmp.eq.s32.totalorder %s27, 1
      %p129 = por %p127, %p128
      %p130 = scmp.ne.s32.totalorder %s121, %s122
      %p131 = scmp.eq.s32.totalorder %s27, 0
      %p132 = por %p130, %p131
      %p133 = scmp.ne.s32.totalorder %s121, %s122
      %p134 = scmp.eq.s32.totalorder %s28, 1
      %p135 = por %p133, %p134
      %p137 = scmp.ne.s32.totalorder %s122, %s136
      %p138 = scmp.eq.s32.totalorder %s28, 0
      %p139 = por %p137, %p138
      %s141 = sadd.s32 %s140, 1
      %p144 = scmp.eq.s32.totalorder %s22, 1
      %p145 = scmp.ne.s32.totalorder %s140, %s142
      %p146 = scmp.eq.s32.totalorder %s22, 0
      %p147 = por %p145, %p146
      %p148 = scmp.ne.s32.totalorder %s140, %s142
      %p149 = scmp.eq.s32.totalorder %s27, 1
      %p150 = por %p148, %p149
      %p151 = scmp.ne.s32.totalorder %s142, %s143
      %p152 = scmp.eq.s32.totalorder %s27, 0
      %p153 = por %p151, %p152
      %p154 = scmp.ne.s32.totalorder %s142, %s143
      %p155 = scmp.eq.s32.totalorder %s28, 1
      %p156 = por %p154, %p155
      %p158 = scmp.ne.s32.totalorder %s143, %s157
      %p159 = scmp.eq.s32.totalorder %s28, 0
      %p160 = por %p158, %p159
      %s162 = sadd.s32 %s161, 1
      %p165 = scmp.eq.s32.totalorder %s22, 1
      %p166 = scmp.ne.s32.totalorder %s161, %s163
      %p167 = scmp.eq.s32.totalorder %s22, 0
      %p168 = por %p166, %p167
      %p169 = scmp.ne.s32.totalorder %s161, %s163
      %p170 = scmp.eq.s32.totalorder %s27, 1
      %p171 = por %p169, %p170
      %p172 = scmp.ne.s32.totalorder %s163, %s164
      %p173 = scmp.eq.s32.totalorder %s27, 0
      %p174 = por %p172, %p173
      %p175 = scmp.ne.s32.totalorder %s163, %s164
      %p176 = scmp.eq.s32.totalorder %s28, 1
      %p177 = por %p175, %p176
      %p179 = scmp.ne.s32.totalorder %s164, %s178
      %p180 = scmp.eq.s32.totalorder %s28, 0
      %p181 = por %p179, %p180
      %s183 = sadd.s32 %s182, 1
      %p186 = scmp.eq.s32.totalorder %s22, 1
      %p187 = scmp.ne.s32.totalorder %s182, %s184
      %p188 = scmp.eq.s32.totalorder %s22, 0
      %p189 = por %p187, %p188
      %p190 = scmp.ne.s32.totalorder %s182, %s184
      %p191 = scmp.eq.s32.totalorder %s27, 1
      %p192 = por %p190, %p191
      %p193 = scmp.ne.s32.totalorder %s184, %s185
      %p194 = scmp.eq.s32.totalorder %s27, 0
      %p195 = por %p193, %p194
      %p196 = scmp.ne.s32.totalorder %s184, %s185
      %p197 = scmp.eq.s32.totalorder %s28, 1
      %p198 = por %p196, %p197
      %p200 = scmp.ne.s32.totalorder %s185, %s199
      %p201 = scmp.eq.s32.totalorder %s28, 0
      %p202 = por %p200, %p201
      %s203 = ssub.s32 %s22, %s29
      %p204 = scmp.eq.s32.totalorder %s203, 0
      %s206 = sadd.s32 %s205, 1
      %s207 = scalar_select %p204, %s205, %s206
      %p210 = pneg %p204
      %p211 = scmp.eq.s32.totalorder %s22, 1
      %p212 = por %p210, %p211
      %p213 = scmp.ne.s32.totalorder %s205, %s208
      %p214 = scmp.eq.s32.totalorder %s22, 0
      %p215 = por %p213, %p214
      %p216 = scmp.ne.s32.totalorder %s205, %s208
      %p217 = scmp.eq.s32.totalorder %s27, 1
      %p218 = por %p216, %p217
      %p219 = scmp.ne.s32.totalorder %s208, %s209
      %p220 = scmp.eq.s32.totalorder %s27, 0
      %p221 = por %p219, %p220
      %p222 = scmp.ne.s32.totalorder %s208, %s209
      %p223 = scmp.eq.s32.totalorder %s28, 1
      %p224 = por %p222, %p223
      %p226 = scmp.ne.s32.totalorder %s209, %s225
      %p227 = scmp.eq.s32.totalorder %s28, 0
      %p228 = por %p226, %p227
      %p229 = scmp.le.s32.totalorder 1, %s22
      %p230 = scmp.lt.s32.totalorder %s22, 3
      %p231 = pnand %p229, %p230
      %p232 = pneg %p231
      // Predicated region
      $region9: #{tpu_custom_call.1} parent=5 // pred_check
        _
      $region10: #{tpu_custom_call.1} parent=5 // pred_check_branch
        %234 = sbr.rel (%p231) target = $region12
      $region11: #{tpu_custom_call.1} parent=5 // pred_region
        %s235 = ssub.s32 %s22, 1
        // Predicated region
        $region13: #{tpu_custom_call.1} parent=11 // pred_check
          %p236 = pneg %p69
        $region14: #{tpu_custom_call.1} parent=11 // pred_check_branch
          %238 = sbr.rel (%p236) target = $region16
        $region15: #{tpu_custom_call.1} parent=11 // pred_region
          _
        $region16: #{tpu_custom_call.1} parent=11 // pred_fallthru
          _
        // Predicated region
        $region17: #{tpu_custom_call.1} parent=11 // pred_check
          %p239 = pneg %p90
        $region18: #{tpu_custom_call.1} parent=11 // pred_check_branch
          %241 = sbr.rel (%p239) target = $region20
        $region19: #{tpu_custom_call.1} parent=11 // pred_region
          %s243 = ssub.s32 3072, 3072
          %244 = vsyncadd [#allocation6], %s243
          %s245 = sshll.u32 [#allocation5], 4
          %s246 = int_to_ptr.vmem [resolvable:$true] %s245
          %251 = dma.hbm_to_vmem [thread:$0]  %s2, 3072, %s246, [#allocation6], 192, 192, 12
        $region20: #{tpu_custom_call.1} parent=11 // pred_fallthru
          _
        // Predicated region
        $region21: #{tpu_custom_call.1} parent=11 // pred_check
          %p252 = pneg %p111
        $region22: #{tpu_custom_call.1} parent=11 // pred_check_branch
          %254 = sbr.rel (%p252) target = $region24
        $region23: #{tpu_custom_call.1} parent=11 // pred_region
          _
        $region24: #{tpu_custom_call.1} parent=11 // pred_fallthru
          _
        // Predicated region
        $region25: #{tpu_custom_call.1} parent=11 // pred_check
          %p255 = pneg %p132
        $region26: #{tpu_custom_call.1} parent=11 // pred_check_branch
          %257 = sbr.rel (%p255) target = $region28
        $region27: #{tpu_custom_call.1} parent=11 // pred_region
          %s259 = ssub.s32 1024, 1024
          %260 = vsyncadd [#allocation6], %s259
          %s261 = sshll.u32 [#allocation7], 4
          %s262 = int_to_ptr.vmem [resolvable:$true] %s261
          %267 = dma.hbm_to_vmem [thread:$0]  %s4, 1024, %s262, [#allocation6], 64, 64, 4
        $region28: #{tpu_custom_call.1} parent=11 // pred_fallthru
          _
        // Predicated region
        $region29: #{tpu_custom_call.1} parent=11 // pred_check
          %p268 = pneg %p153
        $region30: #{tpu_custom_call.1} parent=11 // pred_check_branch
          %270 = sbr.rel (%p268) target = $region32
        $region31: #{tpu_custom_call.1} parent=11 // pred_region
          _
        $region32: #{tpu_custom_call.1} parent=11 // pred_fallthru
          _
        // Predicated region
        $region33: #{tpu_custom_call.1} parent=11 // pred_check
          %p271 = pneg %p174
        $region34: #{tpu_custom_call.1} parent=11 // pred_check_branch
          %273 = sbr.rel (%p271) target = $region36
        $region35: #{tpu_custom_call.1} parent=11 // pred_region
          %s275 = ssub.s32 8192, 8192
          %276 = vsyncadd [#allocation9], %s275
          %s277 = sshll.u32 [#allocation8], 4
          %s278 = int_to_ptr.vmem [resolvable:$true] %s277
          %283 = dma.hbm_to_vmem [thread:$0]  %s6, 8192, %s278, [#allocation9], 512, 512, 32
        $region36: #{tpu_custom_call.1} parent=11 // pred_fallthru
          _
        // Predicated region
        $region37: #{tpu_custom_call.1} parent=11 // pred_check
          %p284 = pneg %p195
        $region38: #{tpu_custom_call.1} parent=11 // pred_check_branch
          %286 = sbr.rel (%p284) target = $region40
        $region39: #{tpu_custom_call.1} parent=11 // pred_region
          %s288 = ssub.s32 4096, 4096
          %289 = vsyncadd [#allocation9], %s288
          %s290 = sshll.u32 [#allocation10], 4
          %s291 = int_to_ptr.vmem [resolvable:$true] %s290
          %296 = dma.hbm_to_vmem [thread:$0]  %s7, 4096, %s291, [#allocation9], 64, 64, 4
        $region40: #{tpu_custom_call.1} parent=11 // pred_fallthru
          _
      $region12: #{tpu_custom_call.1} parent=5 // pred_fallthru
        _
      %p297 = scmp.lt.s32.totalorder %s22, 2
      // Predicated region
      $region41: #{tpu_custom_call.1} parent=5 // pred_check
        %p298 = pneg %p297
      $region42: #{tpu_custom_call.1} parent=5 // pred_check_branch
        %300 = sbr.rel (%p298) target = $region44
      $region43: #{tpu_custom_call.1} parent=5 // pred_region
        // Predicated region
        $region45: #{tpu_custom_call.1} parent=43 // pred_check
          %p301 = pneg %p42
        $region46: #{tpu_custom_call.1} parent=43 // pred_check_branch
          %303 = sbr.rel (%p301) target = $region48
        $region47: #{tpu_custom_call.1} parent=43 // pred_region
          %s304 = sand.u32 %s32, 1
          %s305 = scalar_lea.sflag [#allocation3], %s304
          %s306 = sand.u32 %s32, 1
          %s307 = smul.addr %s306, 16
          %s308 = scalar_lea.vmem [#allocation2], %s307
          %s309 = smul.u32 2, %s22
          %s311 = ssub.s32 256, 256
          %312 = vsyncadd %s305, %s311
          %s313 = smul.addr %s309, 128
          %s314 = scalar_lea.hbm %s0, %s313
          %s315 = sshll.u32 %s308, 4
          %s316 = int_to_ptr.vmem [resolvable:$true] %s315
          %321 = dma.hbm_to_vmem [thread:$0]  %s314, 256, %s316, %s305, 128, 128, 8
        $region48: #{tpu_custom_call.1} parent=43 // pred_fallthru
          _
      $region44: #{tpu_custom_call.1} parent=5 // pred_fallthru
        _
      %p322 = scmp.le.s32.totalorder 1, %s22
      %p323 = scmp.lt.s32.totalorder %s22, 3
      %p324 = pnand %p322, %p323
      %p325 = pneg %p324
      // Predicated region
      $region49: #{tpu_custom_call.1} parent=5 // pred_check
        _
      $region50: #{tpu_custom_call.1} parent=5 // pred_check_branch
        %327 = sbr.rel (%p324) target = $region52
      $region51: #{tpu_custom_call.1} parent=5 // pred_region
        %s328 = ssub.s32 %s22, 1
        %s329 = sand.u32 %s35, 1
        %s330 = scalar_lea.sflag [#allocation3], %s329
        %s331 = sand.u32 %s35, 1
        %s332 = smul.addr %s331, 16
        %s333 = scalar_lea.vmem [#allocation2], %s332
        // Predicated region
        $region53: #{tpu_custom_call.1} parent=51 // pred_check
          %p334 = pneg %p48
        $region54: #{tpu_custom_call.1} parent=51 // pred_check_branch
          %336 = sbr.rel (%p334) target = $region56
        $region55: #{tpu_custom_call.1} parent=51 // pred_region
          %337 = dma.done %s330, 256
        $region56: #{tpu_custom_call.1} parent=51 // pred_fallthru
          _
        // Predicated region
        $region57: #{tpu_custom_call.1} parent=51 // pred_check
          %p338 = pneg %p90
        $region58: #{tpu_custom_call.1} parent=51 // pred_check_branch
          %340 = sbr.rel (%p338) target = $region60
        $region59: #{tpu_custom_call.1} parent=51 // pred_region
          %341 = dma.done [#allocation6], 3072
        $region60: #{tpu_custom_call.1} parent=51 // pred_fallthru
          _
        // Predicated region
        $region61: #{tpu_custom_call.1} parent=51 // pred_check
          %p342 = pneg %p132
        $region62: #{tpu_custom_call.1} parent=51 // pred_check_branch
          %344 = sbr.rel (%p342) target = $region64
        $region63: #{tpu_custom_call.1} parent=51 // pred_region
          %345 = dma.done [#allocation6], 1024
        $region64: #{tpu_custom_call.1} parent=51 // pred_fallthru
          _
        // Predicated region
        $region65: #{tpu_custom_call.1} parent=51 // pred_check
          %p346 = pneg %p174
        $region66: #{tpu_custom_call.1} parent=51 // pred_check_branch
          %348 = sbr.rel (%p346) target = $region68
        $region67: #{tpu_custom_call.1} parent=51 // pred_region
          %349 = dma.done [#allocation9], 8192
        $region68: #{tpu_custom_call.1} parent=51 // pred_fallthru
          _
        // Predicated region
        $region69: #{tpu_custom_call.1} parent=51 // pred_check
          %p350 = pneg %p195
        $region70: #{tpu_custom_call.1} parent=51 // pred_check_branch
          %352 = sbr.rel (%p350) target = $region72
        $region71: #{tpu_custom_call.1} parent=51 // pred_region
          %353 = dma.done [#allocation9], 4096
        $region72: #{tpu_custom_call.1} parent=51 // pred_fallthru
          _
        %s354 = sand.u32 %s35, 1
        %s355 = scalar_lea.sflag [#allocation3], %s354
        %s356 = sand.u32 %s35, 1
        %s357 = smul.addr %s356, 16
        %s358 = scalar_lea.vmem [#allocation2], %s357
        %p359 = pneg %p48
        %p360 = pneg %p45
        %p361 = pneg %p69
        %p362 = pneg %p66
        %p363 = pneg %p90
        %p364 = pneg %p87
        %p365 = pneg %p111
        %p366 = pneg %p108
        %p367 = pneg %p132
        %p368 = pneg %p129
        %p369 = pneg %p153
        %p370 = pneg %p150
        %p371 = pneg %p174
        %p372 = pneg %p171
        %p373 = pneg %p195
        %p374 = pneg %p192
        %p375 = pneg %p221
        %p376 = pneg %p218
        %s377 = sand.u32 %s208, 1
        %s378 = scalar_lea.sflag [#allocation4], %s377
        %s379 = sand.u32 %s208, 1
        %s380 = smul.addr %s379, 16
        %s381 = scalar_lea.vmem [#allocation11], %s380
        %s382 = smul.u32 2, %s27
        %s383 = smul.u32 2, %s27
        %v385 = vld [vmem:[%s333] sm:$0xff]
        %v386 = vld [vmem:[%s333 + $0x8] sm:$0xff]
        %v387 = vld [vmem:[%s1] sm:$0x1]
        %v388 = vmul.f32 %v385, %v385
        %v389 = vmul.f32 %v386, %v386
        %390 = vadd.xlane.f32.xlu0 %v388
        %v391 = vpop.xlane.xlu0 %390
        %392 = vadd.xlane.f32.xlu0 %v389
        %v393 = vpop.xlane.xlu0 %392
        %v394 = vrcp.pop 128.0
        %v395 = vmul.f32 %v391, %v394
        %v396 = vmul.f32 %v393, %v394
        %v397 = vadd.f32 %v395, 1e-06
        %v398 = vadd.f32 %v396, 1e-06
        %v399 = vrsqrt.pop %v397
        %v400 = vrsqrt.pop %v398
        %v401 = vmul.f32 %v385, %v399
        %v402 = vmul.f32 %v386, %v400
        %v404 = vlaneseq
        %v405 = vshrl.u32 %v404, 7
        %v406 = vsub.s32 0, %v405
        %v407 = vrot.slane %v387, %v406
        %v409 = vmul.f32 %v401, %v407
        %v410 = vmul.f32 %v402, %v407
        %v411 = vpack.c.bf16 %v410, %v409
        %v412 = vld [vmem:[#allocation5] sm:$0xff]
        %v413 = vld [vmem:[#allocation5 + $0x8] sm:$0xf]
        %v414 = vld [vmem:[#allocation5 + $0xc] sm:$0xff]
        %v415 = vld [vmem:[#allocation5 + $0x14] sm:$0xf]
        %v416 = vld [vmem:[#allocation5 + $0x18] sm:$0xff]
        %v417 = vld [vmem:[#allocation5 + $0x20] sm:$0xf]
        %v418 = vld [vmem:[#allocation5 + $0x24] sm:$0xff]
        %v419 = vld [vmem:[#allocation5 + $0x2c] sm:$0xf]
        %v420 = vld [vmem:[#allocation5 + $0x30] sm:$0xff]
        %v421 = vld [vmem:[#allocation5 + $0x38] sm:$0xf]
        %v422 = vld [vmem:[#allocation5 + $0x3c] sm:$0xff]
        %v423 = vld [vmem:[#allocation5 + $0x44] sm:$0xf]
        %v424 = vld [vmem:[#allocation5 + $0x48] sm:$0xff]
        %v425 = vld [vmem:[#allocation5 + $0x50] sm:$0xf]
        %v426 = vld [vmem:[#allocation5 + $0x54] sm:$0xff]
        %v427 = vld [vmem:[#allocation5 + $0x5c] sm:$0xf]
        %v428 = vld [vmem:[#allocation5 + $0x60] sm:$0xff]
        %v429 = vld [vmem:[#allocation5 + $0x68] sm:$0xf]
        %v430 = vld [vmem:[#allocation5 + $0x6c] sm:$0xff]
        %v431 = vld [vmem:[#allocation5 + $0x74] sm:$0xf]
        %v432 = vld [vmem:[#allocation5 + $0x78] sm:$0xff]
        %v433 = vld [vmem:[#allocation5 + $0x80] sm:$0xf]
        %v434 = vld [vmem:[#allocation5 + $0x84] sm:$0xff]
        %v435 = vld [vmem:[#allocation5 + $0x8c] sm:$0xf]
        %v436 = vld [vmem:[#allocation5 + $0x90] sm:$0xff]
        %v437 = vld [vmem:[#allocation5 + $0x98] sm:$0xf]
        %v438 = vld [vmem:[#allocation5 + $0x9c] sm:$0xff]
        %v439 = vld [vmem:[#allocation5 + $0xa4] sm:$0xf]
        %v440 = vld [vmem:[#allocation5 + $0xa8] sm:$0xff]
        %v441 = vld [vmem:[#allocation5 + $0xb0] sm:$0xf]
        %v442 = vld [vmem:[#allocation5 + $0xb4] sm:$0xff]
        %v443 = vld [vmem:[#allocation5 + $0xbc] sm:$0xf]
        %v476 = vunpack.c.l.b16 %v412
        %v477 = vunpack.c.h.b16 %v412
        %v478 = vunpack.c.l.b16 %v413
        %v479 = vunpack.c.l.b16 %v414
        %v480 = vunpack.c.h.b16 %v414
        %v481 = vunpack.c.l.b16 %v415
        %v482 = vunpack.c.l.b16 %v416
        %v483 = vunpack.c.h.b16 %v416
        %v484 = vunpack.c.l.b16 %v417
        %v485 = vunpack.c.l.b16 %v418
        %v486 = vunpack.c.h.b16 %v418
        %v487 = vunpack.c.l.b16 %v419
        %v488 = vunpack.c.l.b16 %v420
        %v489 = vunpack.c.h.b16 %v420
        %v490 = vunpack.c.l.b16 %v421
        %v491 = vunpack.c.l.b16 %v422
        %v492 = vunpack.c.h.b16 %v422
        %v493 = vunpack.c.l.b16 %v423
        %v494 = vunpack.c.l.b16 %v424
        %v495 = vunpack.c.h.b16 %v424
        %v496 = vunpack.c.l.b16 %v425
        %v497 = vunpack.c.l.b16 %v426
        %v498 = vunpack.c.h.b16 %v426
        %v499 = vunpack.c.l.b16 %v427
        %v500 = vunpack.c.l.b16 %v428
        %v501 = vunpack.c.h.b16 %v428
        %v502 = vunpack.c.l.b16 %v429
        %v503 = vunpack.c.l.b16 %v430
        %v504 = vunpack.c.h.b16 %v430
        %v505 = vunpack.c.l.b16 %v431
        %v506 = vunpack.c.l.b16 %v432
        %v507 = vunpack.c.h.b16 %v432
        %v508 = vunpack.c.l.b16 %v433
        %v509 = vunpack.c.l.b16 %v434
        %v510 = vunpack.c.h.b16 %v434
        %v511 = vunpack.c.l.b16 %v435
        %v512 = vunpack.c.l.b16 %v436
        %v513 = vunpack.c.h.b16 %v436
        %v514 = vunpack.c.l.b16 %v437
        %v515 = vunpack.c.l.b16 %v438
        %v516 = vunpack.c.h.b16 %v438
        %v517 = vunpack.c.l.b16 %v439
        %v518 = vunpack.c.l.b16 %v440
        %v519 = vunpack.c.h.b16 %v440
        %v520 = vunpack.c.l.b16 %v441
        %v521 = vunpack.c.l.b16 %v442
        %v522 = vunpack.c.h.b16 %v442
        %v523 = vunpack.c.l.b16 %v443
        %v524 = vpack.c.b16 %v479, %v476
        %v525 = vpack.c.b16 %v480, %v477
        %v526 = vpack.c.b16 %v481, %v478
        %v527 = vpack.c.b16 %v485, %v482
        %v528 = vpack.c.b16 %v486, %v483
        %v529 = vpack.c.b16 %v487, %v484
        %v530 = vpack.c.b16 %v491, %v488
        %v531 = vpack.c.b16 %v492, %v489
        %v532 = vpack.c.b16 %v493, %v490
        %v533 = vpack.c.b16 %v497, %v494
        %v534 = vpack.c.b16 %v498, %v495
        %v535 = vpack.c.b16 %v499, %v496
        %v536 = vpack.c.b16 %v503, %v500
        %v537 = vpack.c.b16 %v504, %v501
        %v538 = vpack.c.b16 %v505, %v502
        %v539 = vpack.c.b16 %v509, %v506
        %v540 = vpack.c.b16 %v510, %v507
        %v541 = vpack.c.b16 %v511, %v508
        %v542 = vpack.c.b16 %v515, %v512
        %v543 = vpack.c.b16 %v516, %v513
        %v544 = vpack.c.b16 %v517, %v514
        %v545 = vpack.c.b16 %v521, %v518
        %v546 = vpack.c.b16 %v522, %v519
        %v547 = vpack.c.b16 %v523, %v520
        %572 = vmatprep.subr.bf16.mxu0 %v525
        %573 = vmatpush1.bf16.msra.mxu0 %v524
        %574 = vmatprep.subr.bf16.mxu0 %v528
        %575 = vmatpush1.bf16.msra.mxu0 %v527
        %576 = vmatprep.subr.bf16.mxu0 %v531
        %577 = vmatpush1.bf16.msra.mxu0 %v530
        %578 = vmatprep.subr.bf16.mxu0 %v534
        %579 = vmatpush1.bf16.msra.mxu0 %v533
        %580 = vmatprep.subr.bf16.mxu0 %v537
        %581 = vmatpush1.bf16.msra.mxu0 %v536
        %582 = vmatprep.subr.bf16.mxu0 %v540
        %583 = vmatpush1.bf16.msra.mxu0 %v539
        %584 = vmatprep.subr.bf16.mxu0 %v543
        %585 = vmatpush1.bf16.msra.mxu0 %v542
        %586 = vmatprep.subr.bf16.mxu0 %v546
        %587 = vmatpush1.bf16.msra.mxu0 %v545
        %588 = vmatprep.subr.bf16.mxu0 0
        %589 = vmatpush1.bf16.msra.mxu0 0
        %590 = vmatprep.subr.bf16.mxu0 0
        %591 = vmatpush1.bf16.msra.mxu0 0
        %592 = vmatprep.subr.bf16.mxu0 0
        %593 = vmatpush1.bf16.msra.mxu0 0
        %594 = vmatprep.subr.bf16.mxu0 0
        %595 = vmatpush1.bf16.msra.mxu0 0
        %596 = vmatprep.subr.bf16.mxu0 0
        %597 = vmatpush1.bf16.msra.mxu0 0
        %598 = vmatprep.subr.bf16.mxu0 0
        %599 = vmatpush1.bf16.msra.mxu0 0
        %600 = vmatprep.subr.bf16.mxu0 0
        %601 = vmatpush1.bf16.msra.mxu0 0
        %602 = vmatprep.subr.bf16.mxu0 0
        %603 = vmatpush1.bf16.msra.mxu0 0
        %604 = vmatprep.mubr.bf16.mxu0 0
        %605 = vmatmul.mubr.bf16.gmra.mrb[0].mxu0 %v411
        %v606 = vpop.f32.mrb[0].mxu0
        %v607 = vadd.f32 0.0, %v606
        %v608 = vpop.f32.mrb[0].mxu0
        %v609 = vadd.f32 0.0, %v608
        %v610 = vpop.f32.mrb[0].mxu0
        %v611 = vadd.f32 0.0, %v610
        %v612 = vpop.f32.mrb[0].mxu0
        %v613 = vadd.f32 0.0, %v612
        %614 = vdwg.mxu0
        %615 = vmatprep.subr.bf16.mxu0 0
        %616 = vmatpush1.bf16.msra.mxu0 %v526
        %617 = vmatprep.subr.bf16.mxu0 0
        %618 = vmatpush1.bf16.msra.mxu0 %v529
        %619 = vmatprep.subr.bf16.mxu0 0
        %620 = vmatpush1.bf16.msra.mxu0 %v532
        %621 = vmatprep.subr.bf16.mxu0 0
        %622 = vmatpush1.bf16.msra.mxu0 %v535
        %623 = vmatprep.subr.bf16.mxu0 0
        %624 = vmatpush1.bf16.msra.mxu0 %v538
        %625 = vmatprep.subr.bf16.mxu0 0
        %626 = vmatpush1.bf16.msra.mxu0 %v541
        %627 = vmatprep.subr.bf16.mxu0 0
        %628 = vmatpush1.bf16.msra.mxu0 %v544
        %629 = vmatprep.subr.bf16.mxu0 0
        %630 = vmatpush1.bf16.msra.mxu0 %v547
        %631 = vmatprep.subr.bf16.mxu0 0
        %632 = vmatpush1.bf16.msra.mxu0 0
        %633 = vmatprep.subr.bf16.mxu0 0
        %634 = vmatpush1.bf16.msra.mxu0 0
        %635 = vmatprep.subr.bf16.mxu0 0
        %636 = vmatpush1.bf16.msra.mxu0 0
        %637 = vmatprep.subr.bf16.mxu0 0
        %638 = vmatpush1.bf16.msra.mxu0 0
        %639 = vmatprep.subr.bf16.mxu0 0
        %640 = vmatpush1.bf16.msra.mxu0 0
        %641 = vmatprep.subr.bf16.mxu0 0
        %642 = vmatpush1.bf16.msra.mxu0 0
        %643 = vmatprep.subr.bf16.mxu0 0
        %644 = vmatpush1.bf16.msra.mxu0 0
        %645 = vmatprep.subr.bf16.mxu0 0
        %646 = vmatpush1.bf16.msra.mxu0 0
        %647 = vmatprep.mubr.bf16.mxu0 0
        %648 = vmatmul.mubr.bf16.gmra.mrb[0].mxu0 %v411
        %v649 = vpop.f32.mrb[0].mxu0
        %v650 = vadd.f32 0.0, %v649
        %v651 = vpop.f32.mrb[0].mxu0
        %v652 = vpop.f32.mrb[0].mxu0
        %v653 = vadd.f32 0.0, %v652
        %v654 = vpop.f32.mrb[0].mxu0
        %655 = vdwg.mxu0
        %v656 = vxor.u32 %v609, 2147483648
        %v657 = vxor.u32 %v613, 2147483648
        %v658 = vmul.f32 %v656, 1.442695
        %v659 = vpow.pop %v658
        %v660 = vmul.f32 %v657, 1.442695
        %v661 = vpow.pop %v660
        %v662 = vadd.f32 %v659, 1.0
        %v663 = vadd.f32 %v661, 1.0
        %v664 = vrcp.pop %v662
        %v665 = vmul.f32 1.0, %v664
        %v666 = vrcp.pop %v663
        %v667 = vmul.f32 1.0, %v666
        %v668 = vxor.u32 %v607, 2147483648
        %v669 = vxor.u32 %v611, 2147483648
        %v670 = vmul.f32 %v668, 1.442695
        %v671 = vpow.pop %v670
        %v672 = vmul.f32 %v669, 1.442695
        %v673 = vpow.pop %v672
        %v674 = vadd.f32 %v671, 1.0
        %v675 = vadd.f32 %v673, 1.0
        %v676 = vrcp.pop %v674
        %v677 = vmul.f32 1.0, %v676
        %v678 = vrcp.pop %v675
        %v679 = vmul.f32 1.0, %v678
        %v680 = vmul.f32 %v607, %v677
        %v681 = vmul.f32 %v611, %v679
        %v682 = vsub.f32 1.0, %v665
        %v683 = vsub.f32 1.0, %v667
        %v684 = vmul.f32 %v680, %v682
        %v685 = vmul.f32 %v681, %v683
        %v686 = vlaneseq
        %v687 = vshrl.u32 %v686, 7
        %v688 = vadd.s32 %v687, 8
        %vm689 = vcmp.lt.s32.totalorder %v687, 0
        %v690 = vsub.s32 0, %v687
        %v691 = vsel %vm689, %v690, %v687
        %v692 = vshrl.u32 %v691, 4
        %v693 = vand.u32 %v691, 15
        %v694 = vsub.s32 0, %v693
        %v695 = vsel %vm689, %v694, %v693
        %vm696 = vcmp.lt.s32.totalorder %v688, 0
        %v697 = vsub.s32 0, %v688
        %v698 = vsel %vm696, %v697, %v688
        %v699 = vshrl.u32 %v698, 4
        %v700 = vand.u32 %v698, 15
        %v701 = vsub.s32 0, %v700
        %v702 = vsel %vm696, %v701, %v700
        %vm703 = vcmp.ne.s32.totalorder %v695, 0
        %vm704 = vcmp.ne.s32.totalorder %v702, 0
        %vm705 = vcmp.lt.s32.totalorder %v695, 0
        %vm706 = vcmp.lt.s32.totalorder %v702, 0
        %vm707 = vmand %vm705, %vm703
        %vm708 = vmand %vm706, %vm704
        %v709 = vadd.s32 %v695, 16
        %v710 = vadd.s32 %v702, 16
        %v711 = vsel %vm707, %v709, %v695
        %v712 = vsel %vm708, %v710, %v702
        %v713 = vrot.slane %v665, 7
        %v714 = vrot.slane %v667, 7
        %vm715 = vcmp.lt.s32.totalorder %v687, 1
        %v716 = vsel %vm715, %v713, %v714
        %v717 = vsel %vm715, %v714, %v713
        %v718 = vrot.slane %v684, 7
        %v719 = vrot.slane %v685, 7
        %v720 = vsel %vm715, %v718, %v719
        %v721 = vsel %vm715, %v719, %v718
        %vm722 = vcmp.ge.s32.totalorder %v711, 1
        %vm723 = vcmp.ge.s32.totalorder %v712, 1
        %v724 = vmul.f32 %v665, %v721
        %v725 = vmul.f32 %v667, %v720
        %v726 = vadd.f32 %v724, %v684
        %v727 = vadd.f32 %v725, %v685
        %v728 = vsel %vm722, 1, 0
        %v729 = vsel %vm723, 1, 0
        %vm730 = vcmp.eq.s32.totalorder %v728, 1
        %vm731 = vcmp.eq.s32.totalorder %v729, 1
        %v732 = vsel %vm730, %v726, %v684
        %v733 = vsel %vm731, %v727, %v685
        %v734 = vmul.f32 %v665, %v717
        %v735 = vmul.f32 %v667, %v716
        %v736 = vsel %vm730, %v734, %v665
        %v737 = vsel %vm731, %v735, %v667
        %v738 = vrot.slane %v736, 6
        %v739 = vrot.slane %v737, 6
        %vm740 = vcmp.lt.s32.totalorder %v687, 2
        %v741 = vsel %vm740, %v738, %v739
        %v742 = vsel %vm740, %v739, %v738
        %v743 = vrot.slane %v732, 6
        %v744 = vrot.slane %v733, 6
        %v745 = vsel %vm740, %v743, %v744
        %v746 = vsel %vm740, %v744, %v743
        %vm747 = vcmp.ge.s32.totalorder %v711, 2
        %vm748 = vcmp.ge.s32.totalorder %v712, 2
        %v749 = vmul.f32 %v736, %v746
        %v750 = vmul.f32 %v737, %v745
        %v751 = vadd.f32 %v749, %v732
        %v752 = vadd.f32 %v750, %v733
        %v753 = vsel %vm747, 1, 0
        %v754 = vsel %vm748, 1, 0
        %vm755 = vcmp.eq.s32.totalorder %v753, 1
        %vm756 = vcmp.eq.s32.totalorder %v754, 1
        %v757 = vsel %vm755, %v751, %v732
        %v758 = vsel %vm756, %v752, %v733
        %v759 = vmul.f32 %v736, %v742
        %v760 = vmul.f32 %v737, %v741
        %v761 = vsel %vm755, %v759, %v736
        %v762 = vsel %vm756, %v760, %v737
        %v763 = vrot.slane %v761, 4
        %v764 = vrot.slane %v762, 4
        %vm765 = vcmp.lt.s32.totalorder %v687, 4
        %v766 = vsel %vm765, %v763, %v764
        %v767 = vsel %vm765, %v764, %v763
        %v768 = vrot.slane %v757, 4
        %v769 = vrot.slane %v758, 4
        %v770 = vsel %vm765, %v768, %v769
        %v771 = vsel %vm765, %v769, %v768
        %vm772 = vcmp.ge.s32.totalorder %v711, 4
        %vm773 = vcmp.ge.s32.totalorder %v712, 4
        %v774 = vmul.f32 %v761, %v771
        %v775 = vmul.f32 %v762, %v770
        %v776 = vadd.f32 %v774, %v757
        %v777 = vadd.f32 %v775, %v758
        %v778 = vsel %vm772, 1, 0
        %v779 = vsel %vm773, 1, 0
        %vm780 = vcmp.eq.s32.totalorder %v778, 1
        %vm781 = vcmp.eq.s32.totalorder %v779, 1
        %v782 = vsel %vm780, %v776, %v757
        %v783 = vsel %vm781, %v777, %v758
        %v784 = vmul.f32 %v761, %v767
        %v785 = vmul.f32 %v762, %v766
        %v786 = vsel %vm780, %v784, %v761
        %v787 = vsel %vm781, %v785, %v762
        %vm788 = vcmp.ge.s32.totalorder %v711, 8
        %vm789 = vcmp.ge.s32.totalorder %v712, 8
        %v790 = vmul.f32 %v786, %v783
        %v791 = vmul.f32 %v787, %v782
        %v792 = vadd.f32 %v790, %v782
        %v793 = vadd.f32 %v791, %v783
        %v794 = vsel %vm788, 1, 0
        %v795 = vsel %vm789, 1, 0
        %vm796 = vcmp.eq.s32.totalorder %v794, 1
        %vm797 = vcmp.eq.s32.totalorder %v795, 1
        %v798 = vsel %vm796, %v792, %v782
        %v799 = vsel %vm797, %v793, %v783
        %v800 = vld [vmem:[%s3] sm:$0x1]
        %v801 = vmul.f32 %v798, %v798
        %v802 = vmul.f32 %v799, %v799
        %803 = vadd.xlane.f32.xlu0 %v801
        %v804 = vpop.xlane.xlu0 %803
        %805 = vadd.xlane.f32.xlu0 %v802
        %v806 = vpop.xlane.xlu0 %805
        %v807 = vmul.f32 %v804, %v394
        %v808 = vmul.f32 %v806, %v394
        %v809 = vadd.f32 %v807, 1e-06
        %v810 = vadd.f32 %v808, 1e-06
        %v811 = vrsqrt.pop %v809
        %v812 = vrsqrt.pop %v810
        %v813 = vmul.f32 %v798, %v811
        %v814 = vmul.f32 %v799, %v812
        %v816 = vlaneseq
        %v817 = vshrl.u32 %v816, 7
        %v818 = vsub.s32 0, %v817
        %v819 = vrot.slane %v800, %v818
        %v821 = vmul.f32 %v813, %v819
        %v822 = vmul.f32 %v814, %v819
        %v823 = vxor.u32 %v650, 2147483648
        %v824 = vxor.u32 %v653, 2147483648
        %v825 = vmul.f32 %v823, 1.442695
        %v826 = vpow.pop %v825
        %v827 = vmul.f32 %v824, 1.442695
        %v828 = vpow.pop %v827
        %v829 = vadd.f32 %v826, 1.0
        %v830 = vadd.f32 %v828, 1.0
        %v831 = vrcp.pop %v829
        %v832 = vmul.f32 1.0, %v831
        %v833 = vrcp.pop %v830
        %v834 = vmul.f32 1.0, %v833
        %v835 = vmul.f32 %v650, %v832
        %v836 = vmul.f32 %v653, %v834
        %v837 = vmul.f32 %v821, %v835
        %v838 = vmul.f32 %v822, %v836
        %v839 = vpack.c.bf16 %v838, %v837
        %v840 = vld [vmem:[#allocation7] sm:$0xf]
        %v841 = vld [vmem:[#allocation7 + $0x4] sm:$0xf]
        %v842 = vld [vmem:[#allocation7 + $0x8] sm:$0xf]
        %v843 = vld [vmem:[#allocation7 + $0xc] sm:$0xf]
        %v844 = vld [vmem:[#allocation7 + $0x10] sm:$0xf]
        %v845 = vld [vmem:[#allocation7 + $0x14] sm:$0xf]
        %v846 = vld [vmem:[#allocation7 + $0x18] sm:$0xf]
        %v847 = vld [vmem:[#allocation7 + $0x1c] sm:$0xf]
        %v848 = vld [vmem:[#allocation7 + $0x20] sm:$0xf]
        %v849 = vld [vmem:[#allocation7 + $0x24] sm:$0xf]
        %v850 = vld [vmem:[#allocation7 + $0x28] sm:$0xf]
        %v851 = vld [vmem:[#allocation7 + $0x2c] sm:$0xf]
        %v852 = vld [vmem:[#allocation7 + $0x30] sm:$0xf]
        %v853 = vld [vmem:[#allocation7 + $0x34] sm:$0xf]
        %v854 = vld [vmem:[#allocation7 + $0x38] sm:$0xf]
        %v855 = vld [vmem:[#allocation7 + $0x3c] sm:$0xf]
        %v872 = vunpack.c.l.b16 %v840
        %v873 = vunpack.c.l.b16 %v841
        %v874 = vunpack.c.l.b16 %v842
        %v875 = vunpack.c.l.b16 %v843
        %v876 = vunpack.c.l.b16 %v844
        %v877 = vunpack.c.l.b16 %v845
        %v878 = vunpack.c.l.b16 %v846
        %v879 = vunpack.c.l.b16 %v847
        %v880 = vunpack.c.l.b16 %v848
        %v881 = vunpack.c.l.b16 %v849
        %v882 = vunpack.c.l.b16 %v850
        %v883 = vunpack.c.l.b16 %v851
        %v884 = vunpack.c.l.b16 %v852
        %v885 = vunpack.c.l.b16 %v853
        %v886 = vunpack.c.l.b16 %v854
        %v887 = vunpack.c.l.b16 %v855
        %v888 = vpack.c.b16 %v873, %v872
        %v889 = vpack.c.b16 %v875, %v874
        %v890 = vpack.c.b16 %v877, %v876
        %v891 = vpack.c.b16 %v879, %v878
        %v892 = vpack.c.b16 %v881, %v880
        %v893 = vpack.c.b16 %v883, %v882
        %v894 = vpack.c.b16 %v885, %v884
        %v895 = vpack.c.b16 %v887, %v886
        %904 = vmatprep.subr.bf16.mxu0 0
        %905 = vmatpush1.bf16.msra.mxu0 %v888
        %906 = vmatprep.subr.bf16.mxu0 0
        %907 = vmatpush1.bf16.msra.mxu0 %v889
        %908 = vmatprep.subr.bf16.mxu0 0
        %909 = vmatpush1.bf16.msra.mxu0 %v890
        %910 = vmatprep.subr.bf16.mxu0 0
        %911 = vmatpush1.bf16.msra.mxu0 %v891
        %912 = vmatprep.subr.bf16.mxu0 0
        %913 = vmatpush1.bf16.msra.mxu0 %v892
        %914 = vmatprep.subr.bf16.mxu0 0
        %915 = vmatpush1.bf16.msra.mxu0 %v893
        %916 = vmatprep.subr.bf16.mxu0 0
        %917 = vmatpush1.bf16.msra.mxu0 %v894
        %918 = vmatprep.subr.bf16.mxu0 0
        %919 = vmatpush1.bf16.msra.mxu0 %v895
        %920 = vmatprep.subr.bf16.mxu0 0
        %921 = vmatpush1.bf16.msra.mxu0 0
        %922 = vmatprep.subr.bf16.mxu0 0
        %923 = vmatpush1.bf16.msra.mxu0 0
        %924 = vmatprep.subr.bf16.mxu0 0
        %925 = vmatpush1.bf16.msra.mxu0 0
        %926 = vmatprep.subr.bf16.mxu0 0
        %927 = vmatpush1.bf16.msra.mxu0 0
        %928 = vmatprep.subr.bf16.mxu0 0
        %929 = vmatpush1.bf16.msra.mxu0 0
        %930 = vmatprep.subr.bf16.mxu0 0
        %931 = vmatpush1.bf16.msra.mxu0 0
        %932 = vmatprep.subr.bf16.mxu0 0
        %933 = vmatpush1.bf16.msra.mxu0 0
        %934 = vmatprep.subr.bf16.mxu0 0
        %935 = vmatpush1.bf16.msra.mxu0 0
        %936 = vmatprep.mubr.bf16.mxu0 0
        %937 = vmatmul.mubr.bf16.gmra.mrb[0].mxu0 %v839
        %v938 = vpop.f32.mrb[0].mxu0
        %v939 = vadd.f32 0.0, %v938
        %v940 = vpop.f32.mrb[0].mxu0
        %v941 = vpop.f32.mrb[0].mxu0
        %v942 = vadd.f32 0.0, %v941
        %v943 = vpop.f32.mrb[0].mxu0
        %944 = vdwg.mxu0
        %v945 = vadd.f32 %v385, %v939
        %v946 = vadd.f32 %v386, %v942
        %v947 = vld [vmem:[%s5] sm:$0x1]
        %v948 = vmul.f32 %v945, %v945
        %v949 = vmul.f32 %v946, %v946
        %950 = vadd.xlane.f32.xlu0 %v948
        %v951 = vpop.xlane.xlu0 %950
        %952 = vadd.xlane.f32.xlu0 %v949
        %v953 = vpop.xlane.xlu0 %952
        %v954 = vmul.f32 %v951, %v394
        %v955 = vmul.f32 %v953, %v394
        %v956 = vadd.f32 %v954, 1e-06
        %v957 = vadd.f32 %v955, 1e-06
        %v958 = vrsqrt.pop %v956
        %v959 = vrsqrt.pop %v957
        %v960 = vmul.f32 %v945, %v958
        %v961 = vmul.f32 %v946, %v959
        %v963 = vlaneseq
        %v964 = vshrl.u32 %v963, 7
        %v965 = vsub.s32 0, %v964
        %v966 = vrot.slane %v947, %v965
        %v968 = vmul.f32 %v960, %v966
        %v969 = vmul.f32 %v961, %v966
        %v970 = vpack.c.bf16 %v969, %v968
        %v971 = vld [vmem:[#allocation8] sm:$0xff]
        %v972 = vld [vmem:[#allocation8 + $0x8] sm:$0xff]
        %v973 = vld [vmem:[#allocation8 + $0x10] sm:$0xff]
        %v974 = vld [vmem:[#allocation8 + $0x18] sm:$0xff]
        %v975 = vld [vmem:[#allocation8 + $0x20] sm:$0xff]
        %v976 = vld [vmem:[#allocation8 + $0x28] sm:$0xff]
        %v977 = vld [vmem:[#allocation8 + $0x30] sm:$0xff]
        %v978 = vld [vmem:[#allocation8 + $0x38] sm:$0xff]
        %v979 = vld [vmem:[#allocation8 + $0x40] sm:$0xff]
        %v980 = vld [vmem:[#allocation8 + $0x48] sm:$0xff]
        %v981 = vld [vmem:[#allocation8 + $0x50] sm:$0xff]
        %v982 = vld [vmem:[#allocation8 + $0x58] sm:$0xff]
        %v983 = vld [vmem:[#allocation8 + $0x60] sm:$0xff]
        %v984 = vld [vmem:[#allocation8 + $0x68] sm:$0xff]
        %v985 = vld [vmem:[#allocation8 + $0x70] sm:$0xff]
        %v986 = vld [vmem:[#allocation8 + $0x78] sm:$0xff]
        %v987 = vld [vmem:[#allocation8 + $0x80] sm:$0xff]
        %v988 = vld [vmem:[#allocation8 + $0x88] sm:$0xff]
        %v989 = vld [vmem:[#allocation8 + $0x90] sm:$0xff]
        %v990 = vld [vmem:[#allocation8 + $0x98] sm:$0xff]
        %v991 = vld [vmem:[#allocation8 + $0xa0] sm:$0xff]
        %v992 = vld [vmem:[#allocation8 + $0xa8] sm:$0xff]
        %v993 = vld [vmem:[#allocation8 + $0xb0] sm:$0xff]
        %v994 = vld [vmem:[#allocation8 + $0xb8] sm:$0xff]
        %v995 = vld [vmem:[#allocation8 + $0xc0] sm:$0xff]
        %v996 = vld [vmem:[#allocation8 + $0xc8] sm:$0xff]
        %v997 = vld [vmem:[#allocation8 + $0xd0] sm:$0xff]
        %v998 = vld [vmem:[#allocation8 + $0xd8] sm:$0xff]
        %v999 = vld [vmem:[#allocation8 + $0xe0] sm:$0xff]
        %v1000 = vld [vmem:[#allocation8 + $0xe8] sm:$0xff]
        %v1001 = vld [vmem:[#allocation8 + $0xf0] sm:$0xff]
        %v1002 = vld [vmem:[#allocation8 + $0xf8] sm:$0xff]
        %v1003 = vld [vmem:[#allocation8 + $0x100] sm:$0xff]
        %v1004 = vld [vmem:[#allocation8 + $0x108] sm:$0xff]
        %v1005 = vld [vmem:[#allocation8 + $0x110] sm:$0xff]
        %v1006 = vld [vmem:[#allocation8 + $0x118] sm:$0xff]
        %v1007 = vld [vmem:[#allocation8 + $0x120] sm:$0xff]
        %v1008 = vld [vmem:[#allocation8 + $0x128] sm:$0xff]
        %v1009 = vld [vmem:[#allocation8 + $0x130] sm:$0xff]
        %v1010 = vld [vmem:[#allocation8 + $0x138] sm:$0xff]
        %v1011 = vld [vmem:[#allocation8 + $0x140] sm:$0xff]
        %v1012 = vld [vmem:[#allocation8 + $0x148] sm:$0xff]
        %v1013 = vld [vmem:[#allocation8 + $0x150] sm:$0xff]
        %v1014 = vld [vmem:[#allocation8 + $0x158] sm:$0xff]
        %v1015 = vld [vmem:[#allocation8 + $0x160] sm:$0xff]
        %v1016 = vld [vmem:[#allocation8 + $0x168] sm:$0xff]
        %v1017 = vld [vmem:[#allocation8 + $0x170] sm:$0xff]
        %v1018 = vld [vmem:[#allocation8 + $0x178] sm:$0xff]
        %v1019 = vld [vmem:[#allocation8 + $0x180] sm:$0xff]
        %v1020 = vld [vmem:[#allocation8 + $0x188] sm:$0xff]
        %v1021 = vld [vmem:[#allocation8 + $0x190] sm:$0xff]
        %v1022 = vld [vmem:[#allocation8 + $0x198] sm:$0xff]
        %v1023 = vld [vmem:[#allocation8 + $0x1a0] sm:$0xff]
        %v1024 = vld [vmem:[#allocation8 + $0x1a8] sm:$0xff]
        %v1025 = vld [vmem:[#allocation8 + $0x1b0] sm:$0xff]
        %v1026 = vld [vmem:[#allocation8 + $0x1b8] sm:$0xff]
        %v1027 = vld [vmem:[#allocation8 + $0x1c0] sm:$0xff]
        %v1028 = vld [vmem:[#allocation8 + $0x1c8] sm:$0xff]
        %v1029 = vld [vmem:[#allocation8 + $0x1d0] sm:$0xff]
        %v1030 = vld [vmem:[#allocation8 + $0x1d8] sm:$0xff]
        %v1031 = vld [vmem:[#allocation8 + $0x1e0] sm:$0xff]
        %v1032 = vld [vmem:[#allocation8 + $0x1e8] sm:$0xff]
        %v1033 = vld [vmem:[#allocation8 + $0x1f0] sm:$0xff]
        %v1034 = vld [vmem:[#allocation8 + $0x1f8] sm:$0xff]
        %v1099 = vunpack.c.l.b16 %v971
        %v1100 = vunpack.c.h.b16 %v971
        %v1101 = vunpack.c.l.b16 %v972
        %v1102 = vunpack.c.h.b16 %v972
        %v1103 = vunpack.c.l.b16 %v973
        %v1104 = vunpack.c.h.b16 %v973
        %v1105 = vunpack.c.l.b16 %v974
        %v1106 = vunpack.c.h.b16 %v974
        %v1107 = vunpack.c.l.b16 %v975
        %v1108 = vunpack.c.h.b16 %v975
        %v1109 = vunpack.c.l.b16 %v976
        %v1110 = vunpack.c.h.b16 %v976
        %v1111 = vunpack.c.l.b16 %v977
        %v1112 = vunpack.c.h.b16 %v977
        %v1113 = vunpack.c.l.b16 %v978
        %v1114 = vunpack.c.h.b16 %v978
        %v1115 = vunpack.c.l.b16 %v979
        %v1116 = vunpack.c.h.b16 %v979
        %v1117 = vunpack.c.l.b16 %v980
        %v1118 = vunpack.c.h.b16 %v980
        %v1119 = vunpack.c.l.b16 %v981
        %v1120 = vunpack.c.h.b16 %v981
        %v1121 = vunpack.c.l.b16 %v982
        %v1122 = vunpack.c.h.b16 %v982
        %v1123 = vunpack.c.l.b16 %v983
        %v1124 = vunpack.c.h.b16 %v983
        %v1125 = vunpack.c.l.b16 %v984
        %v1126 = vunpack.c.h.b16 %v984
        %v1127 = vunpack.c.l.b16 %v985
        %v1128 = vunpack.c.h.b16 %v985
        %v1129 = vunpack.c.l.b16 %v986
        %v1130 = vunpack.c.h.b16 %v986
        %v1131 = vunpack.c.l.b16 %v987
        %v1132 = vunpack.c.h.b16 %v987
        %v1133 = vunpack.c.l.b16 %v988
        %v1134 = vunpack.c.h.b16 %v988
        %v1135 = vunpack.c.l.b16 %v989
        %v1136 = vunpack.c.h.b16 %v989
        %v1137 = vunpack.c.l.b16 %v990
        %v1138 = vunpack.c.h.b16 %v990
        %v1139 = vunpack.c.l.b16 %v991
        %v1140 = vunpack.c.h.b16 %v991
        %v1141 = vunpack.c.l.b16 %v992
        %v1142 = vunpack.c.h.b16 %v992
        %v1143 = vunpack.c.l.b16 %v993
        %v1144 = vunpack.c.h.b16 %v993
        %v1145 = vunpack.c.l.b16 %v994
        %v1146 = vunpack.c.h.b16 %v994
        %v1147 = vunpack.c.l.b16 %v995
        %v1148 = vunpack.c.h.b16 %v995
        %v1149 = vunpack.c.l.b16 %v996
        %v1150 = vunpack.c.h.b16 %v996
        %v1151 = vunpack.c.l.b16 %v997
        %v1152 = vunpack.c.h.b16 %v997
        %v1153 = vunpack.c.l.b16 %v998
        %v1154 = vunpack.c.h.b16 %v998
        %v1155 = vunpack.c.l.b16 %v999
        %v1156 = vunpack.c.h.b16 %v999
        %v1157 = vunpack.c.l.b16 %v1000
        %v1158 = vunpack.c.h.b16 %v1000
        %v1159 = vunpack.c.l.b16 %v1001
        %v1160 = vunpack.c.h.b16 %v1001
        %v1161 = vunpack.c.l.b16 %v1002
        %v1162 = vunpack.c.h.b16 %v1002
        %v1163 = vunpack.c.l.b16 %v1003
        %v1164 = vunpack.c.h.b16 %v1003
        %v1165 = vunpack.c.l.b16 %v1004
        %v1166 = vunpack.c.h.b16 %v1004
        %v1167 = vunpack.c.l.b16 %v1005
        %v1168 = vunpack.c.h.b16 %v1005
        %v1169 = vunpack.c.l.b16 %v1006
        %v1170 = vunpack.c.h.b16 %v1006
        %v1171 = vunpack.c.l.b16 %v1007
        %v1172 = vunpack.c.h.b16 %v1007
        %v1173 = vunpack.c.l.b16 %v1008
        %v1174 = vunpack.c.h.b16 %v1008
        %v1175 = vunpack.c.l.b16 %v1009
        %v1176 = vunpack.c.h.b16 %v1009
        %v1177 = vunpack.c.l.b16 %v1010
        %v1178 = vunpack.c.h.b16 %v1010
        %v1179 = vunpack.c.l.b16 %v1011
        %v1180 = vunpack.c.h.b16 %v1011
        %v1181 = vunpack.c.l.b16 %v1012
        %v1182 = vunpack.c.h.b16 %v1012
        %v1183 = vunpack.c.l.b16 %v1013
        %v1184 = vunpack.c.h.b16 %v1013
        %v1185 = vunpack.c.l.b16 %v1014
        %v1186 = vunpack.c.h.b16 %v1014
        %v1187 = vunpack.c.l.b16 %v1015
        %v1188 = vunpack.c.h.b16 %v1015
        %v1189 = vunpack.c.l.b16 %v1016
        %v1190 = vunpack.c.h.b16 %v1016
        %v1191 = vunpack.c.l.b16 %v1017
        %v1192 = vunpack.c.h.b16 %v1017
        %v1193 = vunpack.c.l.b16 %v1018
        %v1194 = vunpack.c.h.b16 %v1018
        %v1195 = vunpack.c.l.b16 %v1019
        %v1196 = vunpack.c.h.b16 %v1019
        %v1197 = vunpack.c.l.b16 %v1020
        %v1198 = vunpack.c.h.b16 %v1020
        %v1199 = vunpack.c.l.b16 %v1021
        %v1200 = vunpack.c.h.b16 %v1021
        %v1201 = vunpack.c.l.b16 %v1022
        %v1202 = vunpack.c.h.b16 %v1022
        %v1203 = vunpack.c.l.b16 %v1023
        %v1204 = vunpack.c.h.b16 %v1023
        %v1205 = vunpack.c.l.b16 %v1024
        %v1206 = vunpack.c.h.b16 %v1024
        %v1207 = vunpack.c.l.b16 %v1025
        %v1208 = vunpack.c.h.b16 %v1025
        %v1209 = vunpack.c.l.b16 %v1026
        %v1210 = vunpack.c.h.b16 %v1026
        %v1211 = vunpack.c.l.b16 %v1027
        %v1212 = vunpack.c.h.b16 %v1027
        %v1213 = vunpack.c.l.b16 %v1028
        %v1214 = vunpack.c.h.b16 %v1028
        %v1215 = vunpack.c.l.b16 %v1029
        %v1216 = vunpack.c.h.b16 %v1029
        %v1217 = vunpack.c.l.b16 %v1030
        %v1218 = vunpack.c.h.b16 %v1030
        %v1219 = vunpack.c.l.b16 %v1031
        %v1220 = vunpack.c.h.b16 %v1031
        %v1221 = vunpack.c.l.b16 %v1032
        %v1222 = vunpack.c.h.b16 %v1032
        %v1223 = vunpack.c.l.b16 %v1033
        %v1224 = vunpack.c.h.b16 %v1033
        %v1225 = vunpack.c.l.b16 %v1034
        %v1226 = vunpack.c.h.b16 %v1034
        %v1227 = vpack.c.b16 %v1107, %v1099
        %v1228 = vpack.c.b16 %v1108, %v1100
        %v1229 = vpack.c.b16 %v1109, %v1101
        %v1230 = vpack.c.b16 %v1110, %v1102
        %v1231 = vpack.c.b16 %v1111, %v1103
        %v1232 = vpack.c.b16 %v1112, %v1104
        %v1233 = vpack.c.b16 %v1113, %v1105
        %v1234 = vpack.c.b16 %v1114, %v1106
        %v1235 = vpack.c.b16 %v1123, %v1115
        %v1236 = vpack.c.b16 %v1124, %v1116
        %v1237 = vpack.c.b16 %v1125, %v1117
        %v1238 = vpack.c.b16 %v1126, %v1118
        %v1239 = vpack.c.b16 %v1127, %v1119
        %v1240 = vpack.c.b16 %v1128, %v1120
        %v1241 = vpack.c.b16 %v1129, %v1121
        %v1242 = vpack.c.b16 %v1130, %v1122
        %v1243 = vpack.c.b16 %v1139, %v1131
        %v1244 = vpack.c.b16 %v1140, %v1132
        %v1245 = vpack.c.b16 %v1141, %v1133
        %v1246 = vpack.c.b16 %v1142, %v1134
        %v1247 = vpack.c.b16 %v1143, %v1135
        %v1248 = vpack.c.b16 %v1144, %v1136
        %v1249 = vpack.c.b16 %v1145, %v1137
        %v1250 = vpack.c.b16 %v1146, %v1138
        %v1251 = vpack.c.b16 %v1155, %v1147
        %v1252 = vpack.c.b16 %v1156, %v1148
        %v1253 = vpack.c.b16 %v1157, %v1149
        %v1254 = vpack.c.b16 %v1158, %v1150
        %v1255 = vpack.c.b16 %v1159, %v1151
        %v1256 = vpack.c.b16 %v1160, %v1152
        %v1257 = vpack.c.b16 %v1161, %v1153
        %v1258 = vpack.c.b16 %v1162, %v1154
        %v1259 = vpack.c.b16 %v1171, %v1163
        %v1260 = vpack.c.b16 %v1172, %v1164
        %v1261 = vpack.c.b16 %v1173, %v1165
        %v1262 = vpack.c.b16 %v1174, %v1166
        %v1263 = vpack.c.b16 %v1175, %v1167
        %v1264 = vpack.c.b16 %v1176, %v1168
        %v1265 = vpack.c.b16 %v1177, %v1169
        %v1266 = vpack.c.b16 %v1178, %v1170
        %v1267 = vpack.c.b16 %v1187, %v1179
        %v1268 = vpack.c.b16 %v1188, %v1180
        %v1269 = vpack.c.b16 %v1189, %v1181
        %v1270 = vpack.c.b16 %v1190, %v1182
        %v1271 = vpack.c.b16 %v1191, %v1183
        %v1272 = vpack.c.b16 %v1192, %v1184
        %v1273 = vpack.c.b16 %v1193, %v1185
        %v1274 = vpack.c.b16 %v1194, %v1186
        %v1275 = vpack.c.b16 %v1203, %v1195
        %v1276 = vpack.c.b16 %v1204, %v1196
        %v1277 = vpack.c.b16 %v1205, %v1197
        %v1278 = vpack.c.b16 %v1206, %v1198
        %v1279 = vpack.c.b16 %v1207, %v1199
        %v1280 = vpack.c.b16 %v1208, %v1200
        %v1281 = vpack.c.b16 %v1209, %v1201
        %v1282 = vpack.c.b16 %v1210, %v1202
        %v1283 = vpack.c.b16 %v1219, %v1211
        %v1284 = vpack.c.b16 %v1220, %v1212
        %v1285 = vpack.c.b16 %v1221, %v1213
        %v1286 = vpack.c.b16 %v1222, %v1214
        %v1287 = vpack.c.b16 %v1223, %v1215
        %v1288 = vpack.c.b16 %v1224, %v1216
        %v1289 = vpack.c.b16 %v1225, %v1217
        %v1290 = vpack.c.b16 %v1226, %v1218
        %1355 = vmatprep.subr.bf16.mxu0 %v1228
        %1356 = vmatpush1.bf16.msra.mxu0 %v1227
        %1357 = vmatprep.subr.bf16.mxu0 %v1236
        %1358 = vmatpush1.bf16.msra.mxu0 %v1235
        %1359 = vmatprep.subr.bf16.mxu0 %v1244
        %1360 = vmatpush1.bf16.msra.mxu0 %v1243
        %1361 = vmatprep.subr.bf16.mxu0 %v1252
        %1362 = vmatpush1.bf16.msra.mxu0 %v1251
        %1363 = vmatprep.subr.bf16.mxu0 %v1260
        %1364 = vmatpush1.bf16.msra.mxu0 %v1259
        %1365 = vmatprep.subr.bf16.mxu0 %v1268
        %1366 = vmatpush1.bf16.msra.mxu0 %v1267
        %1367 = vmatprep.subr.bf16.mxu0 %v1276
        %1368 = vmatpush1.bf16.msra.mxu0 %v1275
        %1369 = vmatprep.subr.bf16.mxu0 %v1284
        %1370 = vmatpush1.bf16.msra.mxu0 %v1283
        %1371 = vmatprep.subr.bf16.mxu0 0
        %1372 = vmatpush1.bf16.msra.mxu0 0
        %1373 = vmatprep.subr.bf16.mxu0 0
        %1374 = vmatpush1.bf16.msra.mxu0 0
        %1375 = vmatprep.subr.bf16.mxu0 0
        %1376 = vmatpush1.bf16.msra.mxu0 0
        %1377 = vmatprep.subr.bf16.mxu0 0
        %1378 = vmatpush1.bf16.msra.mxu0 0
        %1379 = vmatprep.subr.bf16.mxu0 0
        %1380 = vmatpush1.bf16.msra.mxu0 0
        %1381 = vmatprep.subr.bf16.mxu0 0
        %1382 = vmatpush1.bf16.msra.mxu0 0
        %1383 = vmatprep.subr.bf16.mxu0 0
        %1384 = vmatpush1.bf16.msra.mxu0 0
        %1385 = vmatprep.subr.bf16.mxu0 0
        %1386 = vmatpush1.bf16.msra.mxu0 0
        %1387 = vmatprep.mubr.bf16.mxu0 0
        %1388 = vmatmul.mubr.bf16.gmra.mrb[0].mxu0 %v970
        %v1389 = vpop.f32.mrb[0].mxu0
        %v1390 = vadd.f32 0.0, %v1389
        %v1391 = vpop.f32.mrb[0].mxu0
        %v1392 = vadd.f32 0.0, %v1391
        %v1393 = vpop.f32.mrb[0].mxu0
        %v1394 = vadd.f32 0.0, %v1393
        %v1395 = vpop.f32.mrb[0].mxu0
        %v1396 = vadd.f32 0.0, %v1395
        %1397 = vdwg.mxu0
        %1398 = vmatprep.subr.bf16.mxu0 %v1230
        %1399 = vmatpush1.bf16.msra.mxu0 %v1229
        %1400 = vmatprep.subr.bf16.mxu0 %v1238
        %1401 = vmatpush1.bf16.msra.mxu0 %v1237
        %1402 = vmatprep.subr.bf16.mxu0 %v1246
        %1403 = vmatpush1.bf16.msra.mxu0 %v1245
        %1404 = vmatprep.subr.bf16.mxu0 %v1254
        %1405 = vmatpush1.bf16.msra.mxu0 %v1253
        %1406 = vmatprep.subr.bf16.mxu0 %v1262
        %1407 = vmatpush1.bf16.msra.mxu0 %v1261
        %1408 = vmatprep.subr.bf16.mxu0 %v1270
        %1409 = vmatpush1.bf16.msra.mxu0 %v1269
        %1410 = vmatprep.subr.bf16.mxu0 %v1278
        %1411 = vmatpush1.bf16.msra.mxu0 %v1277
        %1412 = vmatprep.subr.bf16.mxu0 %v1286
        %1413 = vmatpush1.bf16.msra.mxu0 %v1285
        %1414 = vmatprep.subr.bf16.mxu0 0
        %1415 = vmatpush1.bf16.msra.mxu0 0
        %1416 = vmatprep.subr.bf16.mxu0 0
        %1417 = vmatpush1.bf16.msra.mxu0 0
        %1418 = vmatprep.subr.bf16.mxu0 0
        %1419 = vmatpush1.bf16.msra.mxu0 0
        %1420 = vmatprep.subr.bf16.mxu0 0
        %1421 = vmatpush1.bf16.msra.mxu0 0
        %1422 = vmatprep.subr.bf16.mxu0 0
        %1423 = vmatpush1.bf16.msra.mxu0 0
        %1424 = vmatprep.subr.bf16.mxu0 0
        %1425 = vmatpush1.bf16.msra.mxu0 0
        %1426 = vmatprep.subr.bf16.mxu0 0
        %1427 = vmatpush1.bf16.msra.mxu0 0
        %1428 = vmatprep.subr.bf16.mxu0 0
        %1429 = vmatpush1.bf16.msra.mxu0 0
        %1430 = vmatprep.mubr.bf16.mxu0 0
        %1431 = vmatmul.mubr.bf16.gmra.mrb[0].mxu0 %v970
        %v1432 = vpop.f32.mrb[0].mxu0
        %v1433 = vadd.f32 0.0, %v1432
        %v1434 = vpop.f32.mrb[0].mxu0
        %v1435 = vadd.f32 0.0, %v1434
        %v1436 = vpop.f32.mrb[0].mxu0
        %v1437 = vadd.f32 0.0, %v1436
        %v1438 = vpop.f32.mrb[0].mxu0
        %v1439 = vadd.f32 0.0, %v1438
        %1440 = vdwg.mxu0
        %1441 = vmatprep.subr.bf16.mxu0 %v1232
        %1442 = vmatpush1.bf16.msra.mxu0 %v1231
        %1443 = vmatprep.subr.bf16.mxu0 %v1240
        %1444 = vmatpush1.bf16.msra.mxu0 %v1239
        %1445 = vmatprep.subr.bf16.mxu0 %v1248
        %1446 = vmatpush1.bf16.msra.mxu0 %v1247
        %1447 = vmatprep.subr.bf16.mxu0 %v1256
        %1448 = vmatpush1.bf16.msra.mxu0 %v1255
        %1449 = vmatprep.subr.bf16.mxu0 %v1264
        %1450 = vmatpush1.bf16.msra.mxu0 %v1263
        %1451 = vmatprep.subr.bf16.mxu0 %v1272
        %1452 = vmatpush1.bf16.msra.mxu0 %v1271
        %1453 = vmatprep.subr.bf16.mxu0 %v1280
        %1454 = vmatpush1.bf16.msra.mxu0 %v1279
        %1455 = vmatprep.subr.bf16.mxu0 %v1288
        %1456 = vmatpush1.bf16.msra.mxu0 %v1287
        %1457 = vmatprep.subr.bf16.mxu0 0
        %1458 = vmatpush1.bf16.msra.mxu0 0
        %1459 = vmatprep.subr.bf16.mxu0 0
        %1460 = vmatpush1.bf16.msra.mxu0 0
        %1461 = vmatprep.subr.bf16.mxu0 0
        %1462 = vmatpush1.bf16.msra.mxu0 0
        %1463 = vmatprep.subr.bf16.mxu0 0
        %1464 = vmatpush1.bf16.msra.mxu0 0
        %1465 = vmatprep.subr.bf16.mxu0 0
        %1466 = vmatpush1.bf16.msra.mxu0 0
        %1467 = vmatprep.subr.bf16.mxu0 0
        %1468 = vmatpush1.bf16.msra.mxu0 0
        %1469 = vmatprep.subr.bf16.mxu0 0
        %1470 = vmatpush1.bf16.msra.mxu0 0
        %1471 = vmatprep.subr.bf16.mxu0 0
        %1472 = vmatpush1.bf16.msra.mxu0 0
        %1473 = vmatprep.mubr.bf16.mxu0 0
        %1474 = vmatmul.mubr.bf16.gmra.mrb[0].mxu0 %v970
        %v1475 = vpop.f32.mrb[0].mxu0
        %v1476 = vadd.f32 0.0, %v1475
        %v1477 = vpop.f32.mrb[0].mxu0
        %v1478 = vadd.f32 0.0, %v1477
        %v1479 = vpop.f32.mrb[0].mxu0
        %v1480 = vadd.f32 0.0, %v1479
        %v1481 = vpop.f32.mrb[0].mxu0
        %v1482 = vadd.f32 0.0, %v1481
        %1483 = vdwg.mxu0
        %1484 = vmatprep.subr.bf16.mxu0 %v1234
        %1485 = vmatpush1.bf16.msra.mxu0 %v1233
        %1486 = vmatprep.subr.bf16.mxu0 %v1242
        %1487 = vmatpush1.bf16.msra.mxu0 %v1241
        %1488 = vmatprep.subr.bf16.mxu0 %v1250
        %1489 = vmatpush1.bf16.msra.mxu0 %v1249
        %1490 = vmatprep.subr.bf16.mxu0 %v1258
        %1491 = vmatpush1.bf16.msra.mxu0 %v1257
        %1492 = vmatprep.subr.bf16.mxu0 %v1266
        %1493 = vmatpush1.bf16.msra.mxu0 %v1265
        %1494 = vmatprep.subr.bf16.mxu0 %v1274
        %1495 = vmatpush1.bf16.msra.mxu0 %v1273
        %1496 = vmatprep.subr.bf16.mxu0 %v1282
        %1497 = vmatpush1.bf16.msra.mxu0 %v1281
        %1498 = vmatprep.subr.bf16.mxu0 %v1290
        %1499 = vmatpush1.bf16.msra.mxu0 %v1289
        %1500 = vmatprep.subr.bf16.mxu0 0
        %1501 = vmatpush1.bf16.msra.mxu0 0
        %1502 = vmatprep.subr.bf16.mxu0 0
        %1503 = vmatpush1.bf16.msra.mxu0 0
        %1504 = vmatprep.subr.bf16.mxu0 0
        %1505 = vmatpush1.bf16.msra.mxu0 0
        %1506 = vmatprep.subr.bf16.mxu0 0
        %1507 = vmatpush1.bf16.msra.mxu0 0
        %1508 = vmatprep.subr.bf16.mxu0 0
        %1509 = vmatpush1.bf16.msra.mxu0 0
        %1510 = vmatprep.subr.bf16.mxu0 0
        %1511 = vmatpush1.bf16.msra.mxu0 0
        %1512 = vmatprep.subr.bf16.mxu0 0
        %1513 = vmatpush1.bf16.msra.mxu0 0
        %1514 = vmatprep.subr.bf16.mxu0 0
        %1515 = vmatpush1.bf16.msra.mxu0 0
        %1516 = vmatprep.mubr.bf16.mxu0 0
        %1517 = vmatmul.mubr.bf16.gmra.mrb[0].mxu0 %v970
        %v1518 = vpop.f32.mrb[0].mxu0
        %v1519 = vadd.f32 0.0, %v1518
        %v1520 = vpop.f32.mrb[0].mxu0
        %v1521 = vadd.f32 0.0, %v1520
        %v1522 = vpop.f32.mrb[0].mxu0
        %v1523 = vadd.f32 0.0, %v1522
        %v1524 = vpop.f32.mrb[0].mxu0
        %v1525 = vadd.f32 0.0, %v1524
        %1526 = vdwg.mxu0
        %v1527 = vxor.u32 %v1390, 2147483648
        %v1528 = vxor.u32 %v1392, 2147483648
        %v1529 = vxor.u32 %v1433, 2147483648
        %v1530 = vxor.u32 %v1435, 2147483648
        %v1531 = vxor.u32 %v1394, 2147483648
        %v1532 = vxor.u32 %v1396, 2147483648
        %v1533 = vxor.u32 %v1437, 2147483648
        %v1534 = vxor.u32 %v1439, 2147483648
        %v1535 = vmul.f32 %v1527, 1.442695
        %v1536 = vpow.pop %v1535
        %v1537 = vmul.f32 %v1528, 1.442695
        %v1538 = vpow.pop %v1537
        %v1539 = vmul.f32 %v1529, 1.442695
        %v1540 = vpow.pop %v1539
        %v1541 = vmul.f32 %v1530, 1.442695
        %v1542 = vpow.pop %v1541
        %v1543 = vmul.f32 %v1531, 1.442695
        %v1544 = vpow.pop %v1543
        %v1545 = vmul.f32 %v1532, 1.442695
        %v1546 = vpow.pop %v1545
        %v1547 = vmul.f32 %v1533, 1.442695
        %v1548 = vpow.pop %v1547
        %v1549 = vmul.f32 %v1534, 1.442695
        %v1550 = vpow.pop %v1549
        %v1551 = vadd.f32 %v1536, 1.0
        %v1552 = vadd.f32 %v1538, 1.0
        %v1553 = vadd.f32 %v1540, 1.0
        %v1554 = vadd.f32 %v1542, 1.0
        %v1555 = vadd.f32 %v1544, 1.0
        %v1556 = vadd.f32 %v1546, 1.0
        %v1557 = vadd.f32 %v1548, 1.0
        %v1558 = vadd.f32 %v1550, 1.0
        %v1559 = vrcp.pop %v1551
        %v1560 = vmul.f32 1.0, %v1559
        %v1561 = vrcp.pop %v1552
        %v1562 = vmul.f32 1.0, %v1561
        %v1563 = vrcp.pop %v1553
        %v1564 = vmul.f32 1.0, %v1563
        %v1565 = vrcp.pop %v1554
        %v1566 = vmul.f32 1.0, %v1565
        %v1567 = vrcp.pop %v1555
        %v1568 = vmul.f32 1.0, %v1567
        %v1569 = vrcp.pop %v1556
        %v1570 = vmul.f32 1.0, %v1569
        %v1571 = vrcp.pop %v1557
        %v1572 = vmul.f32 1.0, %v1571
        %v1573 = vrcp.pop %v1558
        %v1574 = vmul.f32 1.0, %v1573
        %v1575 = vmul.f32 %v1390, %v1560
        %v1576 = vmul.f32 %v1392, %v1562
        %v1577 = vmul.f32 %v1433, %v1564
        %v1578 = vmul.f32 %v1435, %v1566
        %v1579 = vmul.f32 %v1394, %v1568
        %v1580 = vmul.f32 %v1396, %v1570
        %v1581 = vmul.f32 %v1437, %v1572
        %v1582 = vmul.f32 %v1439, %v1574
        %v1583 = vmul.f32 %v1575, %v1476
        %v1584 = vmul.f32 %v1576, %v1478
        %v1585 = vmul.f32 %v1577, %v1519
        %v1586 = vmul.f32 %v1578, %v1521
        %v1587 = vmul.f32 %v1579, %v1480
        %v1588 = vmul.f32 %v1580, %v1482
        %v1589 = vmul.f32 %v1581, %v1523
        %v1590 = vmul.f32 %v1582, %v1525
        %v1591 = vpack.c.bf16 %v1587, %v1583
        %v1592 = vpack.c.bf16 %v1588, %v1584
        %v1593 = vpack.c.bf16 %v1589, %v1585
        %v1594 = vpack.c.bf16 %v1590, %v1586
        %v1595 = vld [vmem:[#allocation10] sm:$0xf]
        %v1596 = vld [vmem:[#allocation10 + $0x4] sm:$0xf]
        %v1597 = vld [vmem:[#allocation10 + $0x8] sm:$0xf]
        %v1598 = vld [vmem:[#allocation10 + $0xc] sm:$0xf]
        %v1599 = vld [vmem:[#allocation10 + $0x10] sm:$0xf]
        %v1600 = vld [vmem:[#allocation10 + $0x14] sm:$0xf]
        %v1601 = vld [vmem:[#allocation10 + $0x18] sm:$0xf]
        %v1602 = vld [vmem:[#allocation10 + $0x1c] sm:$0xf]
        %v1603 = vld [vmem:[#allocation10 + $0x20] sm:$0xf]
        %v1604 = vld [vmem:[#allocation10 + $0x24] sm:$0xf]
        %v1605 = vld [vmem:[#allocation10 + $0x28] sm:$0xf]
        %v1606 = vld [vmem:[#allocation10 + $0x2c] sm:$0xf]
        %v1607 = vld [vmem:[#allocation10 + $0x30] sm:$0xf]
        %v1608 = vld [vmem:[#allocation10 + $0x34] sm:$0xf]
        %v1609 = vld [vmem:[#allocation10 + $0x38] sm:$0xf]
        %v1610 = vld [vmem:[#allocation10 + $0x3c] sm:$0xf]
        %v1611 = vld [vmem:[#allocation10 + $0x40] sm:$0xf]
        %v1612 = vld [vmem:[#allocation10 + $0x44] sm:$0xf]
        %v1613 = vld [vmem:[#allocation10 + $0x48] sm:$0xf]
        %v1614 = vld [vmem:[#allocation10 + $0x4c] sm:$0xf]
        %v1615 = vld [vmem:[#allocation10 + $0x50] sm:$0xf]
        %v1616 = vld [vmem:[#allocation10 + $0x54] sm:$0xf]
        %v1617 = vld [vmem:[#allocation10 + $0x58] sm:$0xf]
        %v1618 = vld [vmem:[#allocation10 + $0x5c] sm:$0xf]
        %v1619 = vld [vmem:[#allocation10 + $0x60] sm:$0xf]
        %v1620 = vld [vmem:[#allocation10 + $0x64] sm:$0xf]
        %v1621 = vld [vmem:[#allocation10 + $0x68] sm:$0xf]
        %v1622 = vld [vmem:[#allocation10 + $0x6c] sm:$0xf]
        %v1623 = vld [vmem:[#allocation10 + $0x70] sm:$0xf]
        %v1624 = vld [vmem:[#allocation10 + $0x74] sm:$0xf]
        %v1625 = vld [vmem:[#allocation10 + $0x78] sm:$0xf]
        %v1626 = vld [vmem:[#allocation10 + $0x7c] sm:$0xf]
        %v1627 = vld [vmem:[#allocation10 + $0x80] sm:$0xf]
        %v1628 = vld [vmem:[#allocation10 + $0x84] sm:$0xf]
        %v1629 = vld [vmem:[#allocation10 + $0x88] sm:$0xf]
        %v1630 = vld [vmem:[#allocation10 + $0x8c] sm:$0xf]
        %v1631 = vld [vmem:[#allocation10 + $0x90] sm:$0xf]
        %v1632 = vld [vmem:[#allocation10 + $0x94] sm:$0xf]
        %v1633 = vld [vmem:[#allocation10 + $0x98] sm:$0xf]
        %v1634 = vld [vmem:[#allocation10 + $0x9c] sm:$0xf]
        %v1635 = vld [vmem:[#allocation10 + $0xa0] sm:$0xf]
        %v1636 = vld [vmem:[#allocation10 + $0xa4] sm:$0xf]
        %v1637 = vld [vmem:[#allocation10 + $0xa8] sm:$0xf]
        %v1638 = vld [vmem:[#allocation10 + $0xac] sm:$0xf]
        %v1639 = vld [vmem:[#allocation10 + $0xb0] sm:$0xf]
        %v1640 = vld [vmem:[#allocation10 + $0xb4] sm:$0xf]
        %v1641 = vld [vmem:[#allocation10 + $0xb8] sm:$0xf]
        %v1642 = vld [vmem:[#allocation10 + $0xbc] sm:$0xf]
        %v1643 = vld [vmem:[#allocation10 + $0xc0] sm:$0xf]
        %v1644 = vld [vmem:[#allocation10 + $0xc4] sm:$0xf]
        %v1645 = vld [vmem:[#allocation10 + $0xc8] sm:$0xf]
        %v1646 = vld [vmem:[#allocation10 + $0xcc] sm:$0xf]
        %v1647 = vld [vmem:[#allocation10 + $0xd0] sm:$0xf]
        %v1648 = vld [vmem:[#allocation10 + $0xd4] sm:$0xf]
        %v1649 = vld [vmem:[#allocation10 + $0xd8] sm:$0xf]
        %v1650 = vld [vmem:[#allocation10 + $0xdc] sm:$0xf]
        %v1651 = vld [vmem:[#allocation10 + $0xe0] sm:$0xf]
        %v1652 = vld [vmem:[#allocation10 + $0xe4] sm:$0xf]
        %v1653 = vld [vmem:[#allocation10 + $0xe8] sm:$0xf]
        %v1654 = vld [vmem:[#allocation10 + $0xec] sm:$0xf]
        %v1655 = vld [vmem:[#allocation10 + $0xf0] sm:$0xf]
        %v1656 = vld [vmem:[#allocation10 + $0xf4] sm:$0xf]
        %v1657 = vld [vmem:[#allocation10 + $0xf8] sm:$0xf]
        %v1658 = vld [vmem:[#allocation10 + $0xfc] sm:$0xf]
        %v1723 = vunpack.c.l.b16 %v1595
        %v1724 = vunpack.c.l.b16 %v1596
        %v1725 = vunpack.c.l.b16 %v1597
        %v1726 = vunpack.c.l.b16 %v1598
        %v1727 = vunpack.c.l.b16 %v1599
        %v1728 = vunpack.c.l.b16 %v1600
        %v1729 = vunpack.c.l.b16 %v1601
        %v1730 = vunpack.c.l.b16 %v1602
        %v1731 = vunpack.c.l.b16 %v1603
        %v1732 = vunpack.c.l.b16 %v1604
        %v1733 = vunpack.c.l.b16 %v1605
        %v1734 = vunpack.c.l.b16 %v1606
        %v1735 = vunpack.c.l.b16 %v1607
        %v1736 = vunpack.c.l.b16 %v1608
        %v1737 = vunpack.c.l.b16 %v1609
        %v1738 = vunpack.c.l.b16 %v1610
        %v1739 = vunpack.c.l.b16 %v1611
        %v1740 = vunpack.c.l.b16 %v1612
        %v1741 = vunpack.c.l.b16 %v1613
        %v1742 = vunpack.c.l.b16 %v1614
        %v1743 = vunpack.c.l.b16 %v1615
        %v1744 = vunpack.c.l.b16 %v1616
        %v1745 = vunpack.c.l.b16 %v1617
        %v1746 = vunpack.c.l.b16 %v1618
        %v1747 = vunpack.c.l.b16 %v1619
        %v1748 = vunpack.c.l.b16 %v1620
        %v1749 = vunpack.c.l.b16 %v1621
        %v1750 = vunpack.c.l.b16 %v1622
        %v1751 = vunpack.c.l.b16 %v1623
        %v1752 = vunpack.c.l.b16 %v1624
        %v1753 = vunpack.c.l.b16 %v1625
        %v1754 = vunpack.c.l.b16 %v1626
        %v1755 = vunpack.c.l.b16 %v1627
        %v1756 = vunpack.c.l.b16 %v1628
        %v1757 = vunpack.c.l.b16 %v1629
        %v1758 = vunpack.c.l.b16 %v1630
        %v1759 = vunpack.c.l.b16 %v1631
        %v1760 = vunpack.c.l.b16 %v1632
        %v1761 = vunpack.c.l.b16 %v1633
        %v1762 = vunpack.c.l.b16 %v1634
        %v1763 = vunpack.c.l.b16 %v1635
        %v1764 = vunpack.c.l.b16 %v1636
        %v1765 = vunpack.c.l.b16 %v1637
        %v1766 = vunpack.c.l.b16 %v1638
        %v1767 = vunpack.c.l.b16 %v1639
        %v1768 = vunpack.c.l.b16 %v1640
        %v1769 = vunpack.c.l.b16 %v1641
        %v1770 = vunpack.c.l.b16 %v1642
        %v1771 = vunpack.c.l.b16 %v1643
        %v1772 = vunpack.c.l.b16 %v1644
        %v1773 = vunpack.c.l.b16 %v1645
        %v1774 = vunpack.c.l.b16 %v1646
        %v1775 = vunpack.c.l.b16 %v1647
        %v1776 = vunpack.c.l.b16 %v1648
        %v1777 = vunpack.c.l.b16 %v1649
        %v1778 = vunpack.c.l.b16 %v1650
        %v1779 = vunpack.c.l.b16 %v1651
        %v1780 = vunpack.c.l.b16 %v1652
        %v1781 = vunpack.c.l.b16 %v1653
        %v1782 = vunpack.c.l.b16 %v1654
        %v1783 = vunpack.c.l.b16 %v1655
        %v1784 = vunpack.c.l.b16 %v1656
        %v1785 = vunpack.c.l.b16 %v1657
        %v1786 = vunpack.c.l.b16 %v1658
        %v1787 = vpack.c.b16 %v1724, %v1723
        %v1788 = vpack.c.b16 %v1726, %v1725
        %v1789 = vpack.c.b16 %v1728, %v1727
        %v1790 = vpack.c.b16 %v1730, %v1729
        %v1791 = vpack.c.b16 %v1732, %v1731
        %v1792 = vpack.c.b16 %v1734, %v1733
        %v1793 = vpack.c.b16 %v1736, %v1735
        %v1794 = vpack.c.b16 %v1738, %v1737
        %v1795 = vpack.c.b16 %v1740, %v1739
        %v1796 = vpack.c.b16 %v1742, %v1741
        %v1797 = vpack.c.b16 %v1744, %v1743
        %v1798 = vpack.c.b16 %v1746, %v1745
        %v1799 = vpack.c.b16 %v1748, %v1747
        %v1800 = vpack.c.b16 %v1750, %v1749
        %v1801 = vpack.c.b16 %v1752, %v1751
        %v1802 = vpack.c.b16 %v1754, %v1753
        %v1803 = vpack.c.b16 %v1756, %v1755
        %v1804 = vpack.c.b16 %v1758, %v1757
        %v1805 = vpack.c.b16 %v1760, %v1759
        %v1806 = vpack.c.b16 %v1762, %v1761
        %v1807 = vpack.c.b16 %v1764, %v1763
        %v1808 = vpack.c.b16 %v1766, %v1765
        %v1809 = vpack.c.b16 %v1768, %v1767
        %v1810 = vpack.c.b16 %v1770, %v1769
        %v1811 = vpack.c.b16 %v1772, %v1771
        %v1812 = vpack.c.b16 %v1774, %v1773
        %v1813 = vpack.c.b16 %v1776, %v1775
        %v1814 = vpack.c.b16 %v1778, %v1777
        %v1815 = vpack.c.b16 %v1780, %v1779
        %v1816 = vpack.c.b16 %v1782, %v1781
        %v1817 = vpack.c.b16 %v1784, %v1783
        %v1818 = vpack.c.b16 %v1786, %v1785
        %1851 = vmatprep.subr.bf16.mxu0 0
        %1852 = vmatpush1.bf16.msra.mxu0 %v1787
        %1853 = vmatprep.subr.bf16.mxu0 0
        %1854 = vmatpush1.bf16.msra.mxu0 %v1788
        %1855 = vmatprep.subr.bf16.mxu0 0
        %1856 = vmatpush1.bf16.msra.mxu0 %v1789
        %1857 = vmatprep.subr.bf16.mxu0 0
        %1858 = vmatpush1.bf16.msra.mxu0 %v1790
        %1859 = vmatprep.subr.bf16.mxu0 0
        %1860 = vmatpush1.bf16.msra.mxu0 %v1791
        %1861 = vmatprep.subr.bf16.mxu0 0
        %1862 = vmatpush1.bf16.msra.mxu0 %v1792
        %1863 = vmatprep.subr.bf16.mxu0 0
        %1864 = vmatpush1.bf16.msra.mxu0 %v1793
        %1865 = vmatprep.subr.bf16.mxu0 0
        %1866 = vmatpush1.bf16.msra.mxu0 %v1794
        %1867 = vmatprep.subr.bf16.mxu0 0
        %1868 = vmatpush1.bf16.msra.mxu0 %v1795
        %1869 = vmatprep.subr.bf16.mxu0 0
        %1870 = vmatpush1.bf16.msra.mxu0 %v1796
        %1871 = vmatprep.subr.bf16.mxu0 0
        %1872 = vmatpush1.bf16.msra.mxu0 %v1797
        %1873 = vmatprep.subr.bf16.mxu0 0
        %1874 = vmatpush1.bf16.msra.mxu0 %v1798
        %1875 = vmatprep.subr.bf16.mxu0 0
        %1876 = vmatpush1.bf16.msra.mxu0 %v1799
        %1877 = vmatprep.subr.bf16.mxu0 0
        %1878 = vmatpush1.bf16.msra.mxu0 %v1800
        %1879 = vmatprep.subr.bf16.mxu0 0
        %1880 = vmatpush1.bf16.msra.mxu0 %v1801
        %1881 = vmatprep.subr.bf16.mxu0 0
        %1882 = vmatpush1.bf16.msra.mxu0 %v1802
        %1883 = vmatprep.mubr.bf16.mxu0 %v1592
        %1884 = vmatmul.mubr.bf16.gmra.mrb[0].mxu0 %v1591
        %v1885 = vpop.f32.mrb[0].mxu0
        %v1886 = vadd.f32 0.0, %v1885
        %v1887 = vpop.f32.mrb[0].mxu0
        %v1888 = vpop.f32.mrb[0].mxu0
        %v1889 = vadd.f32 0.0, %v1888
        %v1890 = vpop.f32.mrb[0].mxu0
        %1891 = vdwg.mxu0
        %1892 = vmatprep.subr.bf16.mxu0 0
        %1893 = vmatpush1.bf16.msra.mxu0 %v1803
        %1894 = vmatprep.subr.bf16.mxu0 0
        %1895 = vmatpush1.bf16.msra.mxu0 %v1804
        %1896 = vmatprep.subr.bf16.mxu0 0
        %1897 = vmatpush1.bf16.msra.mxu0 %v1805
        %1898 = vmatprep.subr.bf16.mxu0 0
        %1899 = vmatpush1.bf16.msra.mxu0 %v1806
        %1900 = vmatprep.subr.bf16.mxu0 0
        %1901 = vmatpush1.bf16.msra.mxu0 %v1807
        %1902 = vmatprep.subr.bf16.mxu0 0
        %1903 = vmatpush1.bf16.msra.mxu0 %v1808
        %1904 = vmatprep.subr.bf16.mxu0 0
        %1905 = vmatpush1.bf16.msra.mxu0 %v1809
        %1906 = vmatprep.subr.bf16.mxu0 0
        %1907 = vmatpush1.bf16.msra.mxu0 %v1810
        %1908 = vmatprep.subr.bf16.mxu0 0
        %1909 = vmatpush1.bf16.msra.mxu0 %v1811
        %1910 = vmatprep.subr.bf16.mxu0 0
        %1911 = vmatpush1.bf16.msra.mxu0 %v1812
        %1912 = vmatprep.subr.bf16.mxu0 0
        %1913 = vmatpush1.bf16.msra.mxu0 %v1813
        %1914 = vmatprep.subr.bf16.mxu0 0
        %1915 = vmatpush1.bf16.msra.mxu0 %v1814
        %1916 = vmatprep.subr.bf16.mxu0 0
        %1917 = vmatpush1.bf16.msra.mxu0 %v1815
        %1918 = vmatprep.subr.bf16.mxu0 0
        %1919 = vmatpush1.bf16.msra.mxu0 %v1816
        %1920 = vmatprep.subr.bf16.mxu0 0
        %1921 = vmatpush1.bf16.msra.mxu0 %v1817
        %1922 = vmatprep.subr.bf16.mxu0 0
        %1923 = vmatpush1.bf16.msra.mxu0 %v1818
        %1924 = vmatprep.mubr.bf16.mxu0 %v1594
        %1925 = vmatmul.mubr.bf16.gmra.mrb[0].mxu0 %v1593
        %v1926 = vpop.f32.mrb[0].mxu0
        %v1927 = vadd.f32 %v1886, %v1926
        %v1928 = vpop.f32.mrb[0].mxu0
        %v1929 = vpop.f32.mrb[0].mxu0
        %v1930 = vadd.f32 %v1889, %v1929
        %v1931 = vpop.f32.mrb[0].mxu0
        %1932 = vdwg.mxu0
        %v1933 = vadd.f32 %v945, %v1927
        %v1934 = vadd.f32 %v946, %v1930
        %1935 = vst [vmem:[%s381] sm:$0xff] %v1933
        %1936 = vst [vmem:[%s381 + $0x8] sm:$0xff] %v1934
        %s1937 = sand.u32 %s208, 1
        %s1938 = scalar_lea.sflag [#allocation4], %s1937
        %s1939 = sand.u32 %s208, 1
        %s1940 = smul.addr %s1939, 16
        %s1941 = scalar_lea.vmem [#allocation11], %s1940
        // Predicated region
        $region73: #{tpu_custom_call.1} parent=51 // pred_check
          %p1942 = pneg %p218
        $region74: #{tpu_custom_call.1} parent=51 // pred_check_branch
          %1944 = sbr.rel (%p1942) target = $region76
        $region75: #{tpu_custom_call.1} parent=51 // pred_region
          %s1945 = smul.u32 2, %s27
          %s1947 = ssub.s32 256, 256
          %1948 = vsyncadd %s1938, %s1947
          %s1949 = smul.addr %s1945, 128
          %s1950 = scalar_lea.hbm %s8, %s1949
          %s1951 = sshll.u32 %s1941, 4
          %s1952 = int_to_ptr.vmem [resolvable:$true] %s1951
          %1957 = dma.vmem_to_hbm [thread:$0]  %s1952, 256, %s1950, %s1938, 128, 128, 8
        $region76: #{tpu_custom_call.1} parent=51 // pred_fallthru
          _
      $region52: #{tpu_custom_call.1} parent=5 // pred_fallthru
        _
      %p1958 = scmp.le.s32.totalorder 2, %s22
      // Predicated region
      $region77: #{tpu_custom_call.1} parent=5 // pred_check
        %p1959 = pneg %p1958
      $region78: #{tpu_custom_call.1} parent=5 // pred_check_branch
        %1961 = sbr.rel (%p1959) target = $region80
      $region79: #{tpu_custom_call.1} parent=5 // pred_region
        %s1962 = ssub.s32 %s22, 2
        // Predicated region
        $region81: #{tpu_custom_call.1} parent=79 // pred_check
          %p1963 = pneg %p224
        $region82: #{tpu_custom_call.1} parent=79 // pred_check_branch
          %1965 = sbr.rel (%p1963) target = $region84
        $region83: #{tpu_custom_call.1} parent=79 // pred_region
          %s1966 = sand.u32 %s209, 1
          %s1967 = scalar_lea.sflag [#allocation4], %s1966
          %s1968 = sand.u32 %s209, 1
          %s1969 = smul.addr %s1968, 16
          %s1970 = scalar_lea.vmem [#allocation11], %s1969
          %1971 = dma.done %s1967, 256
        $region84: #{tpu_custom_call.1} parent=79 // pred_fallthru
          _
      $region80: #{tpu_custom_call.1} parent=5 // pred_fallthru
        _
    $region6: #{tpu_custom_call.1} parent=1 // loop_footer
      %s26 = sadd.s32 1, %s22
    $region7: #{tpu_custom_call.1} parent=1 // loop_footer_branch
      %21 = sbr.rel target = $region3
    $region8: #{tpu_custom_call.1} parent=1 // loop_exit
      _
    %1972 = vsyncpa [#allocation3], 1
    %s1973 = scalar_lea.sflag [#allocation3], 1
    %1974 = vsyncpa %s1973, 1
    %1975 = vsyncpa [#allocation6], 1
    %1976 = vsyncpa [#allocation9], 1
    %1977 = vsyncpa [#allocation4], 1
    %s1978 = scalar_lea.sflag [#allocation4], 1
    %1979 = vsyncpa %s1978, 1

</llo_original>
